<compile_context>
chip_gen: v6e
topology: v6e:2x2x1
jax: 0.10.0
libtpu: 0.0.40
codegen_flags: <defaults>
</compile_context>

<pallas_src>
import numpy as np
import jax
import jax.numpy as jnp
from jax.experimental import pallas as pl
from jax.experimental.pallas import tpu as pltpu

_BN_EPS = 1e-5
_LN_EPS = 1e-5


# ----------------------------------------------------------------------------
# In-kernel helpers
# ----------------------------------------------------------------------------
def _gelu_tanh(x):
    # tanh-form GELU: tanh lowers to the EUP, keeping the VALU slot free.
    c = jnp.float32(0.7978845608028654)   # sqrt(2/pi)
    a = jnp.float32(0.044715)
    return jnp.float32(0.5) * x * (jnp.float32(1.0) + jnp.tanh(c * (x + a * x * x * x)))


def adaptive_pool_windows(L, S):
    """Static (start, end) windows matching torch AdaptiveAvgPool1d."""
    wins = []
    for i in range(S):
        start = (i * L) // S
        end = -((-(i + 1) * L) // S)   # ceil((i+1)*L/S)
        wins.append((start, end))
    return wins


# ----------------------------------------------------------------------------
# Fused kernel: conv stack + proj + adaptive pool + LayerNorm.
# One grid step = Bb batch elements; every intermediate lives in VMEM/vregs.
# ----------------------------------------------------------------------------
def _make_fused_kernel(conv_cfg, pool_windows, Bb, S, E, n_consts):
    n_conv = len(conv_cfg)

    def kernel(*refs):
        # refs: [x_ref] + consts (3 per conv layer, then Wp, bp, ln_g, ln_b)
        #       + [o_ref] + per-layer padded-activation scratch refs.
        x_ref = refs[0]
        o_ref = refs[1 + n_consts]
        pad_refs = refs[2 + n_consts:]
        assert len(pad_refs) == n_conv
        c = 1

        x2 = x_ref[...]                                      # (Bb*T, Cin) f32
        for l, cfg in enumerate(conv_cfg):
            w_ref, sc_ref, sh_ref = refs[c], refs[c + 1], refs[c + 2]
            c += 3
            K, st, dl, p = cfg["K"], cfg["stride"], cfg["dil"], cfg["pad"]
            L, Lo, Cin = cfg["L_in"], cfg["L_out"], cfg["Cin"]
            Lp = L + 2 * p
            pad_ref = pad_refs[l]

            # Zero-padded activation in VMEM scratch (per-sample segments).
            pad_ref[...] = jnp.zeros_like(pad_ref)
            for b in range(Bb):
                pad_ref[pl.ds(b * Lp + p, L), :] = x2[b * L:(b + 1) * L, :]

            if Cin == 1:
                # Degenerate contraction (K*Cin == K): VPU broadcast-MACs,
                # skip the (M, K)@(K, Cout) MXU matmul entirely.
                acc = None
                for k in range(K):
                    segs = [pad_ref[pl.ds(b * Lp + k * dl, Lo, stride=st), :]
                            for b in range(Bb)]
                    col = segs[0] if Bb == 1 else jnp.concatenate(segs, axis=0)
                    term = col * w_ref[k:k + 1, :].astype(jnp.float32)
                    acc = term if acc is None else acc + term
                y = acc                                      # (Bb*Lo, Cout) f32
            else:
                # Merge K taps into one contraction: (Bb*Lo, K*Cin) @ (K*Cin, Cout).
                rows = []
                for b in range(Bb):
                    taps = [pad_ref[pl.ds(b * Lp + k * dl, Lo, stride=st), :]
                            for k in range(K)]
                    rows.append(taps[0] if K == 1 else jnp.concatenate(taps, axis=-1))
                patch = rows[0] if Bb == 1 else jnp.concatenate(rows, axis=0)
                y = jnp.dot(patch.astype(jnp.bfloat16), w_ref[...],
                            preferred_element_type=jnp.float32)

            y = y * sc_ref[...] + sh_ref[...]                # folded bias + BN (f32)
            x2 = _gelu_tanh(y)                               # (Bb*Lo, Cout) f32

        wp_ref, bp_ref, g_ref, b_ref = refs[c], refs[c + 1], refs[c + 2], refs[c + 3]

        # 1x1 projection + GELU
        y = jnp.dot(x2.astype(jnp.bfloat16), wp_ref[...],
                    preferred_element_type=jnp.float32) + bp_ref[...]
        x2 = _gelu_tanh(y)                                   # (Bb*L_last, E) f32

        # Adaptive average pool: exact per-window means in f32 (static windows).
        L_last = conv_cfg[-1]["L_out"]
        rows = []
        for b in range(Bb):
            for (s0, s1) in pool_windows:
                seg = x2[b * L_last + s0: b * L_last + s1, :]
                rows.append(jnp.mean(seg, axis=0, keepdims=True))
        pooled = rows[0] if len(rows) == 1 else jnp.concatenate(rows, axis=0)  # (Bb*S, E)

        # LayerNorm (f32) and lane-dense store (E = multiple of 128).
        mu = jnp.mean(pooled, axis=-1, keepdims=True)
        var = jnp.mean(jnp.square(pooled - mu), axis=-1, keepdims=True)
        xn = (pooled - mu) * jax.lax.rsqrt(var + _LN_EPS)
        out = xn * g_ref[...] + b_ref[...]
        o_ref[...] = out.reshape(Bb, S, E).astype(o_ref.dtype)

    return kernel


# ----------------------------------------------------------------------------
# Build the fused forward: pack weights once (bf16 MXU operands, f32 affine).
# ----------------------------------------------------------------------------
def build_pallas_forward(params, in_channels, T, num_grid_blocks=1):
    blocks = params["blocks"]

    conv_cfg = []
    consts = []
    L = T
    for lp in blocks:
        Cout, Cin, K = lp["w"].shape
        st, dl, p = lp["stride"], lp["dilation"], lp["pad"]
        Lo = (L + 2 * p - dl * (K - 1) - 1) // st + 1
        # (Cout, Cin, K) -> (K, Cin, Cout) -> (K*Cin, Cout), bf16 for the MXU.
        w_packed = jnp.transpose(lp["w"], (2, 1, 0)).reshape(K * Cin, Cout).astype(jnp.bfloat16)
        consts += [w_packed,
                   lp["scale"].reshape(1, Cout).astype(jnp.float32),
                   lp["shift"].reshape(1, Cout).astype(jnp.float32)]
        conv_cfg.append(dict(K=K, stride=st, dil=dl, pad=p, Cin=Cin, Cout=Cout,
                             L_in=L, L_out=Lo))
        L = Lo

    E = params["proj_w"].shape[0]
    Wp = jnp.transpose(params["proj_w"][:, :, 0], (1, 0)).astype(jnp.bfloat16)  # (C_last, E)
    bp = params["proj_b"].reshape(1, E).astype(jnp.float32)
    S = params["seq_len"]
    ln_g = params["ln_g"].reshape(1, E).astype(jnp.float32)
    ln_b = params["ln_b"].reshape(1, E).astype(jnp.float32)
    consts += [Wp, bp, ln_g, ln_b]
    pool_windows = adaptive_pool_windows(L, S)
    n_consts = len(consts)

    def _const_spec(shape):
        nd = len(shape)
        return pl.BlockSpec(shape, lambda gidx, _nd=nd: (0,) * _nd)

    def forward(x_ncl):
        B, C_in_x, T_x = x_ncl.shape
        assert C_in_x == in_channels and T_x == T
        assert B % num_grid_blocks == 0
        Bb = B // num_grid_blocks

        kernel = _make_fused_kernel(conv_cfg, pool_windows, Bb, S, E, n_consts)

        # channels-last, batch folded into the row (matmul-M) dimension
        x2 = jnp.transpose(x_ncl, (0, 2, 1)).reshape(B * T, in_channels)

        in_specs = [pl.BlockSpec((Bb * T, in_channels), lambda gidx: (gidx, 0))]
        in_specs += [_const_spec(cst.shape) for cst in consts]
        scratch = [pltpu.VMEM((Bb * (cfg["L_in"] + 2 * cfg["pad"]), cfg["Cin"]),
                              jnp.float32) for cfg in conv_cfg]

        return pl.pallas_call(
            kernel,
            out_shape=jax.ShapeDtypeStruct((B, S, E), x_ncl.dtype),
            grid=(num_grid_blocks,),
            in_specs=in_specs,
            out_specs=pl.BlockSpec((Bb, S, E), lambda gidx: (gidx, 0, 0)),
            scratch_shapes=scratch,
            compiler_params=pltpu.CompilerParams(
                dimension_semantics=("parallel",),
                vmem_limit_bytes=48 * 1024 * 1024),
        )(x2, *consts)

    return forward


# ----------------------------------------------------------------------------
# Parameter init (deterministic, matching the PyTorch module's shapes)
# ----------------------------------------------------------------------------
def init_params(key, in_channels, base_channels, kernel_sizes, strides, dilations,
                embedding_dim, sequence_length):
    blocks = []
    cin = in_channels
    for i, (ks, st, dl) in enumerate(zip(kernel_sizes, strides, dilations)):
        cout = base_channels * (2 ** i)
        key, k1, k2, k3, k4 = jax.random.split(key, 5)
        w = jax.random.normal(k1, (cout, cin, ks), jnp.float32) / np.sqrt(cin * ks)
        b = 0.05 * jax.random.normal(k2, (cout,), jnp.float32)
        gamma = 1.0 + 0.1 * jax.random.normal(k3, (cout,), jnp.float32)
        beta = 0.1 * jax.random.normal(k4, (cout,), jnp.float32)
        rm = jnp.zeros((cout,), jnp.float32)   # BN running stats (eval-mode defaults)
        rv = jnp.ones((cout,), jnp.float32)
        scale = gamma / jnp.sqrt(rv + _BN_EPS)
        shift = beta + (b - rm) * scale
        blocks.append(dict(w=w, b=b, gamma=gamma, beta=beta, rm=rm, rv=rv,
                           scale=scale, shift=shift,
                           stride=st, pad=(ks - 1) // 2, dilation=dl))
        cin = cout
    key, k1, k2, k3, k4 = jax.random.split(key, 5)
    proj_w = jax.random.normal(k1, (embedding_dim, cin, 1), jnp.float32) / np.sqrt(cin)
    proj_b = 0.05 * jax.random.normal(k2, (embedding_dim,), jnp.float32)
    ln_g = 1.0 + 0.1 * jax.random.normal(k3, (embedding_dim,), jnp.float32)
    ln_b = 0.1 * jax.random.normal(k4, (embedding_dim,), jnp.float32)
    return dict(blocks=blocks, proj_w=proj_w, proj_b=proj_b,
                ln_g=ln_g, ln_b=ln_b, seq_len=sequence_length)


# ----------------------------------------------------------------------------
# Pure-JAX/XLA reference following the PyTorch module (exact erf GELU, f32)
# ----------------------------------------------------------------------------
def _adaptive_pool_matrix(L, S):
    P = np.zeros((S, L), dtype=np.float32)
    for i, (s0, s1) in enumerate(adaptive_pool_windows(L, S)):
        P[i, s0:s1] = 1.0 / (s1 - s0)
    return jnp.asarray(P)


def reference_forward(params, x_ncl):
    hi = jax.lax.Precision.HIGHEST
    x = x_ncl
    for lp in params["blocks"]:
        y = jax.lax.conv_general_dilated(
            x, lp["w"], window_strides=(lp["stride"],),
            padding=[(lp["pad"], lp["pad"])], rhs_dilation=(lp["dilation"],),
            dimension_numbers=("NCH", "OIH", "NCH"), precision=hi)
        y = y + lp["b"][None, :, None]
        y = (y - lp["rm"][None, :, None]) / jnp.sqrt(lp["rv"][None, :, None] + _BN_EPS)
        y = y * lp["gamma"][None, :, None] + lp["beta"][None, :, None]
        x = jax.nn.gelu(y, approximate=False)
    y = jax.lax.conv_general_dilated(
        x, params["proj_w"], window_strides=(1,), padding=[(0, 0)],
        dimension_numbers=("NCH", "OIH", "NCH"), precision=hi)
    y = y + params["proj_b"][None, :, None]
    x = jax.nn.gelu(y, approximate=False)
    P = _adaptive_pool_matrix(x.shape[-1], params["seq_len"])
    x = jnp.einsum("bcl,sl->bcs", x, P, precision=hi)   # adaptive avg pool
    x = jnp.transpose(x, (0, 2, 1))                      # (B, S, E)
    mu = x.mean(-1, keepdims=True)
    var = jnp.square(x - mu).mean(-1, keepdims=True)
    xn = (x - mu) / jnp.sqrt(var + _LN_EPS)
    return xn * params["ln_g"] + params["ln_b"]


# ----------------------------------------------------------------------------
if __name__ == "__main__":
    # Small shapes consistent with the module (T must survive 5x stride-2 convs)
    B, C_in, T = 4, 1, 256
    base_channels, embedding_dim, seq_len = 8, 128, 4

    key = jax.random.PRNGKey(0)
    kp, kx = jax.random.split(key)
    params = init_params(kp, in_channels=C_in, base_channels=base_channels,
                         kernel_sizes=[3, 3, 3, 3, 3], strides=[2, 2, 2, 2, 2],
                         dilations=[1, 1, 1, 1, 1],
                         embedding_dim=embedding_dim, sequence_length=seq_len)

    x = jax.random.uniform(kx, (B, C_in, T), jnp.float32, -1.0, 1.0)

    # num_grid_blocks=2: two "parallel" grid steps (one half-batch per TensorCore
    # on v7x); on single-TC v5e/v6e this is just a cheap 2-iteration loop.
    fused_forward = jax.jit(build_pallas_forward(params, C_in, T, num_grid_blocks=2))
    out = jax.block_until_ready(fused_forward(x))
    assert out.shape == (B, seq_len, embedding_dim)

    ref = jax.block_until_ready(reference_forward(params, x))
    # Tolerance reflects intentional single-pass bf16 MXU operands (f32 accumulate)
    # and tanh-approx GELU in the kernel vs. an exact-erf f32 reference.
    np.testing.assert_allclose(np.asarray(out), np.asarray(ref), rtol=3e-2, atol=3e-2)

    print("KERNEL_OK")
</pallas_src>

<mosaic_0001>
module attributes {stable_mosaic.version = 11 : i64} {
  func.func @kernel(%arg0: i32, %arg1: memref<512x1xf32, #tpu.memory_space<vmem>>, %arg2: memref<3x8xbf16, #tpu.memory_space<vmem>>, %arg3: memref<1x8xf32, #tpu.memory_space<vmem>>, %arg4: memref<1x8xf32, #tpu.memory_space<vmem>>, %arg5: memref<24x16xbf16, #tpu.memory_space<vmem>>, %arg6: memref<1x16xf32, #tpu.memory_space<vmem>>, %arg7: memref<1x16xf32, #tpu.memory_space<vmem>>, %arg8: memref<48x32xbf16, #tpu.memory_space<vmem>>, %arg9: memref<1x32xf32, #tpu.memory_space<vmem>>, %arg10: memref<1x32xf32, #tpu.memory_space<vmem>>, %arg11: memref<96x64xbf16, #tpu.memory_space<vmem>>, %arg12: memref<1x64xf32, #tpu.memory_space<vmem>>, %arg13: memref<1x64xf32, #tpu.memory_space<vmem>>, %arg14: memref<192x128xbf16, #tpu.memory_space<vmem>>, %arg15: memref<1x128xf32, #tpu.memory_space<vmem>>, %arg16: memref<1x128xf32, #tpu.memory_space<vmem>>, %arg17: memref<128x128xbf16, #tpu.memory_space<vmem>>, %arg18: memref<1x128xf32, #tpu.memory_space<vmem>>, %arg19: memref<1x128xf32, #tpu.memory_space<vmem>>, %arg20: memref<1x128xf32, #tpu.memory_space<vmem>>, %arg21: memref<2x4x128xf32, #tpu.memory_space<vmem>>, %arg22: memref<516x1xf32, #tpu.memory_space<vmem>>, %arg23: memref<260x8xf32, #tpu.memory_space<vmem>>, %arg24: memref<132x16xf32, #tpu.memory_space<vmem>>, %arg25: memref<68x32xf32, #tpu.memory_space<vmem>>, %arg26: memref<36x64xf32, #tpu.memory_space<vmem>>) attributes {dimension_semantics = [#tpu.dimension_semantics<parallel>], iteration_bounds = array<i64: 2>, scalar_prefetch = 0 : i64, scratch_operands = 5 : i64, tpu.core_type = #tpu.core_type<tc>, window_params = [{transform_indices = @transform_0, window_bounds = array<i64: 512, 1>}, {pipeline_mode = #tpu.pipeline_mode<synchronous>, transform_indices = @transform_1, window_bounds = array<i64: 3, 8>}, {pipeline_mode = #tpu.pipeline_mode<synchronous>, transform_indices = @transform_2, window_bounds = array<i64: 1, 8>}, {pipeline_mode = #tpu.pipeline_mode<synchronous>, transform_indices = @transform_3, window_bounds = array<i64: 1, 8>}, {pipeline_mode = #tpu.pipeline_mode<synchronous>, transform_indices = @transform_4, window_bounds = array<i64: 24, 16>}, {pipeline_mode = #tpu.pipeline_mode<synchronous>, transform_indices = @transform_5, window_bounds = array<i64: 1, 16>}, {pipeline_mode = #tpu.pipeline_mode<synchronous>, transform_indices = @transform_6, window_bounds = array<i64: 1, 16>}, {pipeline_mode = #tpu.pipeline_mode<synchronous>, transform_indices = @transform_7, window_bounds = array<i64: 48, 32>}, {pipeline_mode = #tpu.pipeline_mode<synchronous>, transform_indices = @transform_8, window_bounds = array<i64: 1, 32>}, {pipeline_mode = #tpu.pipeline_mode<synchronous>, transform_indices = @transform_9, window_bounds = array<i64: 1, 32>}, {pipeline_mode = #tpu.pipeline_mode<synchronous>, transform_indices = @transform_10, window_bounds = array<i64: 96, 64>}, {pipeline_mode = #tpu.pipeline_mode<synchronous>, transform_indices = @transform_11, window_bounds = array<i64: 1, 64>}, {pipeline_mode = #tpu.pipeline_mode<synchronous>, transform_indices = @transform_12, window_bounds = array<i64: 1, 64>}, {pipeline_mode = #tpu.pipeline_mode<synchronous>, transform_indices = @transform_13, window_bounds = array<i64: 192, 128>}, {pipeline_mode = #tpu.pipeline_mode<synchronous>, transform_indices = @transform_14, window_bounds = array<i64: 1, 128>}, {pipeline_mode = #tpu.pipeline_mode<synchronous>, transform_indices = @transform_15, window_bounds = array<i64: 1, 128>}, {pipeline_mode = #tpu.pipeline_mode<synchronous>, transform_indices = @transform_16, window_bounds = array<i64: 128, 128>}, {pipeline_mode = #tpu.pipeline_mode<synchronous>, transform_indices = @transform_17, window_bounds = array<i64: 1, 128>}, {pipeline_mode = #tpu.pipeline_mode<synchronous>, transform_indices = @transform_18, window_bounds = array<i64: 1, 128>}, {pipeline_mode = #tpu.pipeline_mode<synchronous>, transform_indices = @transform_19, window_bounds = array<i64: 1, 128>}, {transform_indices = @transform_20, window_bounds = array<i64: 2, 4, 128>}]} {
    %c0 = arith.constant 0 : index
    %c0_0 = arith.constant 0 : index
    %0 = vector.load %arg1[%c0, %c0_0] : memref<512x1xf32, #tpu.memory_space<vmem>>, vector<512x1xf32>
    %cst = arith.constant 0.000000e+00 : f32
    %1 = vector.broadcast %cst : f32 to vector<516x1xf32>
    %c0_1 = arith.constant 0 : index
    %c0_2 = arith.constant 0 : index
    %2 = vector.load %arg22[%c0_1, %c0_2] : memref<516x1xf32, #tpu.memory_space<vmem>>, vector<516x1xf32>
    tpu.vector_store %arg22[%c0_1, %c0_2], %1 {strides = array<i32>} : memref<516x1xf32, #tpu.memory_space<vmem>>, vector<516x1xf32>,
    %3 = vector.extract_strided_slice %0 {offsets = [0, 0], sizes = [256, 1], strides = [1, 1]} : vector<512x1xf32> to vector<256x1xf32>
    %c1 = arith.constant 1 : index
    %c0_3 = arith.constant 0 : index
    %4 = vector.load %arg22[%c1, %c0_3] : memref<516x1xf32, #tpu.memory_space<vmem>>, vector<256x1xf32>
    tpu.vector_store %arg22[%c1, %c0_3], %3 {strides = array<i32>} : memref<516x1xf32, #tpu.memory_space<vmem>>, vector<256x1xf32>,
    %5 = vector.extract_strided_slice %0 {offsets = [256, 0], sizes = [256, 1], strides = [1, 1]} : vector<512x1xf32> to vector<256x1xf32>
    %c259 = arith.constant 259 : index
    %c0_4 = arith.constant 0 : index
    %6 = vector.load %arg22[%c259, %c0_4] : memref<516x1xf32, #tpu.memory_space<vmem>>, vector<256x1xf32>
    tpu.vector_store %arg22[%c259, %c0_4], %5 {strides = array<i32>} : memref<516x1xf32, #tpu.memory_space<vmem>>, vector<256x1xf32>,
    %c0_5 = arith.constant 0 : index
    %c0_6 = arith.constant 0 : index
    %7 = tpu.strided_load %arg22[%c0_5, %c0_6] {strides = array<i32: 2, 1>} : memref<516x1xf32, #tpu.memory_space<vmem>>, vector<128x1xf32>
    %c258 = arith.constant 258 : index
    %c0_7 = arith.constant 0 : index
    %8 = tpu.strided_load %arg22[%c258, %c0_7] {strides = array<i32: 2, 1>} : memref<516x1xf32, #tpu.memory_space<vmem>>, vector<128x1xf32>
    %9 = tpu.concatenate %7, %8 in 0 : vector<128x1xf32>, vector<128x1xf32> -> vector<256x1xf32>
    %c0_8 = arith.constant 0 : index
    %c0_9 = arith.constant 0 : index
    %10 = vector.load %arg2[%c0_8, %c0_9] : memref<3x8xbf16, #tpu.memory_space<vmem>>, vector<1x8xbf16>
    %11 = arith.extf %10 : vector<1x8xbf16> to vector<1x8xf32>
    %12 = vector.broadcast %9 : vector<256x1xf32> to vector<256x8xf32>
    %13 = vector.broadcast %11 : vector<1x8xf32> to vector<256x8xf32>
    %14 = arith.mulf %12, %13 : vector<256x8xf32>
    %c1_10 = arith.constant 1 : index
    %c0_11 = arith.constant 0 : index
    %15 = tpu.strided_load %arg22[%c1_10, %c0_11] {strides = array<i32: 2, 1>} : memref<516x1xf32, #tpu.memory_space<vmem>>, vector<128x1xf32>
    %c259_12 = arith.constant 259 : index
    %c0_13 = arith.constant 0 : index
    %16 = tpu.strided_load %arg22[%c259_12, %c0_13] {strides = array<i32: 2, 1>} : memref<516x1xf32, #tpu.memory_space<vmem>>, vector<128x1xf32>
    %17 = tpu.concatenate %15, %16 in 0 : vector<128x1xf32>, vector<128x1xf32> -> vector<256x1xf32>
    %c1_14 = arith.constant 1 : index
    %c0_15 = arith.constant 0 : index
    %18 = vector.load %arg2[%c1_14, %c0_15] : memref<3x8xbf16, #tpu.memory_space<vmem>>, vector<1x8xbf16>
    %19 = arith.extf %18 : vector<1x8xbf16> to vector<1x8xf32>
    %20 = vector.broadcast %17 : vector<256x1xf32> to vector<256x8xf32>
    %21 = vector.broadcast %19 : vector<1x8xf32> to vector<256x8xf32>
    %22 = arith.mulf %20, %21 : vector<256x8xf32>
    %23 = arith.addf %14, %22 : vector<256x8xf32>
    %c2 = arith.constant 2 : index
    %c0_16 = arith.constant 0 : index
    %24 = tpu.strided_load %arg22[%c2, %c0_16] {strides = array<i32: 2, 1>} : memref<516x1xf32, #tpu.memory_space<vmem>>, vector<128x1xf32>
    %c260 = arith.constant 260 : index
    %c0_17 = arith.constant 0 : index
    %25 = tpu.strided_load %arg22[%c260, %c0_17] {strides = array<i32: 2, 1>} : memref<516x1xf32, #tpu.memory_space<vmem>>, vector<128x1xf32>
    %26 = tpu.concatenate %24, %25 in 0 : vector<128x1xf32>, vector<128x1xf32> -> vector<256x1xf32>
    %c2_18 = arith.constant 2 : index
    %c0_19 = arith.constant 0 : index
    %27 = vector.load %arg2[%c2_18, %c0_19] : memref<3x8xbf16, #tpu.memory_space<vmem>>, vector<1x8xbf16>
    %28 = arith.extf %27 : vector<1x8xbf16> to vector<1x8xf32>
    %29 = vector.broadcast %26 : vector<256x1xf32> to vector<256x8xf32>
    %30 = vector.broadcast %28 : vector<1x8xf32> to vector<256x8xf32>
    %31 = arith.mulf %29, %30 : vector<256x8xf32>
    %32 = arith.addf %23, %31 : vector<256x8xf32>
    %c0_20 = arith.constant 0 : index
    %c0_21 = arith.constant 0 : index
    %33 = vector.load %arg3[%c0_20, %c0_21] : memref<1x8xf32, #tpu.memory_space<vmem>>, vector<1x8xf32>
    %34 = vector.broadcast %33 : vector<1x8xf32> to vector<256x8xf32>
    %35 = arith.mulf %32, %34 : vector<256x8xf32>
    %c0_22 = arith.constant 0 : index
    %c0_23 = arith.constant 0 : index
    %36 = vector.load %arg4[%c0_22, %c0_23] : memref<1x8xf32, #tpu.memory_space<vmem>>, vector<1x8xf32>
    %37 = vector.broadcast %36 : vector<1x8xf32> to vector<256x8xf32>
    %38 = arith.addf %35, %37 : vector<256x8xf32>
    %cst_24 = arith.constant 5.000000e-01 : f32
    %39 = vector.broadcast %cst_24 : f32 to vector<256x8xf32>
    %40 = arith.mulf %39, %38 : vector<256x8xf32>
    %cst_25 = arith.constant 4.471500e-02 : f32
    %41 = vector.broadcast %cst_25 : f32 to vector<256x8xf32>
    %42 = arith.mulf %41, %38 : vector<256x8xf32>
    %43 = arith.mulf %42, %38 : vector<256x8xf32>
    %44 = arith.mulf %43, %38 : vector<256x8xf32>
    %45 = arith.addf %38, %44 : vector<256x8xf32>
    %cst_26 = arith.constant 0.797884583 : f32
    %46 = vector.broadcast %cst_26 : f32 to vector<256x8xf32>
    %47 = arith.mulf %46, %45 : vector<256x8xf32>
    %48 = math.tanh %47 : vector<256x8xf32>
    %cst_27 = arith.constant 1.000000e+00 : f32
    %49 = vector.broadcast %cst_27 : f32 to vector<256x8xf32>
    %50 = arith.addf %49, %48 : vector<256x8xf32>
    %51 = arith.mulf %40, %50 : vector<256x8xf32>
    %cst_28 = arith.constant 0.000000e+00 : f32
    %52 = vector.broadcast %cst_28 : f32 to vector<260x8xf32>
    %c0_29 = arith.constant 0 : index
    %c0_30 = arith.constant 0 : index
    %53 = vector.load %arg23[%c0_29, %c0_30] : memref<260x8xf32, #tpu.memory_space<vmem>>, vector<260x8xf32>
    tpu.vector_store %arg23[%c0_29, %c0_30], %52 {strides = array<i32>} : memref<260x8xf32, #tpu.memory_space<vmem>>, vector<260x8xf32>,
    %54 = vector.extract_strided_slice %51 {offsets = [0, 0], sizes = [128, 8], strides = [1, 1]} : vector<256x8xf32> to vector<128x8xf32>
    %c1_31 = arith.constant 1 : index
    %c0_32 = arith.constant 0 : index
    %55 = vector.load %arg23[%c1_31, %c0_32] : memref<260x8xf32, #tpu.memory_space<vmem>>, vector<128x8xf32>
    tpu.vector_store %arg23[%c1_31, %c0_32], %54 {strides = array<i32>} : memref<260x8xf32, #tpu.memory_space<vmem>>, vector<128x8xf32>,
    %56 = vector.extract_strided_slice %51 {offsets = [128, 0], sizes = [128, 8], strides = [1, 1]} : vector<256x8xf32> to vector<128x8xf32>
    %c131 = arith.constant 131 : index
    %c0_33 = arith.constant 0 : index
    %57 = vector.load %arg23[%c131, %c0_33] : memref<260x8xf32, #tpu.memory_space<vmem>>, vector<128x8xf32>
    tpu.vector_store %arg23[%c131, %c0_33], %56 {strides = array<i32>} : memref<260x8xf32, #tpu.memory_space<vmem>>, vector<128x8xf32>,
    %c0_34 = arith.constant 0 : index
    %c0_35 = arith.constant 0 : index
    %58 = tpu.strided_load %arg23[%c0_34, %c0_35] {strides = array<i32: 2, 1>} : memref<260x8xf32, #tpu.memory_space<vmem>>, vector<64x8xf32>
    %c1_36 = arith.constant 1 : index
    %c0_37 = arith.constant 0 : index
    %59 = tpu.strided_load %arg23[%c1_36, %c0_37] {strides = array<i32: 2, 1>} : memref<260x8xf32, #tpu.memory_space<vmem>>, vector<64x8xf32>
    %c2_38 = arith.constant 2 : index
    %c0_39 = arith.constant 0 : index
    %60 = tpu.strided_load %arg23[%c2_38, %c0_39] {strides = array<i32: 2, 1>} : memref<260x8xf32, #tpu.memory_space<vmem>>, vector<64x8xf32>
    %61 = tpu.concatenate %58, %59, %60 in 1 : vector<64x8xf32>, vector<64x8xf32>, vector<64x8xf32> -> vector<64x24xf32>
    %c130 = arith.constant 130 : index
    %c0_40 = arith.constant 0 : index
    %62 = tpu.strided_load %arg23[%c130, %c0_40] {strides = array<i32: 2, 1>} : memref<260x8xf32, #tpu.memory_space<vmem>>, vector<64x8xf32>
    %c131_41 = arith.constant 131 : index
    %c0_42 = arith.constant 0 : index
    %63 = tpu.strided_load %arg23[%c131_41, %c0_42] {strides = array<i32: 2, 1>} : memref<260x8xf32, #tpu.memory_space<vmem>>, vector<64x8xf32>
    %c132 = arith.constant 132 : index
    %c0_43 = arith.constant 0 : index
    %64 = tpu.strided_load %arg23[%c132, %c0_43] {strides = array<i32: 2, 1>} : memref<260x8xf32, #tpu.memory_space<vmem>>, vector<64x8xf32>
    %65 = tpu.concatenate %62, %63, %64 in 1 : vector<64x8xf32>, vector<64x8xf32>, vector<64x8xf32> -> vector<64x24xf32>
    %66 = tpu.concatenate %61, %65 in 0 : vector<64x24xf32>, vector<64x24xf32> -> vector<128x24xf32>
    %67 = arith.truncf %66 : vector<128x24xf32> to vector<128x24xbf16>
    %c0_44 = arith.constant 0 : index
    %c0_45 = arith.constant 0 : index
    %68 = vector.load %arg5[%c0_44, %c0_45] : memref<24x16xbf16, #tpu.memory_space<vmem>>, vector<24x16xbf16>
    %cst_46 = arith.constant dense<0.000000e+00> : vector<128x16xf32>
    %69 = tpu.matmul %67, %68, %cst_46 {dimension_numbers = #tpu.dot_dimension_numbers<[1], [0], [0], [1], [0, 0, 1, 1], [], []>} : vector<128x24xbf16>, vector<24x16xbf16>, vector<128x16xf32> -> vector<128x16xf32>
    %c0_47 = arith.constant 0 : index
    %c0_48 = arith.constant 0 : index
    %70 = vector.load %arg6[%c0_47, %c0_48] : memref<1x16xf32, #tpu.memory_space<vmem>>, vector<1x16xf32>
    %71 = vector.broadcast %70 : vector<1x16xf32> to vector<128x16xf32>
    %72 = arith.mulf %69, %71 : vector<128x16xf32>
    %c0_49 = arith.constant 0 : index
    %c0_50 = arith.constant 0 : index
    %73 = vector.load %arg7[%c0_49, %c0_50] : memref<1x16xf32, #tpu.memory_space<vmem>>, vector<1x16xf32>
    %74 = vector.broadcast %73 : vector<1x16xf32> to vector<128x16xf32>
    %75 = arith.addf %72, %74 : vector<128x16xf32>
    %cst_51 = arith.constant 5.000000e-01 : f32
    %76 = vector.broadcast %cst_51 : f32 to vector<128x16xf32>
    %77 = arith.mulf %76, %75 : vector<128x16xf32>
    %cst_52 = arith.constant 4.471500e-02 : f32
    %78 = vector.broadcast %cst_52 : f32 to vector<128x16xf32>
    %79 = arith.mulf %78, %75 : vector<128x16xf32>
    %80 = arith.mulf %79, %75 : vector<128x16xf32>
    %81 = arith.mulf %80, %75 : vector<128x16xf32>
    %82 = arith.addf %75, %81 : vector<128x16xf32>
    %cst_53 = arith.constant 0.797884583 : f32
    %83 = vector.broadcast %cst_53 : f32 to vector<128x16xf32>
    %84 = arith.mulf %83, %82 : vector<128x16xf32>
    %85 = math.tanh %84 : vector<128x16xf32>
    %cst_54 = arith.constant 1.000000e+00 : f32
    %86 = vector.broadcast %cst_54 : f32 to vector<128x16xf32>
    %87 = arith.addf %86, %85 : vector<128x16xf32>
    %88 = arith.mulf %77, %87 : vector<128x16xf32>
    %cst_55 = arith.constant 0.000000e+00 : f32
    %89 = vector.broadcast %cst_55 : f32 to vector<132x16xf32>
    %c0_56 = arith.constant 0 : index
    %c0_57 = arith.constant 0 : index
    %90 = vector.load %arg24[%c0_56, %c0_57] : memref<132x16xf32, #tpu.memory_space<vmem>>, vector<132x16xf32>
    tpu.vector_store %arg24[%c0_56, %c0_57], %89 {strides = array<i32>} : memref<132x16xf32, #tpu.memory_space<vmem>>, vector<132x16xf32>,
    %91 = vector.extract_strided_slice %88 {offsets = [0, 0], sizes = [64, 16], strides = [1, 1]} : vector<128x16xf32> to vector<64x16xf32>
    %c1_58 = arith.constant 1 : index
    %c0_59 = arith.constant 0 : index
    %92 = vector.load %arg24[%c1_58, %c0_59] : memref<132x16xf32, #tpu.memory_space<vmem>>, vector<64x16xf32>
    tpu.vector_store %arg24[%c1_58, %c0_59], %91 {strides = array<i32>} : memref<132x16xf32, #tpu.memory_space<vmem>>, vector<64x16xf32>,
    %93 = vector.extract_strided_slice %88 {offsets = [64, 0], sizes = [64, 16], strides = [1, 1]} : vector<128x16xf32> to vector<64x16xf32>
    %c67 = arith.constant 67 : index
    %c0_60 = arith.constant 0 : index
    %94 = vector.load %arg24[%c67, %c0_60] : memref<132x16xf32, #tpu.memory_space<vmem>>, vector<64x16xf32>
    tpu.vector_store %arg24[%c67, %c0_60], %93 {strides = array<i32>} : memref<132x16xf32, #tpu.memory_space<vmem>>, vector<64x16xf32>,
    %c0_61 = arith.constant 0 : index
    %c0_62 = arith.constant 0 : index
    %95 = tpu.strided_load %arg24[%c0_61, %c0_62] {strides = array<i32: 2, 1>} : memref<132x16xf32, #tpu.memory_space<vmem>>, vector<32x16xf32>
    %c1_63 = arith.constant 1 : index
    %c0_64 = arith.constant 0 : index
    %96 = tpu.strided_load %arg24[%c1_63, %c0_64] {strides = array<i32: 2, 1>} : memref<132x16xf32, #tpu.memory_space<vmem>>, vector<32x16xf32>
    %c2_65 = arith.constant 2 : index
    %c0_66 = arith.constant 0 : index
    %97 = tpu.strided_load %arg24[%c2_65, %c0_66] {strides = array<i32: 2, 1>} : memref<132x16xf32, #tpu.memory_space<vmem>>, vector<32x16xf32>
    %98 = tpu.concatenate %95, %96, %97 in 1 : vector<32x16xf32>, vector<32x16xf32>, vector<32x16xf32> -> vector<32x48xf32>
    %c66 = arith.constant 66 : index
    %c0_67 = arith.constant 0 : index
    %99 = tpu.strided_load %arg24[%c66, %c0_67] {strides = array<i32: 2, 1>} : memref<132x16xf32, #tpu.memory_space<vmem>>, vector<32x16xf32>
    %c67_68 = arith.constant 67 : index
    %c0_69 = arith.constant 0 : index
    %100 = tpu.strided_load %arg24[%c67_68, %c0_69] {strides = array<i32: 2, 1>} : memref<132x16xf32, #tpu.memory_space<vmem>>, vector<32x16xf32>
    %c68 = arith.constant 68 : index
    %c0_70 = arith.constant 0 : index
    %101 = tpu.strided_load %arg24[%c68, %c0_70] {strides = array<i32: 2, 1>} : memref<132x16xf32, #tpu.memory_space<vmem>>, vector<32x16xf32>
    %102 = tpu.concatenate %99, %100, %101 in 1 : vector<32x16xf32>, vector<32x16xf32>, vector<32x16xf32> -> vector<32x48xf32>
    %103 = tpu.concatenate %98, %102 in 0 : vector<32x48xf32>, vector<32x48xf32> -> vector<64x48xf32>
    %104 = arith.truncf %103 : vector<64x48xf32> to vector<64x48xbf16>
    %c0_71 = arith.constant 0 : index
    %c0_72 = arith.constant 0 : index
    %105 = vector.load %arg8[%c0_71, %c0_72] : memref<48x32xbf16, #tpu.memory_space<vmem>>, vector<48x32xbf16>
    %cst_73 = arith.constant dense<0.000000e+00> : vector<64x32xf32>
    %106 = tpu.matmul %104, %105, %cst_73 {dimension_numbers = #tpu.dot_dimension_numbers<[1], [0], [0], [1], [0, 0, 1, 1], [], []>} : vector<64x48xbf16>, vector<48x32xbf16>, vector<64x32xf32> -> vector<64x32xf32>
    %c0_74 = arith.constant 0 : index
    %c0_75 = arith.constant 0 : index
    %107 = vector.load %arg9[%c0_74, %c0_75] : memref<1x32xf32, #tpu.memory_space<vmem>>, vector<1x32xf32>
    %108 = vector.broadcast %107 : vector<1x32xf32> to vector<64x32xf32>
    %109 = arith.mulf %106, %108 : vector<64x32xf32>
    %c0_76 = arith.constant 0 : index
    %c0_77 = arith.constant 0 : index
    %110 = vector.load %arg10[%c0_76, %c0_77] : memref<1x32xf32, #tpu.memory_space<vmem>>, vector<1x32xf32>
    %111 = vector.broadcast %110 : vector<1x32xf32> to vector<64x32xf32>
    %112 = arith.addf %109, %111 : vector<64x32xf32>
    %cst_78 = arith.constant 5.000000e-01 : f32
    %113 = vector.broadcast %cst_78 : f32 to vector<64x32xf32>
    %114 = arith.mulf %113, %112 : vector<64x32xf32>
    %cst_79 = arith.constant 4.471500e-02 : f32
    %115 = vector.broadcast %cst_79 : f32 to vector<64x32xf32>
    %116 = arith.mulf %115, %112 : vector<64x32xf32>
    %117 = arith.mulf %116, %112 : vector<64x32xf32>
    %118 = arith.mulf %117, %112 : vector<64x32xf32>
    %119 = arith.addf %112, %118 : vector<64x32xf32>
    %cst_80 = arith.constant 0.797884583 : f32
    %120 = vector.broadcast %cst_80 : f32 to vector<64x32xf32>
    %121 = arith.mulf %120, %119 : vector<64x32xf32>
    %122 = math.tanh %121 : vector<64x32xf32>
    %cst_81 = arith.constant 1.000000e+00 : f32
    %123 = vector.broadcast %cst_81 : f32 to vector<64x32xf32>
    %124 = arith.addf %123, %122 : vector<64x32xf32>
    %125 = arith.mulf %114, %124 : vector<64x32xf32>
    %cst_82 = arith.constant 0.000000e+00 : f32
    %126 = vector.broadcast %cst_82 : f32 to vector<68x32xf32>
    %c0_83 = arith.constant 0 : index
    %c0_84 = arith.constant 0 : index
    %127 = vector.load %arg25[%c0_83, %c0_84] : memref<68x32xf32, #tpu.memory_space<vmem>>, vector<68x32xf32>
    tpu.vector_store %arg25[%c0_83, %c0_84], %126 {strides = array<i32>} : memref<68x32xf32, #tpu.memory_space<vmem>>, vector<68x32xf32>,
    %128 = vector.extract_strided_slice %125 {offsets = [0, 0], sizes = [32, 32], strides = [1, 1]} : vector<64x32xf32> to vector<32x32xf32>
    %c1_85 = arith.constant 1 : index
    %c0_86 = arith.constant 0 : index
    %129 = vector.load %arg25[%c1_85, %c0_86] : memref<68x32xf32, #tpu.memory_space<vmem>>, vector<32x32xf32>
    tpu.vector_store %arg25[%c1_85, %c0_86], %128 {strides = array<i32>} : memref<68x32xf32, #tpu.memory_space<vmem>>, vector<32x32xf32>,
    %130 = vector.extract_strided_slice %125 {offsets = [32, 0], sizes = [32, 32], strides = [1, 1]} : vector<64x32xf32> to vector<32x32xf32>
    %c35 = arith.constant 35 : index
    %c0_87 = arith.constant 0 : index
    %131 = vector.load %arg25[%c35, %c0_87] : memref<68x32xf32, #tpu.memory_space<vmem>>, vector<32x32xf32>
    tpu.vector_store %arg25[%c35, %c0_87], %130 {strides = array<i32>} : memref<68x32xf32, #tpu.memory_space<vmem>>, vector<32x32xf32>,
    %c0_88 = arith.constant 0 : index
    %c0_89 = arith.constant 0 : index
    %132 = tpu.strided_load %arg25[%c0_88, %c0_89] {strides = array<i32: 2, 1>} : memref<68x32xf32, #tpu.memory_space<vmem>>, vector<16x32xf32>
    %c1_90 = arith.constant 1 : index
    %c0_91 = arith.constant 0 : index
    %133 = tpu.strided_load %arg25[%c1_90, %c0_91] {strides = array<i32: 2, 1>} : memref<68x32xf32, #tpu.memory_space<vmem>>, vector<16x32xf32>
    %c2_92 = arith.constant 2 : index
    %c0_93 = arith.constant 0 : index
    %134 = tpu.strided_load %arg25[%c2_92, %c0_93] {strides = array<i32: 2, 1>} : memref<68x32xf32, #tpu.memory_space<vmem>>, vector<16x32xf32>
    %135 = tpu.concatenate %132, %133, %134 in 1 : vector<16x32xf32>, vector<16x32xf32>, vector<16x32xf32> -> vector<16x96xf32>
    %c34 = arith.constant 34 : index
    %c0_94 = arith.constant 0 : index
    %136 = tpu.strided_load %arg25[%c34, %c0_94] {strides = array<i32: 2, 1>} : memref<68x32xf32, #tpu.memory_space<vmem>>, vector<16x32xf32>
    %c35_95 = arith.constant 35 : index
    %c0_96 = arith.constant 0 : index
    %137 = tpu.strided_load %arg25[%c35_95, %c0_96] {strides = array<i32: 2, 1>} : memref<68x32xf32, #tpu.memory_space<vmem>>, vector<16x32xf32>
    %c36 = arith.constant 36 : index
    %c0_97 = arith.constant 0 : index
    %138 = tpu.strided_load %arg25[%c36, %c0_97] {strides = array<i32: 2, 1>} : memref<68x32xf32, #tpu.memory_space<vmem>>, vector<16x32xf32>
    %139 = tpu.concatenate %136, %137, %138 in 1 : vector<16x32xf32>, vector<16x32xf32>, vector<16x32xf32> -> vector<16x96xf32>
    %140 = tpu.concatenate %135, %139 in 0 : vector<16x96xf32>, vector<16x96xf32> -> vector<32x96xf32>
    %141 = arith.truncf %140 : vector<32x96xf32> to vector<32x96xbf16>
    %c0_98 = arith.constant 0 : index
    %c0_99 = arith.constant 0 : index
    %142 = vector.load %arg11[%c0_98, %c0_99] : memref<96x64xbf16, #tpu.memory_space<vmem>>, vector<96x64xbf16>
    %cst_100 = arith.constant dense<0.000000e+00> : vector<32x64xf32>
    %143 = tpu.matmul %141, %142, %cst_100 {dimension_numbers = #tpu.dot_dimension_numbers<[1], [0], [0], [1], [0, 0, 1, 1], [], []>} : vector<32x96xbf16>, vector<96x64xbf16>, vector<32x64xf32> -> vector<32x64xf32>
    %c0_101 = arith.constant 0 : index
    %c0_102 = arith.constant 0 : index
    %144 = vector.load %arg12[%c0_101, %c0_102] : memref<1x64xf32, #tpu.memory_space<vmem>>, vector<1x64xf32>
    %145 = vector.broadcast %144 : vector<1x64xf32> to vector<32x64xf32>
    %146 = arith.mulf %143, %145 : vector<32x64xf32>
    %c0_103 = arith.constant 0 : index
    %c0_104 = arith.constant 0 : index
    %147 = vector.load %arg13[%c0_103, %c0_104] : memref<1x64xf32, #tpu.memory_space<vmem>>, vector<1x64xf32>
    %148 = vector.broadcast %147 : vector<1x64xf32> to vector<32x64xf32>
    %149 = arith.addf %146, %148 : vector<32x64xf32>
    %cst_105 = arith.constant 5.000000e-01 : f32
    %150 = vector.broadcast %cst_105 : f32 to vector<32x64xf32>
    %151 = arith.mulf %150, %149 : vector<32x64xf32>
    %cst_106 = arith.constant 4.471500e-02 : f32
    %152 = vector.broadcast %cst_106 : f32 to vector<32x64xf32>
    %153 = arith.mulf %152, %149 : vector<32x64xf32>
    %154 = arith.mulf %153, %149 : vector<32x64xf32>
    %155 = arith.mulf %154, %149 : vector<32x64xf32>
    %156 = arith.addf %149, %155 : vector<32x64xf32>
    %cst_107 = arith.constant 0.797884583 : f32
    %157 = vector.broadcast %cst_107 : f32 to vector<32x64xf32>
    %158 = arith.mulf %157, %156 : vector<32x64xf32>
    %159 = math.tanh %158 : vector<32x64xf32>
    %cst_108 = arith.constant 1.000000e+00 : f32
    %160 = vector.broadcast %cst_108 : f32 to vector<32x64xf32>
    %161 = arith.addf %160, %159 : vector<32x64xf32>
    %162 = arith.mulf %151, %161 : vector<32x64xf32>
    %cst_109 = arith.constant 0.000000e+00 : f32
    %163 = vector.broadcast %cst_109 : f32 to vector<36x64xf32>
    %c0_110 = arith.constant 0 : index
    %c0_111 = arith.constant 0 : index
    %164 = vector.load %arg26[%c0_110, %c0_111] : memref<36x64xf32, #tpu.memory_space<vmem>>, vector<36x64xf32>
    tpu.vector_store %arg26[%c0_110, %c0_111], %163 {strides = array<i32>} : memref<36x64xf32, #tpu.memory_space<vmem>>, vector<36x64xf32>,
    %165 = vector.extract_strided_slice %162 {offsets = [0, 0], sizes = [16, 64], strides = [1, 1]} : vector<32x64xf32> to vector<16x64xf32>
    %c1_112 = arith.constant 1 : index
    %c0_113 = arith.constant 0 : index
    %166 = vector.load %arg26[%c1_112, %c0_113] : memref<36x64xf32, #tpu.memory_space<vmem>>, vector<16x64xf32>
    tpu.vector_store %arg26[%c1_112, %c0_113], %165 {strides = array<i32>} : memref<36x64xf32, #tpu.memory_space<vmem>>, vector<16x64xf32>,
    %167 = vector.extract_strided_slice %162 {offsets = [16, 0], sizes = [16, 64], strides = [1, 1]} : vector<32x64xf32> to vector<16x64xf32>
    %c19 = arith.constant 19 : index
    %c0_114 = arith.constant 0 : index
    %168 = vector.load %arg26[%c19, %c0_114] : memref<36x64xf32, #tpu.memory_space<vmem>>, vector<16x64xf32>
    tpu.vector_store %arg26[%c19, %c0_114], %167 {strides = array<i32>} : memref<36x64xf32, #tpu.memory_space<vmem>>, vector<16x64xf32>,
    %c0_115 = arith.constant 0 : index
    %c0_116 = arith.constant 0 : index
    %169 = tpu.strided_load %arg26[%c0_115, %c0_116] {strides = array<i32: 2, 1>} : memref<36x64xf32, #tpu.memory_space<vmem>>, vector<8x64xf32>
    %c1_117 = arith.constant 1 : index
    %c0_118 = arith.constant 0 : index
    %170 = tpu.strided_load %arg26[%c1_117, %c0_118] {strides = array<i32: 2, 1>} : memref<36x64xf32, #tpu.memory_space<vmem>>, vector<8x64xf32>
    %c2_119 = arith.constant 2 : index
    %c0_120 = arith.constant 0 : index
    %171 = tpu.strided_load %arg26[%c2_119, %c0_120] {strides = array<i32: 2, 1>} : memref<36x64xf32, #tpu.memory_space<vmem>>, vector<8x64xf32>
    %172 = tpu.concatenate %169, %170, %171 in 1 : vector<8x64xf32>, vector<8x64xf32>, vector<8x64xf32> -> vector<8x192xf32>
    %c18 = arith.constant 18 : index
    %c0_121 = arith.constant 0 : index
    %173 = tpu.strided_load %arg26[%c18, %c0_121] {strides = array<i32: 2, 1>} : memref<36x64xf32, #tpu.memory_space<vmem>>, vector<8x64xf32>
    %c19_122 = arith.constant 19 : index
    %c0_123 = arith.constant 0 : index
    %174 = tpu.strided_load %arg26[%c19_122, %c0_123] {strides = array<i32: 2, 1>} : memref<36x64xf32, #tpu.memory_space<vmem>>, vector<8x64xf32>
    %c20 = arith.constant 20 : index
    %c0_124 = arith.constant 0 : index
    %175 = tpu.strided_load %arg26[%c20, %c0_124] {strides = array<i32: 2, 1>} : memref<36x64xf32, #tpu.memory_space<vmem>>, vector<8x64xf32>
    %176 = tpu.concatenate %173, %174, %175 in 1 : vector<8x64xf32>, vector<8x64xf32>, vector<8x64xf32> -> vector<8x192xf32>
    %177 = tpu.concatenate %172, %176 in 0 : vector<8x192xf32>, vector<8x192xf32> -> vector<16x192xf32>
    %178 = arith.truncf %177 : vector<16x192xf32> to vector<16x192xbf16>
    %c0_125 = arith.constant 0 : index
    %c0_126 = arith.constant 0 : index
    %179 = vector.load %arg14[%c0_125, %c0_126] : memref<192x128xbf16, #tpu.memory_space<vmem>>, vector<192x128xbf16>
    %cst_127 = arith.constant dense<0.000000e+00> : vector<16x128xf32>
    %180 = tpu.matmul %178, %179, %cst_127 {dimension_numbers = #tpu.dot_dimension_numbers<[1], [0], [0], [1], [0, 0, 1, 1], [], []>} : vector<16x192xbf16>, vector<192x128xbf16>, vector<16x128xf32> -> vector<16x128xf32>
    %c0_128 = arith.constant 0 : index
    %c0_129 = arith.constant 0 : index
    %181 = vector.load %arg15[%c0_128, %c0_129] : memref<1x128xf32, #tpu.memory_space<vmem>>, vector<1x128xf32>
    %182 = vector.broadcast %181 : vector<1x128xf32> to vector<16x128xf32>
    %183 = arith.mulf %180, %182 : vector<16x128xf32>
    %c0_130 = arith.constant 0 : index
    %c0_131 = arith.constant 0 : index
    %184 = vector.load %arg16[%c0_130, %c0_131] : memref<1x128xf32, #tpu.memory_space<vmem>>, vector<1x128xf32>
    %185 = vector.broadcast %184 : vector<1x128xf32> to vector<16x128xf32>
    %186 = arith.addf %183, %185 : vector<16x128xf32>
    %cst_132 = arith.constant 5.000000e-01 : f32
    %187 = vector.broadcast %cst_132 : f32 to vector<16x128xf32>
    %188 = arith.mulf %187, %186 : vector<16x128xf32>
    %cst_133 = arith.constant 4.471500e-02 : f32
    %189 = vector.broadcast %cst_133 : f32 to vector<16x128xf32>
    %190 = arith.mulf %189, %186 : vector<16x128xf32>
    %191 = arith.mulf %190, %186 : vector<16x128xf32>
    %192 = arith.mulf %191, %186 : vector<16x128xf32>
    %193 = arith.addf %186, %192 : vector<16x128xf32>
    %cst_134 = arith.constant 0.797884583 : f32
    %194 = vector.broadcast %cst_134 : f32 to vector<16x128xf32>
    %195 = arith.mulf %194, %193 : vector<16x128xf32>
    %196 = math.tanh %195 : vector<16x128xf32>
    %cst_135 = arith.constant 1.000000e+00 : f32
    %197 = vector.broadcast %cst_135 : f32 to vector<16x128xf32>
    %198 = arith.addf %197, %196 : vector<16x128xf32>
    %199 = arith.mulf %188, %198 : vector<16x128xf32>
    %200 = arith.truncf %199 : vector<16x128xf32> to vector<16x128xbf16>
    %c0_136 = arith.constant 0 : index
    %c0_137 = arith.constant 0 : index
    %201 = vector.load %arg17[%c0_136, %c0_137] : memref<128x128xbf16, #tpu.memory_space<vmem>>, vector<128x128xbf16>
    %cst_138 = arith.constant dense<0.000000e+00> : vector<16x128xf32>
    %202 = tpu.matmul %200, %201, %cst_138 {dimension_numbers = #tpu.dot_dimension_numbers<[1], [0], [0], [1], [0, 0, 1, 1], [], []>} : vector<16x128xbf16>, vector<128x128xbf16>, vector<16x128xf32> -> vector<16x128xf32>
    %c0_139 = arith.constant 0 : index
    %c0_140 = arith.constant 0 : index
    %203 = vector.load %arg18[%c0_139, %c0_140] : memref<1x128xf32, #tpu.memory_space<vmem>>, vector<1x128xf32>
    %204 = vector.broadcast %203 : vector<1x128xf32> to vector<16x128xf32>
    %205 = arith.addf %202, %204 : vector<16x128xf32>
    %cst_141 = arith.constant 5.000000e-01 : f32
    %206 = vector.broadcast %cst_141 : f32 to vector<16x128xf32>
    %207 = arith.mulf %206, %205 : vector<16x128xf32>
    %cst_142 = arith.constant 4.471500e-02 : f32
    %208 = vector.broadcast %cst_142 : f32 to vector<16x128xf32>
    %209 = arith.mulf %208, %205 : vector<16x128xf32>
    %210 = arith.mulf %209, %205 : vector<16x128xf32>
    %211 = arith.mulf %210, %205 : vector<16x128xf32>
    %212 = arith.addf %205, %211 : vector<16x128xf32>
    %cst_143 = arith.constant 0.797884583 : f32
    %213 = vector.broadcast %cst_143 : f32 to vector<16x128xf32>
    %214 = arith.mulf %213, %212 : vector<16x128xf32>
    %215 = math.tanh %214 : vector<16x128xf32>
    %cst_144 = arith.constant 1.000000e+00 : f32
    %216 = vector.broadcast %cst_144 : f32 to vector<16x128xf32>
    %217 = arith.addf %216, %215 : vector<16x128xf32>
    %218 = arith.mulf %207, %217 : vector<16x128xf32>
    %219 = vector.extract_strided_slice %218 {offsets = [0, 0], sizes = [2, 128], strides = [1, 1]} : vector<16x128xf32> to vector<2x128xf32>
    %cst_145 = arith.constant dense<0.000000e+00> : vector<128xf32>
    %220 = vector.multi_reduction <add>, %219, %cst_145 [0] : vector<2x128xf32> to vector<128xf32>
    %221 = vector.shape_cast %220 : vector<128xf32> to vector<1x128xf32>
    %cst_146 = arith.constant 2.000000e+00 : f32
    %222 = vector.broadcast %cst_146 : f32 to vector<1x128xf32>
    %223 = arith.divf %221, %222 : vector<1x128xf32>
    %224 = vector.extract_strided_slice %218 {offsets = [2, 0], sizes = [2, 128], strides = [1, 1]} : vector<16x128xf32> to vector<2x128xf32>
    %cst_147 = arith.constant dense<0.000000e+00> : vector<128xf32>
    %225 = vector.multi_reduction <add>, %224, %cst_147 [0] : vector<2x128xf32> to vector<128xf32>
    %226 = vector.shape_cast %225 : vector<128xf32> to vector<1x128xf32>
    %cst_148 = arith.constant 2.000000e+00 : f32
    %227 = vector.broadcast %cst_148 : f32 to vector<1x128xf32>
    %228 = arith.divf %226, %227 : vector<1x128xf32>
    %229 = vector.extract_strided_slice %218 {offsets = [4, 0], sizes = [2, 128], strides = [1, 1]} : vector<16x128xf32> to vector<2x128xf32>
    %cst_149 = arith.constant dense<0.000000e+00> : vector<128xf32>
    %230 = vector.multi_reduction <add>, %229, %cst_149 [0] : vector<2x128xf32> to vector<128xf32>
    %231 = vector.shape_cast %230 : vector<128xf32> to vector<1x128xf32>
    %cst_150 = arith.constant 2.000000e+00 : f32
    %232 = vector.broadcast %cst_150 : f32 to vector<1x128xf32>
    %233 = arith.divf %231, %232 : vector<1x128xf32>
    %234 = vector.extract_strided_slice %218 {offsets = [6, 0], sizes = [2, 128], strides = [1, 1]} : vector<16x128xf32> to vector<2x128xf32>
    %cst_151 = arith.constant dense<0.000000e+00> : vector<128xf32>
    %235 = vector.multi_reduction <add>, %234, %cst_151 [0] : vector<2x128xf32> to vector<128xf32>
    %236 = vector.shape_cast %235 : vector<128xf32> to vector<1x128xf32>
    %cst_152 = arith.constant 2.000000e+00 : f32
    %237 = vector.broadcast %cst_152 : f32 to vector<1x128xf32>
    %238 = arith.divf %236, %237 : vector<1x128xf32>
    %239 = vector.extract_strided_slice %218 {offsets = [8, 0], sizes = [2, 128], strides = [1, 1]} : vector<16x128xf32> to vector<2x128xf32>
    %cst_153 = arith.constant dense<0.000000e+00> : vector<128xf32>
    %240 = vector.multi_reduction <add>, %239, %cst_153 [0] : vector<2x128xf32> to vector<128xf32>
    %241 = vector.shape_cast %240 : vector<128xf32> to vector<1x128xf32>
    %cst_154 = arith.constant 2.000000e+00 : f32
    %242 = vector.broadcast %cst_154 : f32 to vector<1x128xf32>
    %243 = arith.divf %241, %242 : vector<1x128xf32>
    %244 = vector.extract_strided_slice %218 {offsets = [10, 0], sizes = [2, 128], strides = [1, 1]} : vector<16x128xf32> to vector<2x128xf32>
    %cst_155 = arith.constant dense<0.000000e+00> : vector<128xf32>
    %245 = vector.multi_reduction <add>, %244, %cst_155 [0] : vector<2x128xf32> to vector<128xf32>
    %246 = vector.shape_cast %245 : vector<128xf32> to vector<1x128xf32>
    %cst_156 = arith.constant 2.000000e+00 : f32
    %247 = vector.broadcast %cst_156 : f32 to vector<1x128xf32>
    %248 = arith.divf %246, %247 : vector<1x128xf32>
    %249 = vector.extract_strided_slice %218 {offsets = [12, 0], sizes = [2, 128], strides = [1, 1]} : vector<16x128xf32> to vector<2x128xf32>
    %cst_157 = arith.constant dense<0.000000e+00> : vector<128xf32>
    %250 = vector.multi_reduction <add>, %249, %cst_157 [0] : vector<2x128xf32> to vector<128xf32>
    %251 = vector.shape_cast %250 : vector<128xf32> to vector<1x128xf32>
    %cst_158 = arith.constant 2.000000e+00 : f32
    %252 = vector.broadcast %cst_158 : f32 to vector<1x128xf32>
    %253 = arith.divf %251, %252 : vector<1x128xf32>
    %254 = vector.extract_strided_slice %218 {offsets = [14, 0], sizes = [2, 128], strides = [1, 1]} : vector<16x128xf32> to vector<2x128xf32>
    %cst_159 = arith.constant dense<0.000000e+00> : vector<128xf32>
    %255 = vector.multi_reduction <add>, %254, %cst_159 [0] : vector<2x128xf32> to vector<128xf32>
    %256 = vector.shape_cast %255 : vector<128xf32> to vector<1x128xf32>
    %cst_160 = arith.constant 2.000000e+00 : f32
    %257 = vector.broadcast %cst_160 : f32 to vector<1x128xf32>
    %258 = arith.divf %256, %257 : vector<1x128xf32>
    %259 = tpu.concatenate %223, %228, %233, %238, %243, %248, %253, %258 in 0 : vector<1x128xf32>, vector<1x128xf32>, vector<1x128xf32>, vector<1x128xf32>, vector<1x128xf32>, vector<1x128xf32>, vector<1x128xf32>, vector<1x128xf32> -> vector<8x128xf32>
    %cst_161 = arith.constant dense<0.000000e+00> : vector<8xf32>
    %260 = vector.multi_reduction <add>, %259, %cst_161 [1] : vector<8x128xf32> to vector<8xf32>
    %261 = vector.shape_cast %260 : vector<8xf32> to vector<8x1xf32>
    %cst_162 = arith.constant 1.280000e+02 : f32
    %262 = vector.broadcast %cst_162 : f32 to vector<8x1xf32>
    %263 = arith.divf %261, %262 : vector<8x1xf32>
    %264 = vector.broadcast %263 : vector<8x1xf32> to vector<8x128xf32>
    %265 = arith.subf %259, %264 : vector<8x128xf32>
    %266 = arith.mulf %265, %265 : vector<8x128xf32>
    %cst_163 = arith.constant dense<0.000000e+00> : vector<8xf32>
    %267 = vector.multi_reduction <add>, %266, %cst_163 [1] : vector<8x128xf32> to vector<8xf32>
    %268 = vector.shape_cast %267 : vector<8xf32> to vector<8x1xf32>
    %cst_164 = arith.constant 1.280000e+02 : f32
    %269 = vector.broadcast %cst_164 : f32 to vector<8x1xf32>
    %270 = arith.divf %268, %269 : vector<8x1xf32>
    %271 = vector.broadcast %263 : vector<8x1xf32> to vector<8x128xf32>
    %272 = arith.subf %259, %271 : vector<8x128xf32>
    %cst_165 = arith.constant 9.99999974E-6 : f32
    %273 = vector.broadcast %cst_165 : f32 to vector<8x1xf32>
    %274 = arith.addf %270, %273 : vector<8x1xf32>
    %275 = math.rsqrt %274 : vector<8x1xf32>
    %276 = vector.broadcast %275 : vector<8x1xf32> to vector<8x128xf32>
    %277 = arith.mulf %272, %276 : vector<8x128xf32>
    %c0_166 = arith.constant 0 : index
    %c0_167 = arith.constant 0 : index
    %278 = vector.load %arg19[%c0_166, %c0_167] : memref<1x128xf32, #tpu.memory_space<vmem>>, vector<1x128xf32>
    %279 = vector.broadcast %278 : vector<1x128xf32> to vector<8x128xf32>
    %280 = arith.mulf %277, %279 : vector<8x128xf32>
    %c0_168 = arith.constant 0 : index
    %c0_169 = arith.constant 0 : index
    %281 = vector.load %arg20[%c0_168, %c0_169] : memref<1x128xf32, #tpu.memory_space<vmem>>, vector<1x128xf32>
    %282 = vector.broadcast %281 : vector<1x128xf32> to vector<8x128xf32>
    %283 = arith.addf %280, %282 : vector<8x128xf32>
    %284 = vector.shape_cast %283 : vector<8x128xf32> to vector<2x4x128xf32>
    %c0_170 = arith.constant 0 : index
    %c0_171 = arith.constant 0 : index
    %c0_172 = arith.constant 0 : index
    %285 = vector.load %arg21[%c0_170, %c0_171, %c0_172] : memref<2x4x128xf32, #tpu.memory_space<vmem>>, vector<2x4x128xf32>
    tpu.vector_store %arg21[%c0_170, %c0_171, %c0_172], %284 {strides = array<i32>} : memref<2x4x128xf32, #tpu.memory_space<vmem>>, vector<2x4x128xf32>,
    return
  }
  func.func @transform_0(%arg0: i32) -> (i32, i32) {
    %c0_i32 = arith.constant 0 : i32
    %c0_i32_0 = arith.constant 0 : i32
    return %arg0, %c0_i32 : i32, i32
  }
  func.func @transform_1(%arg0: i32) -> (i32, i32) {
    %c0_i32 = arith.constant 0 : i32
    %c0_i32_0 = arith.constant 0 : i32
    %c0_i32_1 = arith.constant 0 : i32
    return %c0_i32, %c0_i32_0 : i32, i32
  }
  func.func @transform_2(%arg0: i32) -> (i32, i32) {
    %c0_i32 = arith.constant 0 : i32
    %c0_i32_0 = arith.constant 0 : i32
    %c0_i32_1 = arith.constant 0 : i32
    return %c0_i32, %c0_i32_0 : i32, i32
  }
  func.func @transform_3(%arg0: i32) -> (i32, i32) {
    %c0_i32 = arith.constant 0 : i32
    %c0_i32_0 = arith.constant 0 : i32
    %c0_i32_1 = arith.constant 0 : i32
    return %c0_i32, %c0_i32_0 : i32, i32
  }
  func.func @transform_4(%arg0: i32) -> (i32, i32) {
    %c0_i32 = arith.constant 0 : i32
    %c0_i32_0 = arith.constant 0 : i32
    %c0_i32_1 = arith.constant 0 : i32
    return %c0_i32, %c0_i32_0 : i32, i32
  }
  func.func @transform_5(%arg0: i32) -> (i32, i32) {
    %c0_i32 = arith.constant 0 : i32
    %c0_i32_0 = arith.constant 0 : i32
    %c0_i32_1 = arith.constant 0 : i32
    return %c0_i32, %c0_i32_0 : i32, i32
  }
  func.func @transform_6(%arg0: i32) -> (i32, i32) {
    %c0_i32 = arith.constant 0 : i32
    %c0_i32_0 = arith.constant 0 : i32
    %c0_i32_1 = arith.constant 0 : i32
    return %c0_i32, %c0_i32_0 : i32, i32
  }
  func.func @transform_7(%arg0: i32) -> (i32, i32) {
    %c0_i32 = arith.constant 0 : i32
    %c0_i32_0 = arith.constant 0 : i32
    %c0_i32_1 = arith.constant 0 : i32
    return %c0_i32, %c0_i32_0 : i32, i32
  }
  func.func @transform_8(%arg0: i32) -> (i32, i32) {
    %c0_i32 = arith.constant 0 : i32
    %c0_i32_0 = arith.constant 0 : i32
    %c0_i32_1 = arith.constant 0 : i32
    return %c0_i32, %c0_i32_0 : i32, i32
  }
  func.func @transform_9(%arg0: i32) -> (i32, i32) {
    %c0_i32 = arith.constant 0 : i32
    %c0_i32_0 = arith.constant 0 : i32
    %c0_i32_1 = arith.constant 0 : i32
    return %c0_i32, %c0_i32_0 : i32, i32
  }
  func.func @transform_10(%arg0: i32) -> (i32, i32) {
    %c0_i32 = arith.constant 0 : i32
    %c0_i32_0 = arith.constant 0 : i32
    %c0_i32_1 = arith.constant 0 : i32
    return %c0_i32, %c0_i32_0 : i32, i32
  }
  func.func @transform_11(%arg0: i32) -> (i32, i32) {
    %c0_i32 = arith.constant 0 : i32
    %c0_i32_0 = arith.constant 0 : i32
    %c0_i32_1 = arith.constant 0 : i32
    return %c0_i32, %c0_i32_0 : i32, i32
  }
  func.func @transform_12(%arg0: i32) -> (i32, i32) {
    %c0_i32 = arith.constant 0 : i32
    %c0_i32_0 = arith.constant 0 : i32
    %c0_i32_1 = arith.constant 0 : i32
    return %c0_i32, %c0_i32_0 : i32, i32
  }
  func.func @transform_13(%arg0: i32) -> (i32, i32) {
    %c0_i32 = arith.constant 0 : i32
    %c0_i32_0 = arith.constant 0 : i32
    %c0_i32_1 = arith.constant 0 : i32
    return %c0_i32, %c0_i32_0 : i32, i32
  }
  func.func @transform_14(%arg0: i32) -> (i32, i32) {
    %c0_i32 = arith.constant 0 : i32
    %c0_i32_0 = arith.constant 0 : i32
    %c0_i32_1 = arith.constant 0 : i32
    return %c0_i32, %c0_i32_0 : i32, i32
  }
  func.func @transform_15(%arg0: i32) -> (i32, i32) {
    %c0_i32 = arith.constant 0 : i32
    %c0_i32_0 = arith.constant 0 : i32
    %c0_i32_1 = arith.constant 0 : i32
    return %c0_i32, %c0_i32_0 : i32, i32
  }
  func.func @transform_16(%arg0: i32) -> (i32, i32) {
    %c0_i32 = arith.constant 0 : i32
    %c0_i32_0 = arith.constant 0 : i32
    %c0_i32_1 = arith.constant 0 : i32
    return %c0_i32, %c0_i32_0 : i32, i32
  }
  func.func @transform_17(%arg0: i32) -> (i32, i32) {
    %c0_i32 = arith.constant 0 : i32
    %c0_i32_0 = arith.constant 0 : i32
    %c0_i32_1 = arith.constant 0 : i32
    return %c0_i32, %c0_i32_0 : i32, i32
  }
  func.func @transform_18(%arg0: i32) -> (i32, i32) {
    %c0_i32 = arith.constant 0 : i32
    %c0_i32_0 = arith.constant 0 : i32
    %c0_i32_1 = arith.constant 0 : i32
    return %c0_i32, %c0_i32_0 : i32, i32
  }
  func.func @transform_19(%arg0: i32) -> (i32, i32) {
    %c0_i32 = arith.constant 0 : i32
    %c0_i32_0 = arith.constant 0 : i32
    %c0_i32_1 = arith.constant 0 : i32
    return %c0_i32, %c0_i32_0 : i32, i32
  }
  func.func @transform_20(%arg0: i32) -> (i32, i32, i32) {
    %c0_i32 = arith.constant 0 : i32
    %c0_i32_0 = arith.constant 0 : i32
    %c0_i32_1 = arith.constant 0 : i32
    return %arg0, %c0_i32, %c0_i32_0 : i32, i32, i32
  }
}

</mosaic_0001>

<llo_original>
// kernel: forward.1
$region0: #{forward.1}
  #allocation0 [shape = 'u32[]', space=smem, size = 0x4, offset = 0x4, fixed_abs, tag = 'smem constant byte address 0x4 - core index']
  #allocation1 [shape = 'u32[144,128]{1,0:T(1,128)}', space=vmem, size = 0x12000, scoped, tag = 'internal scratch']
  #allocation2 [shape = 'f32[516,1]{1,0:T(8,128)}', space=vmem, size = 0x41000, scoped, tag = 'scratch operand']
  #allocation3 [shape = 'f32[260,8]{1,0:T(8,128)}', space=vmem, size = 0x21000, scoped, tag = 'scratch operand']
  #allocation4 [shape = 'f32[132,16]{1,0:T(8,128)}', space=vmem, size = 0x11000, scoped, tag = 'scratch operand']
  #allocation5 [shape = 'f32[68,32]{1,0:T(8,128)}', space=vmem, size = 0x9000, scoped, tag = 'scratch operand']
  #allocation6 [shape = 'f32[36,64]{1,0:T(8,128)}', space=vmem, size = 0x5000, scoped, tag = 'scratch operand']
  %s0 = inlined_call_operand.vmem [shape: f32[1024,1], index: 0, kind: input, shape index: {}]
  %s1 = inlined_call_operand.vmem [shape: bf16[3,8], index: 1, kind: input, shape index: {}]
  %s2 = inlined_call_operand.vmem [shape: f32[1,8], index: 2, kind: input, shape index: {}]
  %s3 = inlined_call_operand.vmem [shape: f32[1,8], index: 3, kind: input, shape index: {}]
  %s4 = inlined_call_operand.vmem [shape: bf16[24,16], index: 4, kind: input, shape index: {}]
  %s5 = inlined_call_operand.vmem [shape: f32[1,16], index: 5, kind: input, shape index: {}]
  %s6 = inlined_call_operand.vmem [shape: f32[1,16], index: 6, kind: input, shape index: {}]
  %s7 = inlined_call_operand.vmem [shape: bf16[48,32], index: 7, kind: input, shape index: {}]
  %s8 = inlined_call_operand.vmem [shape: f32[1,32], index: 8, kind: input, shape index: {}]
  %s9 = inlined_call_operand.vmem [shape: f32[1,32], index: 9, kind: input, shape index: {}]
  %s10 = inlined_call_operand.vmem [shape: bf16[96,64], index: 10, kind: input, shape index: {}]
  %s11 = inlined_call_operand.vmem [shape: f32[1,64], index: 11, kind: input, shape index: {}]
  %s12 = inlined_call_operand.vmem [shape: f32[1,64], index: 12, kind: input, shape index: {}]
  %s13 = inlined_call_operand.vmem [shape: bf16[192,128], index: 13, kind: input, shape index: {}]
  %s14 = inlined_call_operand.vmem [shape: f32[1,128], index: 14, kind: input, shape index: {}]
  %s15 = inlined_call_operand.vmem [shape: f32[1,128], index: 15, kind: input, shape index: {}]
  %s16 = inlined_call_operand.vmem [shape: bf16[128,128], index: 16, kind: input, shape index: {}]
  %s17 = inlined_call_operand.vmem [shape: f32[1,128], index: 17, kind: input, shape index: {}]
  %s18 = inlined_call_operand.vmem [shape: f32[1,128], index: 18, kind: input, shape index: {}]
  %s19 = inlined_call_operand.vmem [shape: f32[1,128], index: 19, kind: input, shape index: {}]
  %s20 = inlined_call_operand.hbm [shape: f32[4,4,128], index: 20, kind: output, shape index: {}]
  %s21 = sld [smem:[#allocation0]]
  $region113: #{forward.1} parent=0
    _
  %s23 = ssub.s32 1, %s21
  %s24 = scalar_select 0, %s23, %s21
  $region1: #{forward.1} parent=0
    #allocation7 [shape = 'u8[8192]{0}', space=vmem, size = 0x2000, scoped, tag = 'output window, operand 0']
    #allocation8 [shape = 's32[2]{0}', space=sflag, size = 0x8, scoped, tag = 'scoped memory for forward.1']
    %25 = vsyncpa [#allocation8], 0
    %s26 = scalar_lea.sflag [#allocation8], 1
    %27 = vsyncpa %s26, 0
    loop: start=0, step=1, limit=4
    $region2: #{forward.1} parent=1 // loop_pre_header
      _
    $region3: #{forward.1} parent=1 // loop_header
      %s29 = sphi 0, %s33
      %p30 = scmp.ge.s32.totalorder %s29, 4
      %s39 = sphi 0, %s41
      %s42 = sphi 0, %s39
      %s43 = sphi 0, %s42
      %s59 = sphi 0, %s43
      %s63 = sphi 0, %s63
      %s65 = sphi 0, %s63
      %s66 = sphi 0, %s65
      %s80 = sphi 0, %s66
      %s84 = sphi 0, %s84
      %s86 = sphi 0, %s84
      %s87 = sphi 0, %s86
      %s101 = sphi 0, %s87
      %s105 = sphi 0, %s105
      %s107 = sphi 0, %s105
      %s108 = sphi 0, %s107
      %s122 = sphi 0, %s108
      %s126 = sphi 0, %s126
      %s128 = sphi 0, %s126
      %s129 = sphi 0, %s128
      %s143 = sphi 0, %s129
      %s147 = sphi 0, %s147
      %s149 = sphi 0, %s147
      %s150 = sphi 0, %s149
      %s164 = sphi 0, %s150
      %s168 = sphi 0, %s168
      %s170 = sphi 0, %s168
      %s171 = sphi 0, %s170
      %s185 = sphi 0, %s171
      %s189 = sphi 0, %s189
      %s191 = sphi 0, %s189
      %s192 = sphi 0, %s191
      %s206 = sphi 0, %s192
      %s210 = sphi 0, %s210
      %s212 = sphi 0, %s210
      %s213 = sphi 0, %s212
      %s227 = sphi 0, %s213
      %s231 = sphi 0, %s231
      %s233 = sphi 0, %s231
      %s234 = sphi 0, %s233
      %s248 = sphi 0, %s234
      %s252 = sphi 0, %s252
      %s254 = sphi 0, %s252
      %s255 = sphi 0, %s254
      %s269 = sphi 0, %s255
      %s273 = sphi 0, %s273
      %s275 = sphi 0, %s273
      %s276 = sphi 0, %s275
      %s290 = sphi 0, %s276
      %s294 = sphi 0, %s294
      %s296 = sphi 0, %s294
      %s297 = sphi 0, %s296
      %s311 = sphi 0, %s297
      %s315 = sphi 0, %s315
      %s317 = sphi 0, %s315
      %s318 = sphi 0, %s317
      %s332 = sphi 0, %s318
      %s336 = sphi 0, %s336
      %s338 = sphi 0, %s336
      %s339 = sphi 0, %s338
      %s353 = sphi 0, %s339
      %s357 = sphi 0, %s357
      %s359 = sphi 0, %s357
      %s360 = sphi 0, %s359
      %s374 = sphi 0, %s360
      %s378 = sphi 0, %s378
      %s380 = sphi 0, %s378
      %s381 = sphi 0, %s380
      %s395 = sphi 0, %s381
      %s399 = sphi 0, %s399
      %s401 = sphi 0, %s399
      %s402 = sphi 0, %s401
      %s416 = sphi 0, %s402
      %s420 = sphi 0, %s420
      %s422 = sphi 0, %s420
      %s423 = sphi 0, %s422
      %s437 = sphi 0, %s423
      %s441 = sphi 0, %s441
      %s443 = sphi 0, %s441
      %s444 = sphi 0, %s443
      %s458 = sphi 0, %s444
      %s464 = sphi 0, %s466
      %s467 = sphi 0, %s464
      %s468 = sphi 0, %s467
      %s484 = sphi 0, %s468
    $region4: #{forward.1} parent=1 // loop_header_branch
      %32 = sbr.rel (%p30) target = $region8
    $region5: #{forward.1} parent=1 // loop_body
      %s34 = ssub.s32 %s29, 1
      %s35 = ssub.s32 %s29, 2
      %s36 = sadd.s32 %s29, 1
      %s37 = ssub.s32 %s29, %s36
      %p38 = scmp.eq.s32.totalorder %s37, 0
      %s40 = sadd.s32 %s39, 1
      %s41 = scalar_select %p38, %s39, %s40
      %p44 = pneg %p38
      %p45 = scmp.eq.s32.totalorder %s29, 1
      %p46 = por %p44, %p45
      %p47 = scmp.ne.s32.totalorder %s39, %s42
      %p48 = scmp.eq.s32.totalorder %s29, 0
      %p49 = por %p47, %p48
      %p50 = scmp.ne.s32.totalorder %s39, %s42
      %p51 = scmp.eq.s32.totalorder %s34, 1
      %p52 = por %p50, %p51
      %p53 = scmp.ne.s32.totalorder %s42, %s43
      %p54 = scmp.eq.s32.totalorder %s34, 0
      %p55 = por %p53, %p54
      %p56 = scmp.ne.s32.totalorder %s42, %s43
      %p57 = scmp.eq.s32.totalorder %s35, 1
      %p58 = por %p56, %p57
      %p60 = scmp.ne.s32.totalorder %s43, %s59
      %p61 = scmp.eq.s32.totalorder %s35, 0
      %p62 = por %p60, %p61
      %s64 = sadd.s32 %s63, 1
      %p67 = scmp.eq.s32.totalorder %s29, 1
      %p68 = scmp.ne.s32.totalorder %s63, %s65
      %p69 = scmp.eq.s32.totalorder %s29, 0
      %p70 = por %p68, %p69
      %p71 = scmp.ne.s32.totalorder %s63, %s65
      %p72 = scmp.eq.s32.totalorder %s34, 1
      %p73 = por %p71, %p72
      %p74 = scmp.ne.s32.totalorder %s65, %s66
      %p75 = scmp.eq.s32.totalorder %s34, 0
      %p76 = por %p74, %p75
      %p77 = scmp.ne.s32.totalorder %s65, %s66
      %p78 = scmp.eq.s32.totalorder %s35, 1
      %p79 = por %p77, %p78
      %p81 = scmp.ne.s32.totalorder %s66, %s80
      %p82 = scmp.eq.s32.totalorder %s35, 0
      %p83 = por %p81, %p82
      %s85 = sadd.s32 %s84, 1
      %p88 = scmp.eq.s32.totalorder %s29, 1
      %p89 = scmp.ne.s32.totalorder %s84, %s86
      %p90 = scmp.eq.s32.totalorder %s29, 0
      %p91 = por %p89, %p90
      %p92 = scmp.ne.s32.totalorder %s84, %s86
      %p93 = scmp.eq.s32.totalorder %s34, 1
      %p94 = por %p92, %p93
      %p95 = scmp.ne.s32.totalorder %s86, %s87
      %p96 = scmp.eq.s32.totalorder %s34, 0
      %p97 = por %p95, %p96
      %p98 = scmp.ne.s32.totalorder %s86, %s87
      %p99 = scmp.eq.s32.totalorder %s35, 1
      %p100 = por %p98, %p99
      %p102 = scmp.ne.s32.totalorder %s87, %s101
      %p103 = scmp.eq.s32.totalorder %s35, 0
      %p104 = por %p102, %p103
      %s106 = sadd.s32 %s105, 1
      %p109 = scmp.eq.s32.totalorder %s29, 1
      %p110 = scmp.ne.s32.totalorder %s105, %s107
      %p111 = scmp.eq.s32.totalorder %s29, 0
      %p112 = por %p110, %p111
      %p113 = scmp.ne.s32.totalorder %s105, %s107
      %p114 = scmp.eq.s32.totalorder %s34, 1
      %p115 = por %p113, %p114
      %p116 = scmp.ne.s32.totalorder %s107, %s108
      %p117 = scmp.eq.s32.totalorder %s34, 0
      %p118 = por %p116, %p117
      %p119 = scmp.ne.s32.totalorder %s107, %s108
      %p120 = scmp.eq.s32.totalorder %s35, 1
      %p121 = por %p119, %p120
      %p123 = scmp.ne.s32.totalorder %s108, %s122
      %p124 = scmp.eq.s32.totalorder %s35, 0
      %p125 = por %p123, %p124
      %s127 = sadd.s32 %s126, 1
      %p130 = scmp.eq.s32.totalorder %s29, 1
      %p131 = scmp.ne.s32.totalorder %s126, %s128
      %p132 = scmp.eq.s32.totalorder %s29, 0
      %p133 = por %p131, %p132
      %p134 = scmp.ne.s32.totalorder %s126, %s128
      %p135 = scmp.eq.s32.totalorder %s34, 1
      %p136 = por %p134, %p135
      %p137 = scmp.ne.s32.totalorder %s128, %s129
      %p138 = scmp.eq.s32.totalorder %s34, 0
      %p139 = por %p137, %p138
      %p140 = scmp.ne.s32.totalorder %s128, %s129
      %p141 = scmp.eq.s32.totalorder %s35, 1
      %p142 = por %p140, %p141
      %p144 = scmp.ne.s32.totalorder %s129, %s143
      %p145 = scmp.eq.s32.totalorder %s35, 0
      %p146 = por %p144, %p145
      %s148 = sadd.s32 %s147, 1
      %p151 = scmp.eq.s32.totalorder %s29, 1
      %p152 = scmp.ne.s32.totalorder %s147, %s149
      %p153 = scmp.eq.s32.totalorder %s29, 0
      %p154 = por %p152, %p153
      %p155 = scmp.ne.s32.totalorder %s147, %s149
      %p156 = scmp.eq.s32.totalorder %s34, 1
      %p157 = por %p155, %p156
      %p158 = scmp.ne.s32.totalorder %s149, %s150
      %p159 = scmp.eq.s32.totalorder %s34, 0
      %p160 = por %p158, %p159
      %p161 = scmp.ne.s32.totalorder %s149, %s150
      %p162 = scmp.eq.s32.totalorder %s35, 1
      %p163 = por %p161, %p162
      %p165 = scmp.ne.s32.totalorder %s150, %s164
      %p166 = scmp.eq.s32.totalorder %s35, 0
      %p167 = por %p165, %p166
      %s169 = sadd.s32 %s168, 1
      %p172 = scmp.eq.s32.totalorder %s29, 1
      %p173 = scmp.ne.s32.totalorder %s168, %s170
      %p174 = scmp.eq.s32.totalorder %s29, 0
      %p175 = por %p173, %p174
      %p176 = scmp.ne.s32.totalorder %s168, %s170
      %p177 = scmp.eq.s32.totalorder %s34, 1
      %p178 = por %p176, %p177
      %p179 = scmp.ne.s32.totalorder %s170, %s171
      %p180 = scmp.eq.s32.totalorder %s34, 0
      %p181 = por %p179, %p180
      %p182 = scmp.ne.s32.totalorder %s170, %s171
      %p183 = scmp.eq.s32.totalorder %s35, 1
      %p184 = por %p182, %p183
      %p186 = scmp.ne.s32.totalorder %s171, %s185
      %p187 = scmp.eq.s32.totalorder %s35, 0
      %p188 = por %p186, %p187
      %s190 = sadd.s32 %s189, 1
      %p193 = scmp.eq.s32.totalorder %s29, 1
      %p194 = scmp.ne.s32.totalorder %s189, %s191
      %p195 = scmp.eq.s32.totalorder %s29, 0
      %p196 = por %p194, %p195
      %p197 = scmp.ne.s32.totalorder %s189, %s191
      %p198 = scmp.eq.s32.totalorder %s34, 1
      %p199 = por %p197, %p198
      %p200 = scmp.ne.s32.totalorder %s191, %s192
      %p201 = scmp.eq.s32.totalorder %s34, 0
      %p202 = por %p200, %p201
      %p203 = scmp.ne.s32.totalorder %s191, %s192
      %p204 = scmp.eq.s32.totalorder %s35, 1
      %p205 = por %p203, %p204
      %p207 = scmp.ne.s32.totalorder %s192, %s206
      %p208 = scmp.eq.s32.totalorder %s35, 0
      %p209 = por %p207, %p208
      %s211 = sadd.s32 %s210, 1
      %p214 = scmp.eq.s32.totalorder %s29, 1
      %p215 = scmp.ne.s32.totalorder %s210, %s212
      %p216 = scmp.eq.s32.totalorder %s29, 0
      %p217 = por %p215, %p216
      %p218 = scmp.ne.s32.totalorder %s210, %s212
      %p219 = scmp.eq.s32.totalorder %s34, 1
      %p220 = por %p218, %p219
      %p221 = scmp.ne.s32.totalorder %s212, %s213
      %p222 = scmp.eq.s32.totalorder %s34, 0
      %p223 = por %p221, %p222
      %p224 = scmp.ne.s32.totalorder %s212, %s213
      %p225 = scmp.eq.s32.totalorder %s35, 1
      %p226 = por %p224, %p225
      %p228 = scmp.ne.s32.totalorder %s213, %s227
      %p229 = scmp.eq.s32.totalorder %s35, 0
      %p230 = por %p228, %p229
      %s232 = sadd.s32 %s231, 1
      %p235 = scmp.eq.s32.totalorder %s29, 1
      %p236 = scmp.ne.s32.totalorder %s231, %s233
      %p237 = scmp.eq.s32.totalorder %s29, 0
      %p238 = por %p236, %p237
      %p239 = scmp.ne.s32.totalorder %s231, %s233
      %p240 = scmp.eq.s32.totalorder %s34, 1
      %p241 = por %p239, %p240
      %p242 = scmp.ne.s32.totalorder %s233, %s234
      %p243 = scmp.eq.s32.totalorder %s34, 0
      %p244 = por %p242, %p243
      %p245 = scmp.ne.s32.totalorder %s233, %s234
      %p246 = scmp.eq.s32.totalorder %s35, 1
      %p247 = por %p245, %p246
      %p249 = scmp.ne.s32.totalorder %s234, %s248
      %p250 = scmp.eq.s32.totalorder %s35, 0
      %p251 = por %p249, %p250
      %s253 = sadd.s32 %s252, 1
      %p256 = scmp.eq.s32.totalorder %s29, 1
      %p257 = scmp.ne.s32.totalorder %s252, %s254
      %p258 = scmp.eq.s32.totalorder %s29, 0
      %p259 = por %p257, %p258
      %p260 = scmp.ne.s32.totalorder %s252, %s254
      %p261 = scmp.eq.s32.totalorder %s34, 1
      %p262 = por %p260, %p261
      %p263 = scmp.ne.s32.totalorder %s254, %s255
      %p264 = scmp.eq.s32.totalorder %s34, 0
      %p265 = por %p263, %p264
      %p266 = scmp.ne.s32.totalorder %s254, %s255
      %p267 = scmp.eq.s32.totalorder %s35, 1
      %p268 = por %p266, %p267
      %p270 = scmp.ne.s32.totalorder %s255, %s269
      %p271 = scmp.eq.s32.totalorder %s35, 0
      %p272 = por %p270, %p271
      %s274 = sadd.s32 %s273, 1
      %p277 = scmp.eq.s32.totalorder %s29, 1
      %p278 = scmp.ne.s32.totalorder %s273, %s275
      %p279 = scmp.eq.s32.totalorder %s29, 0
      %p280 = por %p278, %p279
      %p281 = scmp.ne.s32.totalorder %s273, %s275
      %p282 = scmp.eq.s32.totalorder %s34, 1
      %p283 = por %p281, %p282
      %p284 = scmp.ne.s32.totalorder %s275, %s276
      %p285 = scmp.eq.s32.totalorder %s34, 0
      %p286 = por %p284, %p285
      %p287 = scmp.ne.s32.totalorder %s275, %s276
      %p288 = scmp.eq.s32.totalorder %s35, 1
      %p289 = por %p287, %p288
      %p291 = scmp.ne.s32.totalorder %s276, %s290
      %p292 = scmp.eq.s32.totalorder %s35, 0
      %p293 = por %p291, %p292
      %s295 = sadd.s32 %s294, 1
      %p298 = scmp.eq.s32.totalorder %s29, 1
      %p299 = scmp.ne.s32.totalorder %s294, %s296
      %p300 = scmp.eq.s32.totalorder %s29, 0
      %p301 = por %p299, %p300
      %p302 = scmp.ne.s32.totalorder %s294, %s296
      %p303 = scmp.eq.s32.totalorder %s34, 1
      %p304 = por %p302, %p303
      %p305 = scmp.ne.s32.totalorder %s296, %s297
      %p306 = scmp.eq.s32.totalorder %s34, 0
      %p307 = por %p305, %p306
      %p308 = scmp.ne.s32.totalorder %s296, %s297
      %p309 = scmp.eq.s32.totalorder %s35, 1
      %p310 = por %p308, %p309
      %p312 = scmp.ne.s32.totalorder %s297, %s311
      %p313 = scmp.eq.s32.totalorder %s35, 0
      %p314 = por %p312, %p313
      %s316 = sadd.s32 %s315, 1
      %p319 = scmp.eq.s32.totalorder %s29, 1
      %p320 = scmp.ne.s32.totalorder %s315, %s317
      %p321 = scmp.eq.s32.totalorder %s29, 0
      %p322 = por %p320, %p321
      %p323 = scmp.ne.s32.totalorder %s315, %s317
      %p324 = scmp.eq.s32.totalorder %s34, 1
      %p325 = por %p323, %p324
      %p326 = scmp.ne.s32.totalorder %s317, %s318
      %p327 = scmp.eq.s32.totalorder %s34, 0
      %p328 = por %p326, %p327
      %p329 = scmp.ne.s32.totalorder %s317, %s318
      %p330 = scmp.eq.s32.totalorder %s35, 1
      %p331 = por %p329, %p330
      %p333 = scmp.ne.s32.totalorder %s318, %s332
      %p334 = scmp.eq.s32.totalorder %s35, 0
      %p335 = por %p333, %p334
      %s337 = sadd.s32 %s336, 1
      %p340 = scmp.eq.s32.totalorder %s29, 1
      %p341 = scmp.ne.s32.totalorder %s336, %s338
      %p342 = scmp.eq.s32.totalorder %s29, 0
      %p343 = por %p341, %p342
      %p344 = scmp.ne.s32.totalorder %s336, %s338
      %p345 = scmp.eq.s32.totalorder %s34, 1
      %p346 = por %p344, %p345
      %p347 = scmp.ne.s32.totalorder %s338, %s339
      %p348 = scmp.eq.s32.totalorder %s34, 0
      %p349 = por %p347, %p348
      %p350 = scmp.ne.s32.totalorder %s338, %s339
      %p351 = scmp.eq.s32.totalorder %s35, 1
      %p352 = por %p350, %p351
      %p354 = scmp.ne.s32.totalorder %s339, %s353
      %p355 = scmp.eq.s32.totalorder %s35, 0
      %p356 = por %p354, %p355
      %s358 = sadd.s32 %s357, 1
      %p361 = scmp.eq.s32.totalorder %s29, 1
      %p362 = scmp.ne.s32.totalorder %s357, %s359
      %p363 = scmp.eq.s32.totalorder %s29, 0
      %p364 = por %p362, %p363
      %p365 = scmp.ne.s32.totalorder %s357, %s359
      %p366 = scmp.eq.s32.totalorder %s34, 1
      %p367 = por %p365, %p366
      %p368 = scmp.ne.s32.totalorder %s359, %s360
      %p369 = scmp.eq.s32.totalorder %s34, 0
      %p370 = por %p368, %p369
      %p371 = scmp.ne.s32.totalorder %s359, %s360
      %p372 = scmp.eq.s32.totalorder %s35, 1
      %p373 = por %p371, %p372
      %p375 = scmp.ne.s32.totalorder %s360, %s374
      %p376 = scmp.eq.s32.totalorder %s35, 0
      %p377 = por %p375, %p376
      %s379 = sadd.s32 %s378, 1
      %p382 = scmp.eq.s32.totalorder %s29, 1
      %p383 = scmp.ne.s32.totalorder %s378, %s380
      %p384 = scmp.eq.s32.totalorder %s29, 0
      %p385 = por %p383, %p384
      %p386 = scmp.ne.s32.totalorder %s378, %s380
      %p387 = scmp.eq.s32.totalorder %s34, 1
      %p388 = por %p386, %p387
      %p389 = scmp.ne.s32.totalorder %s380, %s381
      %p390 = scmp.eq.s32.totalorder %s34, 0
      %p391 = por %p389, %p390
      %p392 = scmp.ne.s32.totalorder %s380, %s381
      %p393 = scmp.eq.s32.totalorder %s35, 1
      %p394 = por %p392, %p393
      %p396 = scmp.ne.s32.totalorder %s381, %s395
      %p397 = scmp.eq.s32.totalorder %s35, 0
      %p398 = por %p396, %p397
      %s400 = sadd.s32 %s399, 1
      %p403 = scmp.eq.s32.totalorder %s29, 1
      %p404 = scmp.ne.s32.totalorder %s399, %s401
      %p405 = scmp.eq.s32.totalorder %s29, 0
      %p406 = por %p404, %p405
      %p407 = scmp.ne.s32.totalorder %s399, %s401
      %p408 = scmp.eq.s32.totalorder %s34, 1
      %p409 = por %p407, %p408
      %p410 = scmp.ne.s32.totalorder %s401, %s402
      %p411 = scmp.eq.s32.totalorder %s34, 0
      %p412 = por %p410, %p411
      %p413 = scmp.ne.s32.totalorder %s401, %s402
      %p414 = scmp.eq.s32.totalorder %s35, 1
      %p415 = por %p413, %p414
      %p417 = scmp.ne.s32.totalorder %s402, %s416
      %p418 = scmp.eq.s32.totalorder %s35, 0
      %p419 = por %p417, %p418
      %s421 = sadd.s32 %s420, 1
      %p424 = scmp.eq.s32.totalorder %s29, 1
      %p425 = scmp.ne.s32.totalorder %s420, %s422
      %p426 = scmp.eq.s32.totalorder %s29, 0
      %p427 = por %p425, %p426
      %p428 = scmp.ne.s32.totalorder %s420, %s422
      %p429 = scmp.eq.s32.totalorder %s34, 1
      %p430 = por %p428, %p429
      %p431 = scmp.ne.s32.totalorder %s422, %s423
      %p432 = scmp.eq.s32.totalorder %s34, 0
      %p433 = por %p431, %p432
      %p434 = scmp.ne.s32.totalorder %s422, %s423
      %p435 = scmp.eq.s32.totalorder %s35, 1
      %p436 = por %p434, %p435
      %p438 = scmp.ne.s32.totalorder %s423, %s437
      %p439 = scmp.eq.s32.totalorder %s35, 0
      %p440 = por %p438, %p439
      %s442 = sadd.s32 %s441, 1
      %p445 = scmp.eq.s32.totalorder %s29, 1
      %p446 = scmp.ne.s32.totalorder %s441, %s443
      %p447 = scmp.eq.s32.totalorder %s29, 0
      %p448 = por %p446, %p447
      %p449 = scmp.ne.s32.totalorder %s441, %s443
      %p450 = scmp.eq.s32.totalorder %s34, 1
      %p451 = por %p449, %p450
      %p452 = scmp.ne.s32.totalorder %s443, %s444
      %p453 = scmp.eq.s32.totalorder %s34, 0
      %p454 = por %p452, %p453
      %p455 = scmp.ne.s32.totalorder %s443, %s444
      %p456 = scmp.eq.s32.totalorder %s35, 1
      %p457 = por %p455, %p456
      %p459 = scmp.ne.s32.totalorder %s444, %s458
      %p460 = scmp.eq.s32.totalorder %s35, 0
      %p461 = por %p459, %p460
      %s462 = ssub.s32 %s29, %s36
      %p463 = scmp.eq.s32.totalorder %s462, 0
      %s465 = sadd.s32 %s464, 1
      %s466 = scalar_select %p463, %s464, %s465
      %p469 = pneg %p463
      %p470 = scmp.eq.s32.totalorder %s29, 1
      %p471 = por %p469, %p470
      %p472 = scmp.ne.s32.totalorder %s464, %s467
      %p473 = scmp.eq.s32.totalorder %s29, 0
      %p474 = por %p472, %p473
      %p475 = scmp.ne.s32.totalorder %s464, %s467
      %p476 = scmp.eq.s32.totalorder %s34, 1
      %p477 = por %p475, %p476
      %p478 = scmp.ne.s32.totalorder %s467, %s468
      %p479 = scmp.eq.s32.totalorder %s34, 0
      %p480 = por %p478, %p479
      %p481 = scmp.ne.s32.totalorder %s467, %s468
      %p482 = scmp.eq.s32.totalorder %s35, 1
      %p483 = por %p481, %p482
      %p485 = scmp.ne.s32.totalorder %s468, %s484
      %p486 = scmp.eq.s32.totalorder %s35, 0
      %p487 = por %p485, %p486
      %p488 = scmp.le.s32.totalorder 1, %s29
      %p489 = scmp.lt.s32.totalorder %s29, 3
      %p490 = pnand %p488, %p489
      %p491 = pneg %p490
      // Predicated region
      $region9: #{forward.1} parent=5 // pred_check
        _
      $region10: #{forward.1} parent=5 // pred_check_branch
        %493 = sbr.rel (%p490) target = $region12
      $region11: #{forward.1} parent=5 // pred_region
        %s494 = ssub.s32 %s29, 1
        // Predicated region
        $region13: #{forward.1} parent=11 // pred_check
          %p495 = pneg %p76
        $region14: #{forward.1} parent=11 // pred_check_branch
          %497 = sbr.rel (%p495) target = $region16
        $region15: #{forward.1} parent=11 // pred_region
          _
        $region16: #{forward.1} parent=11 // pred_fallthru
          _
        // Predicated region
        $region17: #{forward.1} parent=11 // pred_check
          %p498 = pneg %p97
        $region18: #{forward.1} parent=11 // pred_check_branch
          %500 = sbr.rel (%p498) target = $region20
        $region19: #{forward.1} parent=11 // pred_region
          _
        $region20: #{forward.1} parent=11 // pred_fallthru
          _
        // Predicated region
        $region21: #{forward.1} parent=11 // pred_check
          %p501 = pneg %p118
        $region22: #{forward.1} parent=11 // pred_check_branch
          %503 = sbr.rel (%p501) target = $region24
        $region23: #{forward.1} parent=11 // pred_region
          _
        $region24: #{forward.1} parent=11 // pred_fallthru
          _
        // Predicated region
        $region25: #{forward.1} parent=11 // pred_check
          %p504 = pneg %p139
        $region26: #{forward.1} parent=11 // pred_check_branch
          %506 = sbr.rel (%p504) target = $region28
        $region27: #{forward.1} parent=11 // pred_region
          _
        $region28: #{forward.1} parent=11 // pred_fallthru
          _
        // Predicated region
        $region29: #{forward.1} parent=11 // pred_check
          %p507 = pneg %p160
        $region30: #{forward.1} parent=11 // pred_check_branch
          %509 = sbr.rel (%p507) target = $region32
        $region31: #{forward.1} parent=11 // pred_region
          _
        $region32: #{forward.1} parent=11 // pred_fallthru
          _
        // Predicated region
        $region33: #{forward.1} parent=11 // pred_check
          %p510 = pneg %p181
        $region34: #{forward.1} parent=11 // pred_check_branch
          %512 = sbr.rel (%p510) target = $region36
        $region35: #{forward.1} parent=11 // pred_region
          _
        $region36: #{forward.1} parent=11 // pred_fallthru
          _
        // Predicated region
        $region37: #{forward.1} parent=11 // pred_check
          %p513 = pneg %p202
        $region38: #{forward.1} parent=11 // pred_check_branch
          %515 = sbr.rel (%p513) target = $region40
        $region39: #{forward.1} parent=11 // pred_region
          _
        $region40: #{forward.1} parent=11 // pred_fallthru
          _
        // Predicated region
        $region41: #{forward.1} parent=11 // pred_check
          %p516 = pneg %p223
        $region42: #{forward.1} parent=11 // pred_check_branch
          %518 = sbr.rel (%p516) target = $region44
        $region43: #{forward.1} parent=11 // pred_region
          _
        $region44: #{forward.1} parent=11 // pred_fallthru
          _
        // Predicated region
        $region45: #{forward.1} parent=11 // pred_check
          %p519 = pneg %p244
        $region46: #{forward.1} parent=11 // pred_check_branch
          %521 = sbr.rel (%p519) target = $region48
        $region47: #{forward.1} parent=11 // pred_region
          _
        $region48: #{forward.1} parent=11 // pred_fallthru
          _
        // Predicated region
        $region49: #{forward.1} parent=11 // pred_check
          %p522 = pneg %p265
        $region50: #{forward.1} parent=11 // pred_check_branch
          %524 = sbr.rel (%p522) target = $region52
        $region51: #{forward.1} parent=11 // pred_region
          _
        $region52: #{forward.1} parent=11 // pred_fallthru
          _
        // Predicated region
        $region53: #{forward.1} parent=11 // pred_check
          %p525 = pneg %p286
        $region54: #{forward.1} parent=11 // pred_check_branch
          %527 = sbr.rel (%p525) target = $region56
        $region55: #{forward.1} parent=11 // pred_region
          _
        $region56: #{forward.1} parent=11 // pred_fallthru
          _
        // Predicated region
        $region57: #{forward.1} parent=11 // pred_check
          %p528 = pneg %p307
        $region58: #{forward.1} parent=11 // pred_check_branch
          %530 = sbr.rel (%p528) target = $region60
        $region59: #{forward.1} parent=11 // pred_region
          _
        $region60: #{forward.1} parent=11 // pred_fallthru
          _
        // Predicated region
        $region61: #{forward.1} parent=11 // pred_check
          %p531 = pneg %p328
        $region62: #{forward.1} parent=11 // pred_check_branch
          %533 = sbr.rel (%p531) target = $region64
        $region63: #{forward.1} parent=11 // pred_region
          _
        $region64: #{forward.1} parent=11 // pred_fallthru
          _
        // Predicated region
        $region65: #{forward.1} parent=11 // pred_check
          %p534 = pneg %p349
        $region66: #{forward.1} parent=11 // pred_check_branch
          %536 = sbr.rel (%p534) target = $region68
        $region67: #{forward.1} parent=11 // pred_region
          _
        $region68: #{forward.1} parent=11 // pred_fallthru
          _
        // Predicated region
        $region69: #{forward.1} parent=11 // pred_check
          %p537 = pneg %p370
        $region70: #{forward.1} parent=11 // pred_check_branch
          %539 = sbr.rel (%p537) target = $region72
        $region71: #{forward.1} parent=11 // pred_region
          _
        $region72: #{forward.1} parent=11 // pred_fallthru
          _
        // Predicated region
        $region73: #{forward.1} parent=11 // pred_check
          %p540 = pneg %p391
        $region74: #{forward.1} parent=11 // pred_check_branch
          %542 = sbr.rel (%p540) target = $region76
        $region75: #{forward.1} parent=11 // pred_region
          _
        $region76: #{forward.1} parent=11 // pred_fallthru
          _
        // Predicated region
        $region77: #{forward.1} parent=11 // pred_check
          %p543 = pneg %p412
        $region78: #{forward.1} parent=11 // pred_check_branch
          %545 = sbr.rel (%p543) target = $region80
        $region79: #{forward.1} parent=11 // pred_region
          _
        $region80: #{forward.1} parent=11 // pred_fallthru
          _
        // Predicated region
        $region81: #{forward.1} parent=11 // pred_check
          %p546 = pneg %p433
        $region82: #{forward.1} parent=11 // pred_check_branch
          %548 = sbr.rel (%p546) target = $region84
        $region83: #{forward.1} parent=11 // pred_region
          _
        $region84: #{forward.1} parent=11 // pred_fallthru
          _
        // Predicated region
        $region85: #{forward.1} parent=11 // pred_check
          %p549 = pneg %p454
        $region86: #{forward.1} parent=11 // pred_check_branch
          %551 = sbr.rel (%p549) target = $region88
        $region87: #{forward.1} parent=11 // pred_region
          _
        $region88: #{forward.1} parent=11 // pred_fallthru
          _
      $region12: #{forward.1} parent=5 // pred_fallthru
        _
      %p552 = scmp.lt.s32.totalorder %s29, 2
      // Predicated region
      $region89: #{forward.1} parent=5 // pred_check
        %p553 = pneg %p552
      $region90: #{forward.1} parent=5 // pred_check_branch
        %555 = sbr.rel (%p553) target = $region92
      $region91: #{forward.1} parent=5 // pred_region
        // Predicated region
        $region93: #{forward.1} parent=91 // pred_check
          %p556 = pneg %p49
        $region94: #{forward.1} parent=91 // pred_check_branch
          %558 = sbr.rel (%p556) target = $region96
        $region95: #{forward.1} parent=91 // pred_region
          %s559 = smul.u32 64, %s29
          %p560 = scmp.lt.s32.totalorder %s559, 127
          %s561 = scalar_select %p560, %s559, 127
          %s562 = smul.addr %s561, 8
          %s563 = scalar_lea.vmem %s0, %s562
          %s564 = smul.u32 64, %s29
        $region96: #{forward.1} parent=91 // pred_fallthru
          _
      $region92: #{forward.1} parent=5 // pred_fallthru
        _
      %p565 = scmp.le.s32.totalorder 1, %s29
      %p566 = scmp.lt.s32.totalorder %s29, 3
      %p567 = pnand %p565, %p566
      %p568 = pneg %p567
      // Predicated region
      $region97: #{forward.1} parent=5 // pred_check
        _
      $region98: #{forward.1} parent=5 // pred_check_branch
        %570 = sbr.rel (%p567) target = $region100
      $region99: #{forward.1} parent=5 // pred_region
        %s571 = ssub.s32 %s29, 1
        %s572 = smul.u32 64, %s34
        %p573 = scmp.lt.s32.totalorder %s572, 127
        %s574 = scalar_select %p573, %s572, 127
        %s575 = smul.addr %s574, 8
        %s576 = scalar_lea.vmem %s0, %s575
        %p577 = pneg %p55
        %p578 = pneg %p52
        %p579 = pneg %p76
        %p580 = pneg %p73
        %p581 = pneg %p97
        %p582 = pneg %p94
        %p583 = pneg %p118
        %p584 = pneg %p115
        %p585 = pneg %p139
        %p586 = pneg %p136
        %p587 = pneg %p160
        %p588 = pneg %p157
        %p589 = pneg %p181
        %p590 = pneg %p178
        %p591 = pneg %p202
        %p592 = pneg %p199
        %p593 = pneg %p223
        %p594 = pneg %p220
        %p595 = pneg %p244
        %p596 = pneg %p241
        %p597 = pneg %p265
        %p598 = pneg %p262
        %p599 = pneg %p286
        %p600 = pneg %p283
        %p601 = pneg %p307
        %p602 = pneg %p304
        %p603 = pneg %p328
        %p604 = pneg %p325
        %p605 = pneg %p349
        %p606 = pneg %p346
        %p607 = pneg %p370
        %p608 = pneg %p367
        %p609 = pneg %p391
        %p610 = pneg %p388
        %p611 = pneg %p412
        %p612 = pneg %p409
        %p613 = pneg %p433
        %p614 = pneg %p430
        %p615 = pneg %p454
        %p616 = pneg %p451
        %p617 = pneg %p480
        %p618 = pneg %p477
        %s619 = sand.u32 %s467, 1
        %s620 = scalar_lea.sflag [#allocation8], %s619
        %s621 = sand.u32 %s467, 1
        %s622 = smul.addr %s621, 8
        %s623 = scalar_lea.vmem [#allocation7], %s622
        %s624 = smul.u32 64, %s34
        %p625 = scmp.lt.s32.totalorder %s624, 127
        %s626 = scalar_select %p625, %s624, 127
        %s627 = smul.addr %s626, 8
        %s628 = scalar_lea.vmem %s0, %s627
        %s629 = smul.u32 64, %s34
        %s630 = smul.u32 2, %s34
        %v632 = vld [vmem:[%s628] sm:$0xff]
        %v633 = vld [vmem:[%s628 + $0x8] sm:$0xff]
        %v634 = vld [vmem:[%s628 + $0x10] sm:$0xff]
        %v635 = vld [vmem:[%s628 + $0x18] sm:$0xff]
        %v636 = vld [vmem:[%s628 + $0x20] sm:$0xff]
        %v637 = vld [vmem:[%s628 + $0x28] sm:$0xff]
        %v638 = vld [vmem:[%s628 + $0x30] sm:$0xff]
        %v639 = vld [vmem:[%s628 + $0x38] sm:$0xff]
        %v640 = vld [vmem:[%s628 + $0x40] sm:$0xff]
        %v641 = vld [vmem:[%s628 + $0x48] sm:$0xff]
        %v642 = vld [vmem:[%s628 + $0x50] sm:$0xff]
        %v643 = vld [vmem:[%s628 + $0x58] sm:$0xff]
        %v644 = vld [vmem:[%s628 + $0x60] sm:$0xff]
        %v645 = vld [vmem:[%s628 + $0x68] sm:$0xff]
        %v646 = vld [vmem:[%s628 + $0x70] sm:$0xff]
        %v647 = vld [vmem:[%s628 + $0x78] sm:$0xff]
        %v648 = vld [vmem:[%s628 + $0x80] sm:$0xff]
        %v649 = vld [vmem:[%s628 + $0x88] sm:$0xff]
        %v650 = vld [vmem:[%s628 + $0x90] sm:$0xff]
        %v651 = vld [vmem:[%s628 + $0x98] sm:$0xff]
        %v652 = vld [vmem:[%s628 + $0xa0] sm:$0xff]
        %v653 = vld [vmem:[%s628 + $0xa8] sm:$0xff]
        %v654 = vld [vmem:[%s628 + $0xb0] sm:$0xff]
        %v655 = vld [vmem:[%s628 + $0xb8] sm:$0xff]
        %v656 = vld [vmem:[%s628 + $0xc0] sm:$0xff]
        %v657 = vld [vmem:[%s628 + $0xc8] sm:$0xff]
        %v658 = vld [vmem:[%s628 + $0xd0] sm:$0xff]
        %v659 = vld [vmem:[%s628 + $0xd8] sm:$0xff]
        %v660 = vld [vmem:[%s628 + $0xe0] sm:$0xff]
        %v661 = vld [vmem:[%s628 + $0xe8] sm:$0xff]
        %v662 = vld [vmem:[%s628 + $0xf0] sm:$0xff]
        %v663 = vld [vmem:[%s628 + $0xf8] sm:$0xff]
        %v664 = vld [vmem:[%s628 + $0x100] sm:$0xff]
        %v665 = vld [vmem:[%s628 + $0x108] sm:$0xff]
        %v666 = vld [vmem:[%s628 + $0x110] sm:$0xff]
        %v667 = vld [vmem:[%s628 + $0x118] sm:$0xff]
        %v668 = vld [vmem:[%s628 + $0x120] sm:$0xff]
        %v669 = vld [vmem:[%s628 + $0x128] sm:$0xff]
        %v670 = vld [vmem:[%s628 + $0x130] sm:$0xff]
        %v671 = vld [vmem:[%s628 + $0x138] sm:$0xff]
        %v672 = vld [vmem:[%s628 + $0x140] sm:$0xff]
        %v673 = vld [vmem:[%s628 + $0x148] sm:$0xff]
        %v674 = vld [vmem:[%s628 + $0x150] sm:$0xff]
        %v675 = vld [vmem:[%s628 + $0x158] sm:$0xff]
        %v676 = vld [vmem:[%s628 + $0x160] sm:$0xff]
        %v677 = vld [vmem:[%s628 + $0x168] sm:$0xff]
        %v678 = vld [vmem:[%s628 + $0x170] sm:$0xff]
        %v679 = vld [vmem:[%s628 + $0x178] sm:$0xff]
        %v680 = vld [vmem:[%s628 + $0x180] sm:$0xff]
        %v681 = vld [vmem:[%s628 + $0x188] sm:$0xff]
        %v682 = vld [vmem:[%s628 + $0x190] sm:$0xff]
        %v683 = vld [vmem:[%s628 + $0x198] sm:$0xff]
        %v684 = vld [vmem:[%s628 + $0x1a0] sm:$0xff]
        %v685 = vld [vmem:[%s628 + $0x1a8] sm:$0xff]
        %v686 = vld [vmem:[%s628 + $0x1b0] sm:$0xff]
        %v687 = vld [vmem:[%s628 + $0x1b8] sm:$0xff]
        %v688 = vld [vmem:[%s628 + $0x1c0] sm:$0xff]
        %v689 = vld [vmem:[%s628 + $0x1c8] sm:$0xff]
        %v690 = vld [vmem:[%s628 + $0x1d0] sm:$0xff]
        %v691 = vld [vmem:[%s628 + $0x1d8] sm:$0xff]
        %v692 = vld [vmem:[%s628 + $0x1e0] sm:$0xff]
        %v693 = vld [vmem:[%s628 + $0x1e8] sm:$0xff]
        %v694 = vld [vmem:[%s628 + $0x1f0] sm:$0xff]
        %v695 = vld [vmem:[%s628 + $0x1f8] sm:$0xff]
        %vm696 = vcmask 7168
        %697 = vst.msk [vmem:[#allocation2] sm:$0xff] %vm696, 0.0
        %698 = vst.msk [vmem:[#allocation2 + $0x8] sm:$0xff] %vm696, 0.0
        %699 = vst.msk [vmem:[#allocation2 + $0x10] sm:$0xff] %vm696, 0.0
        %700 = vst.msk [vmem:[#allocation2 + $0x18] sm:$0xff] %vm696, 0.0
        %701 = vst.msk [vmem:[#allocation2 + $0x20] sm:$0xff] %vm696, 0.0
        %702 = vst.msk [vmem:[#allocation2 + $0x28] sm:$0xff] %vm696, 0.0
        %703 = vst.msk [vmem:[#allocation2 + $0x30] sm:$0xff] %vm696, 0.0
        %704 = vst.msk [vmem:[#allocation2 + $0x38] sm:$0xff] %vm696, 0.0
        %705 = vst.msk [vmem:[#allocation2 + $0x40] sm:$0xff] %vm696, 0.0
        %706 = vst.msk [vmem:[#allocation2 + $0x48] sm:$0xff] %vm696, 0.0
        %707 = vst.msk [vmem:[#allocation2 + $0x50] sm:$0xff] %vm696, 0.0
        %708 = vst.msk [vmem:[#allocation2 + $0x58] sm:$0xff] %vm696, 0.0
        %709 = vst.msk [vmem:[#allocation2 + $0x60] sm:$0xff] %vm696, 0.0
        %710 = vst.msk [vmem:[#allocation2 + $0x68] sm:$0xff] %vm696, 0.0
        %711 = vst.msk [vmem:[#allocation2 + $0x70] sm:$0xff] %vm696, 0.0
        %712 = vst.msk [vmem:[#allocation2 + $0x78] sm:$0xff] %vm696, 0.0
        %713 = vst.msk [vmem:[#allocation2 + $0x80] sm:$0xff] %vm696, 0.0
        %714 = vst.msk [vmem:[#allocation2 + $0x88] sm:$0xff] %vm696, 0.0
        %715 = vst.msk [vmem:[#allocation2 + $0x90] sm:$0xff] %vm696, 0.0
        %716 = vst.msk [vmem:[#allocation2 + $0x98] sm:$0xff] %vm696, 0.0
        %717 = vst.msk [vmem:[#allocation2 + $0xa0] sm:$0xff] %vm696, 0.0
        %718 = vst.msk [vmem:[#allocation2 + $0xa8] sm:$0xff] %vm696, 0.0
        %719 = vst.msk [vmem:[#allocation2 + $0xb0] sm:$0xff] %vm696, 0.0
        %720 = vst.msk [vmem:[#allocation2 + $0xb8] sm:$0xff] %vm696, 0.0
        %721 = vst.msk [vmem:[#allocation2 + $0xc0] sm:$0xff] %vm696, 0.0
        %722 = vst.msk [vmem:[#allocation2 + $0xc8] sm:$0xff] %vm696, 0.0
        %723 = vst.msk [vmem:[#allocation2 + $0xd0] sm:$0xff] %vm696, 0.0
        %724 = vst.msk [vmem:[#allocation2 + $0xd8] sm:$0xff] %vm696, 0.0
        %725 = vst.msk [vmem:[#allocation2 + $0xe0] sm:$0xff] %vm696, 0.0
        %726 = vst.msk [vmem:[#allocation2 + $0xe8] sm:$0xff] %vm696, 0.0
        %727 = vst.msk [vmem:[#allocation2 + $0xf0] sm:$0xff] %vm696, 0.0
        %728 = vst.msk [vmem:[#allocation2 + $0xf8] sm:$0xff] %vm696, 0.0
        %729 = vst.msk [vmem:[#allocation2 + $0x100] sm:$0xff] %vm696, 0.0
        %730 = vst.msk [vmem:[#allocation2 + $0x108] sm:$0xff] %vm696, 0.0
        %731 = vst.msk [vmem:[#allocation2 + $0x110] sm:$0xff] %vm696, 0.0
        %732 = vst.msk [vmem:[#allocation2 + $0x118] sm:$0xff] %vm696, 0.0
        %733 = vst.msk [vmem:[#allocation2 + $0x120] sm:$0xff] %vm696, 0.0
        %734 = vst.msk [vmem:[#allocation2 + $0x128] sm:$0xff] %vm696, 0.0
        %735 = vst.msk [vmem:[#allocation2 + $0x130] sm:$0xff] %vm696, 0.0
        %736 = vst.msk [vmem:[#allocation2 + $0x138] sm:$0xff] %vm696, 0.0
        %737 = vst.msk [vmem:[#allocation2 + $0x140] sm:$0xff] %vm696, 0.0
        %738 = vst.msk [vmem:[#allocation2 + $0x148] sm:$0xff] %vm696, 0.0
        %739 = vst.msk [vmem:[#allocation2 + $0x150] sm:$0xff] %vm696, 0.0
        %740 = vst.msk [vmem:[#allocation2 + $0x158] sm:$0xff] %vm696, 0.0
        %741 = vst.msk [vmem:[#allocation2 + $0x160] sm:$0xff] %vm696, 0.0
        %742 = vst.msk [vmem:[#allocation2 + $0x168] sm:$0xff] %vm696, 0.0
        %743 = vst.msk [vmem:[#allocation2 + $0x170] sm:$0xff] %vm696, 0.0
        %744 = vst.msk [vmem:[#allocation2 + $0x178] sm:$0xff] %vm696, 0.0
        %745 = vst.msk [vmem:[#allocation2 + $0x180] sm:$0xff] %vm696, 0.0
        %746 = vst.msk [vmem:[#allocation2 + $0x188] sm:$0xff] %vm696, 0.0
        %747 = vst.msk [vmem:[#allocation2 + $0x190] sm:$0xff] %vm696, 0.0
        %748 = vst.msk [vmem:[#allocation2 + $0x198] sm:$0xff] %vm696, 0.0
        %749 = vst.msk [vmem:[#allocation2 + $0x1a0] sm:$0xff] %vm696, 0.0
        %750 = vst.msk [vmem:[#allocation2 + $0x1a8] sm:$0xff] %vm696, 0.0
        %751 = vst.msk [vmem:[#allocation2 + $0x1b0] sm:$0xff] %vm696, 0.0
        %752 = vst.msk [vmem:[#allocation2 + $0x1b8] sm:$0xff] %vm696, 0.0
        %753 = vst.msk [vmem:[#allocation2 + $0x1c0] sm:$0xff] %vm696, 0.0
        %754 = vst.msk [vmem:[#allocation2 + $0x1c8] sm:$0xff] %vm696, 0.0
        %755 = vst.msk [vmem:[#allocation2 + $0x1d0] sm:$0xff] %vm696, 0.0
        %756 = vst.msk [vmem:[#allocation2 + $0x1d8] sm:$0xff] %vm696, 0.0
        %757 = vst.msk [vmem:[#allocation2 + $0x1e0] sm:$0xff] %vm696, 0.0
        %758 = vst.msk [vmem:[#allocation2 + $0x1e8] sm:$0xff] %vm696, 0.0
        %759 = vst.msk [vmem:[#allocation2 + $0x1f0] sm:$0xff] %vm696, 0.0
        %760 = vst.msk [vmem:[#allocation2 + $0x1f8] sm:$0xff] %vm696, 0.0
        %vm761 = vcmask 3072
        %762 = vst.msk [vmem:[#allocation2 + $0x200] sm:$0xf] %vm761, 0.0
        %763 = vst.msk [vmem:[#allocation2 + $0x1] sm:$0xff] %vm696, %v632
        %764 = vst.msk [vmem:[#allocation2 + $0x9] sm:$0xff] %vm696, %v633
        %765 = vst.msk [vmem:[#allocation2 + $0x11] sm:$0xff] %vm696, %v634
        %766 = vst.msk [vmem:[#allocation2 + $0x19] sm:$0xff] %vm696, %v635
        %767 = vst.msk [vmem:[#allocation2 + $0x21] sm:$0xff] %vm696, %v636
        %768 = vst.msk [vmem:[#allocation2 + $0x29] sm:$0xff] %vm696, %v637
        %769 = vst.msk [vmem:[#allocation2 + $0x31] sm:$0xff] %vm696, %v638
        %770 = vst.msk [vmem:[#allocation2 + $0x39] sm:$0xff] %vm696, %v639
        %771 = vst.msk [vmem:[#allocation2 + $0x41] sm:$0xff] %vm696, %v640
        %772 = vst.msk [vmem:[#allocation2 + $0x49] sm:$0xff] %vm696, %v641
        %773 = vst.msk [vmem:[#allocation2 + $0x51] sm:$0xff] %vm696, %v642
        %774 = vst.msk [vmem:[#allocation2 + $0x59] sm:$0xff] %vm696, %v643
        %775 = vst.msk [vmem:[#allocation2 + $0x61] sm:$0xff] %vm696, %v644
        %776 = vst.msk [vmem:[#allocation2 + $0x69] sm:$0xff] %vm696, %v645
        %777 = vst.msk [vmem:[#allocation2 + $0x71] sm:$0xff] %vm696, %v646
        %778 = vst.msk [vmem:[#allocation2 + $0x79] sm:$0xff] %vm696, %v647
        %779 = vst.msk [vmem:[#allocation2 + $0x81] sm:$0xff] %vm696, %v648
        %780 = vst.msk [vmem:[#allocation2 + $0x89] sm:$0xff] %vm696, %v649
        %781 = vst.msk [vmem:[#allocation2 + $0x91] sm:$0xff] %vm696, %v650
        %782 = vst.msk [vmem:[#allocation2 + $0x99] sm:$0xff] %vm696, %v651
        %783 = vst.msk [vmem:[#allocation2 + $0xa1] sm:$0xff] %vm696, %v652
        %784 = vst.msk [vmem:[#allocation2 + $0xa9] sm:$0xff] %vm696, %v653
        %785 = vst.msk [vmem:[#allocation2 + $0xb1] sm:$0xff] %vm696, %v654
        %786 = vst.msk [vmem:[#allocation2 + $0xb9] sm:$0xff] %vm696, %v655
        %787 = vst.msk [vmem:[#allocation2 + $0xc1] sm:$0xff] %vm696, %v656
        %788 = vst.msk [vmem:[#allocation2 + $0xc9] sm:$0xff] %vm696, %v657
        %789 = vst.msk [vmem:[#allocation2 + $0xd1] sm:$0xff] %vm696, %v658
        %790 = vst.msk [vmem:[#allocation2 + $0xd9] sm:$0xff] %vm696, %v659
        %791 = vst.msk [vmem:[#allocation2 + $0xe1] sm:$0xff] %vm696, %v660
        %792 = vst.msk [vmem:[#allocation2 + $0xe9] sm:$0xff] %vm696, %v661
        %793 = vst.msk [vmem:[#allocation2 + $0xf1] sm:$0xff] %vm696, %v662
        %794 = vst.msk [vmem:[#allocation2 + $0xf9] sm:$0xff] %vm696, %v663
        %795 = vst.msk [vmem:[#allocation2 + $0x103] sm:$0xff] %vm696, %v664
        %796 = vst.msk [vmem:[#allocation2 + $0x10b] sm:$0xff] %vm696, %v665
        %797 = vst.msk [vmem:[#allocation2 + $0x113] sm:$0xff] %vm696, %v666
        %798 = vst.msk [vmem:[#allocation2 + $0x11b] sm:$0xff] %vm696, %v667
        %799 = vst.msk [vmem:[#allocation2 + $0x123] sm:$0xff] %vm696, %v668
        %800 = vst.msk [vmem:[#allocation2 + $0x12b] sm:$0xff] %vm696, %v669
        %801 = vst.msk [vmem:[#allocation2 + $0x133] sm:$0xff] %vm696, %v670
        %802 = vst.msk [vmem:[#allocation2 + $0x13b] sm:$0xff] %vm696, %v671
        %803 = vst.msk [vmem:[#allocation2 + $0x143] sm:$0xff] %vm696, %v672
        %804 = vst.msk [vmem:[#allocation2 + $0x14b] sm:$0xff] %vm696, %v673
        %805 = vst.msk [vmem:[#allocation2 + $0x153] sm:$0xff] %vm696, %v674
        %806 = vst.msk [vmem:[#allocation2 + $0x15b] sm:$0xff] %vm696, %v675
        %807 = vst.msk [vmem:[#allocation2 + $0x163] sm:$0xff] %vm696, %v676
        %808 = vst.msk [vmem:[#allocation2 + $0x16b] sm:$0xff] %vm696, %v677
        %809 = vst.msk [vmem:[#allocation2 + $0x173] sm:$0xff] %vm696, %v678
        %810 = vst.msk [vmem:[#allocation2 + $0x17b] sm:$0xff] %vm696, %v679
        %811 = vst.msk [vmem:[#allocation2 + $0x183] sm:$0xff] %vm696, %v680
        %812 = vst.msk [vmem:[#allocation2 + $0x18b] sm:$0xff] %vm696, %v681
        %813 = vst.msk [vmem:[#allocation2 + $0x193] sm:$0xff] %vm696, %v682
        %814 = vst.msk [vmem:[#allocation2 + $0x19b] sm:$0xff] %vm696, %v683
        %815 = vst.msk [vmem:[#allocation2 + $0x1a3] sm:$0xff] %vm696, %v684
        %816 = vst.msk [vmem:[#allocation2 + $0x1ab] sm:$0xff] %vm696, %v685
        %817 = vst.msk [vmem:[#allocation2 + $0x1b3] sm:$0xff] %vm696, %v686
        %818 = vst.msk [vmem:[#allocation2 + $0x1bb] sm:$0xff] %vm696, %v687
        %819 = vst.msk [vmem:[#allocation2 + $0x1c3] sm:$0xff] %vm696, %v688
        %820 = vst.msk [vmem:[#allocation2 + $0x1cb] sm:$0xff] %vm696, %v689
        %821 = vst.msk [vmem:[#allocation2 + $0x1d3] sm:$0xff] %vm696, %v690
        %822 = vst.msk [vmem:[#allocation2 + $0x1db] sm:$0xff] %vm696, %v691
        %823 = vst.msk [vmem:[#allocation2 + $0x1e3] sm:$0xff] %vm696, %v692
        %824 = vst.msk [vmem:[#allocation2 + $0x1eb] sm:$0xff] %vm696, %v693
        %825 = vst.msk [vmem:[#allocation2 + $0x1f3] sm:$0xff] %vm696, %v694
        %826 = vst.msk [vmem:[#allocation2 + $0x1fb] sm:$0xff] %vm696, %v695
        %v827 = vld [vmem:[#allocation2] ss:$2 sm:$0xff]
        %s828 = scalar_lea.vmem [#allocation2], 16
        %v829 = vld [vmem:[%s828] ss:$2 sm:$0xff]
        %s830 = scalar_lea.vmem [#allocation2], 32
        %v831 = vld [vmem:[%s830] ss:$2 sm:$0xff]
        %s832 = scalar_lea.vmem [#allocation2], 48
        %v833 = vld [vmem:[%s832] ss:$2 sm:$0xff]
        %s834 = scalar_lea.vmem [#allocation2], 64
        %v835 = vld [vmem:[%s834] ss:$2 sm:$0xff]
        %s836 = scalar_lea.vmem [#allocation2], 80
        %v837 = vld [vmem:[%s836] ss:$2 sm:$0xff]
        %s838 = scalar_lea.vmem [#allocation2], 96
        %v839 = vld [vmem:[%s838] ss:$2 sm:$0xff]
        %s840 = scalar_lea.vmem [#allocation2], 112
        %v841 = vld [vmem:[%s840] ss:$2 sm:$0xff]
        %s842 = scalar_lea.vmem [#allocation2], 128
        %v843 = vld [vmem:[%s842] ss:$2 sm:$0xff]
        %s844 = scalar_lea.vmem [#allocation2], 144
        %v845 = vld [vmem:[%s844] ss:$2 sm:$0xff]
        %s846 = scalar_lea.vmem [#allocation2], 160
        %v847 = vld [vmem:[%s846] ss:$2 sm:$0xff]
        %s848 = scalar_lea.vmem [#allocation2], 176
        %v849 = vld [vmem:[%s848] ss:$2 sm:$0xff]
        %s850 = scalar_lea.vmem [#allocation2], 192
        %v851 = vld [vmem:[%s850] ss:$2 sm:$0xff]
        %s852 = scalar_lea.vmem [#allocation2], 208
        %v853 = vld [vmem:[%s852] ss:$2 sm:$0xff]
        %s854 = scalar_lea.vmem [#allocation2], 224
        %v855 = vld [vmem:[%s854] ss:$2 sm:$0xff]
        %s856 = scalar_lea.vmem [#allocation2], 240
        %v857 = vld [vmem:[%s856] ss:$2 sm:$0xff]
        %s858 = scalar_lea.vmem [#allocation2], 258
        %v859 = vld [vmem:[%s858] ss:$2 sm:$0xff]
        %s860 = scalar_lea.vmem [#allocation2], 274
        %v861 = vld [vmem:[%s860] ss:$2 sm:$0xff]
        %s862 = scalar_lea.vmem [#allocation2], 290
        %v863 = vld [vmem:[%s862] ss:$2 sm:$0xff]
        %s864 = scalar_lea.vmem [#allocation2], 306
        %v865 = vld [vmem:[%s864] ss:$2 sm:$0xff]
        %s866 = scalar_lea.vmem [#allocation2], 322
        %v867 = vld [vmem:[%s866] ss:$2 sm:$0xff]
        %s868 = scalar_lea.vmem [#allocation2], 338
        %v869 = vld [vmem:[%s868] ss:$2 sm:$0xff]
        %s870 = scalar_lea.vmem [#allocation2], 354
        %v871 = vld [vmem:[%s870] ss:$2 sm:$0xff]
        %s872 = scalar_lea.vmem [#allocation2], 370
        %v873 = vld [vmem:[%s872] ss:$2 sm:$0xff]
        %s874 = scalar_lea.vmem [#allocation2], 386
        %v875 = vld [vmem:[%s874] ss:$2 sm:$0xff]
        %s876 = scalar_lea.vmem [#allocation2], 402
        %v877 = vld [vmem:[%s876] ss:$2 sm:$0xff]
        %s878 = scalar_lea.vmem [#allocation2], 418
        %v879 = vld [vmem:[%s878] ss:$2 sm:$0xff]
        %s880 = scalar_lea.vmem [#allocation2], 434
        %v881 = vld [vmem:[%s880] ss:$2 sm:$0xff]
        %s882 = scalar_lea.vmem [#allocation2], 450
        %v883 = vld [vmem:[%s882] ss:$2 sm:$0xff]
        %s884 = scalar_lea.vmem [#allocation2], 466
        %v885 = vld [vmem:[%s884] ss:$2 sm:$0xff]
        %s886 = scalar_lea.vmem [#allocation2], 482
        %v887 = vld [vmem:[%s886] ss:$2 sm:$0xff]
        %s888 = scalar_lea.vmem [#allocation2], 498
        %v889 = vld [vmem:[%s888] ss:$2 sm:$0xff]
        %v890 = vld [vmem:[%s1] sm:$0x1]
        %v891 = vunpack.c.l.bf16 %v890
        %893 = vset.pattern.permute.xlu0 0
        %894 = vperm.xlu0 %893, %v827
        %v895 = vpop.permute.xlu0 %894
        %898 = vset.pattern.permute.xlu0 0
        %899 = vperm.xlu0 %898, %v829
        %v900 = vpop.permute.xlu0 %899
        %903 = vset.pattern.permute.xlu0 0
        %904 = vperm.xlu0 %903, %v831
        %v905 = vpop.permute.xlu0 %904
        %908 = vset.pattern.permute.xlu0 0
        %909 = vperm.xlu0 %908, %v833
        %v910 = vpop.permute.xlu0 %909
        %913 = vset.pattern.permute.xlu0 0
        %914 = vperm.xlu0 %913, %v835
        %v915 = vpop.permute.xlu0 %914
        %918 = vset.pattern.permute.xlu0 0
        %919 = vperm.xlu0 %918, %v837
        %v920 = vpop.permute.xlu0 %919
        %923 = vset.pattern.permute.xlu0 0
        %924 = vperm.xlu0 %923, %v839
        %v925 = vpop.permute.xlu0 %924
        %928 = vset.pattern.permute.xlu0 0
        %929 = vperm.xlu0 %928, %v841
        %v930 = vpop.permute.xlu0 %929
        %933 = vset.pattern.permute.xlu0 0
        %934 = vperm.xlu0 %933, %v843
        %v935 = vpop.permute.xlu0 %934
        %938 = vset.pattern.permute.xlu0 0
        %939 = vperm.xlu0 %938, %v845
        %v940 = vpop.permute.xlu0 %939
        %943 = vset.pattern.permute.xlu0 0
        %944 = vperm.xlu0 %943, %v847
        %v945 = vpop.permute.xlu0 %944
        %948 = vset.pattern.permute.xlu0 0
        %949 = vperm.xlu0 %948, %v849
        %v950 = vpop.permute.xlu0 %949
        %953 = vset.pattern.permute.xlu0 0
        %954 = vperm.xlu0 %953, %v851
        %v955 = vpop.permute.xlu0 %954
        %958 = vset.pattern.permute.xlu0 0
        %959 = vperm.xlu0 %958, %v853
        %v960 = vpop.permute.xlu0 %959
        %963 = vset.pattern.permute.xlu0 0
        %964 = vperm.xlu0 %963, %v855
        %v965 = vpop.permute.xlu0 %964
        %968 = vset.pattern.permute.xlu0 0
        %969 = vperm.xlu0 %968, %v857
        %v970 = vpop.permute.xlu0 %969
        %973 = vset.pattern.permute.xlu0 0
        %974 = vperm.xlu0 %973, %v859
        %v975 = vpop.permute.xlu0 %974
        %978 = vset.pattern.permute.xlu0 0
        %979 = vperm.xlu0 %978, %v861
        %v980 = vpop.permute.xlu0 %979
        %983 = vset.pattern.permute.xlu0 0
        %984 = vperm.xlu0 %983, %v863
        %v985 = vpop.permute.xlu0 %984
        %988 = vset.pattern.permute.xlu0 0
        %989 = vperm.xlu0 %988, %v865
        %v990 = vpop.permute.xlu0 %989
        %993 = vset.pattern.permute.xlu0 0
        %994 = vperm.xlu0 %993, %v867
        %v995 = vpop.permute.xlu0 %994
        %998 = vset.pattern.permute.xlu0 0
        %999 = vperm.xlu0 %998, %v869
        %v1000 = vpop.permute.xlu0 %999
        %1003 = vset.pattern.permute.xlu0 0
        %1004 = vperm.xlu0 %1003, %v871
        %v1005 = vpop.permute.xlu0 %1004
        %1008 = vset.pattern.permute.xlu0 0
        %1009 = vperm.xlu0 %1008, %v873
        %v1010 = vpop.permute.xlu0 %1009
        %1013 = vset.pattern.permute.xlu0 0
        %1014 = vperm.xlu0 %1013, %v875
        %v1015 = vpop.permute.xlu0 %1014
        %1018 = vset.pattern.permute.xlu0 0
        %1019 = vperm.xlu0 %1018, %v877
        %v1020 = vpop.permute.xlu0 %1019
        %1023 = vset.pattern.permute.xlu0 0
        %1024 = vperm.xlu0 %1023, %v879
        %v1025 = vpop.permute.xlu0 %1024
        %1028 = vset.pattern.permute.xlu0 0
        %1029 = vperm.xlu0 %1028, %v881
        %v1030 = vpop.permute.xlu0 %1029
        %1033 = vset.pattern.permute.xlu0 0
        %1034 = vperm.xlu0 %1033, %v883
        %v1035 = vpop.permute.xlu0 %1034
        %1038 = vset.pattern.permute.xlu0 0
        %1039 = vperm.xlu0 %1038, %v885
        %v1040 = vpop.permute.xlu0 %1039
        %1043 = vset.pattern.permute.xlu0 0
        %1044 = vperm.xlu0 %1043, %v887
        %v1045 = vpop.permute.xlu0 %1044
        %1048 = vset.pattern.permute.xlu0 0
        %1049 = vperm.xlu0 %1048, %v889
        %v1050 = vpop.permute.xlu0 %1049
        %v1052 = vlaneseq
        %v1053 = vshrl.u32 %v1052, 7
        %v1054 = vsub.s32 0, %v1053
        %v1055 = vrot.slane %v891, %v1054
        %v1056 = vmul.f32 %v895, %v1055
        %v1057 = vmul.f32 %v900, %v1055
        %v1058 = vmul.f32 %v905, %v1055
        %v1059 = vmul.f32 %v910, %v1055
        %v1060 = vmul.f32 %v915, %v1055
        %v1061 = vmul.f32 %v920, %v1055
        %v1062 = vmul.f32 %v925, %v1055
        %v1063 = vmul.f32 %v930, %v1055
        %v1064 = vmul.f32 %v935, %v1055
        %v1065 = vmul.f32 %v940, %v1055
        %v1066 = vmul.f32 %v945, %v1055
        %v1067 = vmul.f32 %v950, %v1055
        %v1068 = vmul.f32 %v955, %v1055
        %v1069 = vmul.f32 %v960, %v1055
        %v1070 = vmul.f32 %v965, %v1055
        %v1071 = vmul.f32 %v970, %v1055
        %v1072 = vmul.f32 %v975, %v1055
        %v1073 = vmul.f32 %v980, %v1055
        %v1074 = vmul.f32 %v985, %v1055
        %v1075 = vmul.f32 %v990, %v1055
        %v1076 = vmul.f32 %v995, %v1055
        %v1077 = vmul.f32 %v1000, %v1055
        %v1078 = vmul.f32 %v1005, %v1055
        %v1079 = vmul.f32 %v1010, %v1055
        %v1080 = vmul.f32 %v1015, %v1055
        %v1081 = vmul.f32 %v1020, %v1055
        %v1082 = vmul.f32 %v1025, %v1055
        %v1083 = vmul.f32 %v1030, %v1055
        %v1084 = vmul.f32 %v1035, %v1055
        %v1085 = vmul.f32 %v1040, %v1055
        %v1086 = vmul.f32 %v1045, %v1055
        %v1087 = vmul.f32 %v1050, %v1055
        %s1088 = scalar_lea.vmem [#allocation2], 1
        %v1089 = vld [vmem:[%s1088] ss:$2 sm:$0xff]
        %s1090 = scalar_lea.vmem [#allocation2], 17
        %v1091 = vld [vmem:[%s1090] ss:$2 sm:$0xff]
        %s1092 = scalar_lea.vmem [#allocation2], 33
        %v1093 = vld [vmem:[%s1092] ss:$2 sm:$0xff]
        %s1094 = scalar_lea.vmem [#allocation2], 49
        %v1095 = vld [vmem:[%s1094] ss:$2 sm:$0xff]
        %s1096 = scalar_lea.vmem [#allocation2], 65
        %v1097 = vld [vmem:[%s1096] ss:$2 sm:$0xff]
        %s1098 = scalar_lea.vmem [#allocation2], 81
        %v1099 = vld [vmem:[%s1098] ss:$2 sm:$0xff]
        %s1100 = scalar_lea.vmem [#allocation2], 97
        %v1101 = vld [vmem:[%s1100] ss:$2 sm:$0xff]
        %s1102 = scalar_lea.vmem [#allocation2], 113
        %v1103 = vld [vmem:[%s1102] ss:$2 sm:$0xff]
        %s1104 = scalar_lea.vmem [#allocation2], 129
        %v1105 = vld [vmem:[%s1104] ss:$2 sm:$0xff]
        %s1106 = scalar_lea.vmem [#allocation2], 145
        %v1107 = vld [vmem:[%s1106] ss:$2 sm:$0xff]
        %s1108 = scalar_lea.vmem [#allocation2], 161
        %v1109 = vld [vmem:[%s1108] ss:$2 sm:$0xff]
        %s1110 = scalar_lea.vmem [#allocation2], 177
        %v1111 = vld [vmem:[%s1110] ss:$2 sm:$0xff]
        %s1112 = scalar_lea.vmem [#allocation2], 193
        %v1113 = vld [vmem:[%s1112] ss:$2 sm:$0xff]
        %s1114 = scalar_lea.vmem [#allocation2], 209
        %v1115 = vld [vmem:[%s1114] ss:$2 sm:$0xff]
        %s1116 = scalar_lea.vmem [#allocation2], 225
        %v1117 = vld [vmem:[%s1116] ss:$2 sm:$0xff]
        %s1118 = scalar_lea.vmem [#allocation2], 241
        %v1119 = vld [vmem:[%s1118] ss:$2 sm:$0xff]
        %s1120 = scalar_lea.vmem [#allocation2], 259
        %v1121 = vld [vmem:[%s1120] ss:$2 sm:$0xff]
        %s1122 = scalar_lea.vmem [#allocation2], 275
        %v1123 = vld [vmem:[%s1122] ss:$2 sm:$0xff]
        %s1124 = scalar_lea.vmem [#allocation2], 291
        %v1125 = vld [vmem:[%s1124] ss:$2 sm:$0xff]
        %s1126 = scalar_lea.vmem [#allocation2], 307
        %v1127 = vld [vmem:[%s1126] ss:$2 sm:$0xff]
        %s1128 = scalar_lea.vmem [#allocation2], 323
        %v1129 = vld [vmem:[%s1128] ss:$2 sm:$0xff]
        %s1130 = scalar_lea.vmem [#allocation2], 339
        %v1131 = vld [vmem:[%s1130] ss:$2 sm:$0xff]
        %s1132 = scalar_lea.vmem [#allocation2], 355
        %v1133 = vld [vmem:[%s1132] ss:$2 sm:$0xff]
        %s1134 = scalar_lea.vmem [#allocation2], 371
        %v1135 = vld [vmem:[%s1134] ss:$2 sm:$0xff]
        %s1136 = scalar_lea.vmem [#allocation2], 387
        %v1137 = vld [vmem:[%s1136] ss:$2 sm:$0xff]
        %s1138 = scalar_lea.vmem [#allocation2], 403
        %v1139 = vld [vmem:[%s1138] ss:$2 sm:$0xff]
        %s1140 = scalar_lea.vmem [#allocation2], 419
        %v1141 = vld [vmem:[%s1140] ss:$2 sm:$0xff]
        %s1142 = scalar_lea.vmem [#allocation2], 435
        %v1143 = vld [vmem:[%s1142] ss:$2 sm:$0xff]
        %s1144 = scalar_lea.vmem [#allocation2], 451
        %v1145 = vld [vmem:[%s1144] ss:$2 sm:$0xff]
        %s1146 = scalar_lea.vmem [#allocation2], 467
        %v1147 = vld [vmem:[%s1146] ss:$2 sm:$0xff]
        %s1148 = scalar_lea.vmem [#allocation2], 483
        %v1149 = vld [vmem:[%s1148] ss:$2 sm:$0xff]
        %s1150 = scalar_lea.vmem [#allocation2], 499
        %v1151 = vld [vmem:[%s1150] ss:$2 sm:$0xff]
        %1153 = vset.pattern.permute.xlu0 0
        %1154 = vperm.xlu0 %1153, %v1089
        %v1155 = vpop.permute.xlu0 %1154
        %1158 = vset.pattern.permute.xlu0 0
        %1159 = vperm.xlu0 %1158, %v1091
        %v1160 = vpop.permute.xlu0 %1159
        %1163 = vset.pattern.permute.xlu0 0
        %1164 = vperm.xlu0 %1163, %v1093
        %v1165 = vpop.permute.xlu0 %1164
        %1168 = vset.pattern.permute.xlu0 0
        %1169 = vperm.xlu0 %1168, %v1095
        %v1170 = vpop.permute.xlu0 %1169
        %1173 = vset.pattern.permute.xlu0 0
        %1174 = vperm.xlu0 %1173, %v1097
        %v1175 = vpop.permute.xlu0 %1174
        %1178 = vset.pattern.permute.xlu0 0
        %1179 = vperm.xlu0 %1178, %v1099
        %v1180 = vpop.permute.xlu0 %1179
        %1183 = vset.pattern.permute.xlu0 0
        %1184 = vperm.xlu0 %1183, %v1101
        %v1185 = vpop.permute.xlu0 %1184
        %1188 = vset.pattern.permute.xlu0 0
        %1189 = vperm.xlu0 %1188, %v1103
        %v1190 = vpop.permute.xlu0 %1189
        %1193 = vset.pattern.permute.xlu0 0
        %1194 = vperm.xlu0 %1193, %v1105
        %v1195 = vpop.permute.xlu0 %1194
        %1198 = vset.pattern.permute.xlu0 0
        %1199 = vperm.xlu0 %1198, %v1107
        %v1200 = vpop.permute.xlu0 %1199
        %1203 = vset.pattern.permute.xlu0 0
        %1204 = vperm.xlu0 %1203, %v1109
        %v1205 = vpop.permute.xlu0 %1204
        %1208 = vset.pattern.permute.xlu0 0
        %1209 = vperm.xlu0 %1208, %v1111
        %v1210 = vpop.permute.xlu0 %1209
        %1213 = vset.pattern.permute.xlu0 0
        %1214 = vperm.xlu0 %1213, %v1113
        %v1215 = vpop.permute.xlu0 %1214
        %1218 = vset.pattern.permute.xlu0 0
        %1219 = vperm.xlu0 %1218, %v1115
        %v1220 = vpop.permute.xlu0 %1219
        %1223 = vset.pattern.permute.xlu0 0
        %1224 = vperm.xlu0 %1223, %v1117
        %v1225 = vpop.permute.xlu0 %1224
        %1228 = vset.pattern.permute.xlu0 0
        %1229 = vperm.xlu0 %1228, %v1119
        %v1230 = vpop.permute.xlu0 %1229
        %1233 = vset.pattern.permute.xlu0 0
        %1234 = vperm.xlu0 %1233, %v1121
        %v1235 = vpop.permute.xlu0 %1234
        %1238 = vset.pattern.permute.xlu0 0
        %1239 = vperm.xlu0 %1238, %v1123
        %v1240 = vpop.permute.xlu0 %1239
        %1243 = vset.pattern.permute.xlu0 0
        %1244 = vperm.xlu0 %1243, %v1125
        %v1245 = vpop.permute.xlu0 %1244
        %1248 = vset.pattern.permute.xlu0 0
        %1249 = vperm.xlu0 %1248, %v1127
        %v1250 = vpop.permute.xlu0 %1249
        %1253 = vset.pattern.permute.xlu0 0
        %1254 = vperm.xlu0 %1253, %v1129
        %v1255 = vpop.permute.xlu0 %1254
        %1258 = vset.pattern.permute.xlu0 0
        %1259 = vperm.xlu0 %1258, %v1131
        %v1260 = vpop.permute.xlu0 %1259
        %1263 = vset.pattern.permute.xlu0 0
        %1264 = vperm.xlu0 %1263, %v1133
        %v1265 = vpop.permute.xlu0 %1264
        %1268 = vset.pattern.permute.xlu0 0
        %1269 = vperm.xlu0 %1268, %v1135
        %v1270 = vpop.permute.xlu0 %1269
        %1273 = vset.pattern.permute.xlu0 0
        %1274 = vperm.xlu0 %1273, %v1137
        %v1275 = vpop.permute.xlu0 %1274
        %1278 = vset.pattern.permute.xlu0 0
        %1279 = vperm.xlu0 %1278, %v1139
        %v1280 = vpop.permute.xlu0 %1279
        %1283 = vset.pattern.permute.xlu0 0
        %1284 = vperm.xlu0 %1283, %v1141
        %v1285 = vpop.permute.xlu0 %1284
        %1288 = vset.pattern.permute.xlu0 0
        %1289 = vperm.xlu0 %1288, %v1143
        %v1290 = vpop.permute.xlu0 %1289
        %1293 = vset.pattern.permute.xlu0 0
        %1294 = vperm.xlu0 %1293, %v1145
        %v1295 = vpop.permute.xlu0 %1294
        %1298 = vset.pattern.permute.xlu0 0
        %1299 = vperm.xlu0 %1298, %v1147
        %v1300 = vpop.permute.xlu0 %1299
        %1303 = vset.pattern.permute.xlu0 0
        %1304 = vperm.xlu0 %1303, %v1149
        %v1305 = vpop.permute.xlu0 %1304
        %1308 = vset.pattern.permute.xlu0 0
        %1309 = vperm.xlu0 %1308, %v1151
        %v1310 = vpop.permute.xlu0 %1309
        %v1312 = vlaneseq
        %v1313 = vshrl.u32 %v1312, 7
        %v1314 = vsub.s32 1, %v1313
        %v1315 = vrot.slane %v891, %v1314
        %v1316 = vmul.f32 %v1155, %v1315
        %v1317 = vmul.f32 %v1160, %v1315
        %v1318 = vmul.f32 %v1165, %v1315
        %v1319 = vmul.f32 %v1170, %v1315
        %v1320 = vmul.f32 %v1175, %v1315
        %v1321 = vmul.f32 %v1180, %v1315
        %v1322 = vmul.f32 %v1185, %v1315
        %v1323 = vmul.f32 %v1190, %v1315
        %v1324 = vmul.f32 %v1195, %v1315
        %v1325 = vmul.f32 %v1200, %v1315
        %v1326 = vmul.f32 %v1205, %v1315
        %v1327 = vmul.f32 %v1210, %v1315
        %v1328 = vmul.f32 %v1215, %v1315
        %v1329 = vmul.f32 %v1220, %v1315
        %v1330 = vmul.f32 %v1225, %v1315
        %v1331 = vmul.f32 %v1230, %v1315
        %v1332 = vmul.f32 %v1235, %v1315
        %v1333 = vmul.f32 %v1240, %v1315
        %v1334 = vmul.f32 %v1245, %v1315
        %v1335 = vmul.f32 %v1250, %v1315
        %v1336 = vmul.f32 %v1255, %v1315
        %v1337 = vmul.f32 %v1260, %v1315
        %v1338 = vmul.f32 %v1265, %v1315
        %v1339 = vmul.f32 %v1270, %v1315
        %v1340 = vmul.f32 %v1275, %v1315
        %v1341 = vmul.f32 %v1280, %v1315
        %v1342 = vmul.f32 %v1285, %v1315
        %v1343 = vmul.f32 %v1290, %v1315
        %v1344 = vmul.f32 %v1295, %v1315
        %v1345 = vmul.f32 %v1300, %v1315
        %v1346 = vmul.f32 %v1305, %v1315
        %v1347 = vmul.f32 %v1310, %v1315
        %v1348 = vadd.f32 %v1056, %v1316
        %v1349 = vadd.f32 %v1057, %v1317
        %v1350 = vadd.f32 %v1058, %v1318
        %v1351 = vadd.f32 %v1059, %v1319
        %v1352 = vadd.f32 %v1060, %v1320
        %v1353 = vadd.f32 %v1061, %v1321
        %v1354 = vadd.f32 %v1062, %v1322
        %v1355 = vadd.f32 %v1063, %v1323
        %v1356 = vadd.f32 %v1064, %v1324
        %v1357 = vadd.f32 %v1065, %v1325
        %v1358 = vadd.f32 %v1066, %v1326
        %v1359 = vadd.f32 %v1067, %v1327
        %v1360 = vadd.f32 %v1068, %v1328
        %v1361 = vadd.f32 %v1069, %v1329
        %v1362 = vadd.f32 %v1070, %v1330
        %v1363 = vadd.f32 %v1071, %v1331
        %v1364 = vadd.f32 %v1072, %v1332
        %v1365 = vadd.f32 %v1073, %v1333
        %v1366 = vadd.f32 %v1074, %v1334
        %v1367 = vadd.f32 %v1075, %v1335
        %v1368 = vadd.f32 %v1076, %v1336
        %v1369 = vadd.f32 %v1077, %v1337
        %v1370 = vadd.f32 %v1078, %v1338
        %v1371 = vadd.f32 %v1079, %v1339
        %v1372 = vadd.f32 %v1080, %v1340
        %v1373 = vadd.f32 %v1081, %v1341
        %v1374 = vadd.f32 %v1082, %v1342
        %v1375 = vadd.f32 %v1083, %v1343
        %v1376 = vadd.f32 %v1084, %v1344
        %v1377 = vadd.f32 %v1085, %v1345
        %v1378 = vadd.f32 %v1086, %v1346
        %v1379 = vadd.f32 %v1087, %v1347
        %s1380 = scalar_lea.vmem [#allocation2], 2
        %v1381 = vld [vmem:[%s1380] ss:$2 sm:$0xff]
        %s1382 = scalar_lea.vmem [#allocation2], 18
        %v1383 = vld [vmem:[%s1382] ss:$2 sm:$0xff]
        %s1384 = scalar_lea.vmem [#allocation2], 34
        %v1385 = vld [vmem:[%s1384] ss:$2 sm:$0xff]
        %s1386 = scalar_lea.vmem [#allocation2], 50
        %v1387 = vld [vmem:[%s1386] ss:$2 sm:$0xff]
        %s1388 = scalar_lea.vmem [#allocation2], 66
        %v1389 = vld [vmem:[%s1388] ss:$2 sm:$0xff]
        %s1390 = scalar_lea.vmem [#allocation2], 82
        %v1391 = vld [vmem:[%s1390] ss:$2 sm:$0xff]
        %s1392 = scalar_lea.vmem [#allocation2], 98
        %v1393 = vld [vmem:[%s1392] ss:$2 sm:$0xff]
        %s1394 = scalar_lea.vmem [#allocation2], 114
        %v1395 = vld [vmem:[%s1394] ss:$2 sm:$0xff]
        %s1396 = scalar_lea.vmem [#allocation2], 130
        %v1397 = vld [vmem:[%s1396] ss:$2 sm:$0xff]
        %s1398 = scalar_lea.vmem [#allocation2], 146
        %v1399 = vld [vmem:[%s1398] ss:$2 sm:$0xff]
        %s1400 = scalar_lea.vmem [#allocation2], 162
        %v1401 = vld [vmem:[%s1400] ss:$2 sm:$0xff]
        %s1402 = scalar_lea.vmem [#allocation2], 178
        %v1403 = vld [vmem:[%s1402] ss:$2 sm:$0xff]
        %s1404 = scalar_lea.vmem [#allocation2], 194
        %v1405 = vld [vmem:[%s1404] ss:$2 sm:$0xff]
        %s1406 = scalar_lea.vmem [#allocation2], 210
        %v1407 = vld [vmem:[%s1406] ss:$2 sm:$0xff]
        %s1408 = scalar_lea.vmem [#allocation2], 226
        %v1409 = vld [vmem:[%s1408] ss:$2 sm:$0xff]
        %s1410 = scalar_lea.vmem [#allocation2], 242
        %v1411 = vld [vmem:[%s1410] ss:$2 sm:$0xff]
        %s1412 = scalar_lea.vmem [#allocation2], 260
        %v1413 = vld [vmem:[%s1412] ss:$2 sm:$0xff]
        %s1414 = scalar_lea.vmem [#allocation2], 276
        %v1415 = vld [vmem:[%s1414] ss:$2 sm:$0xff]
        %s1416 = scalar_lea.vmem [#allocation2], 292
        %v1417 = vld [vmem:[%s1416] ss:$2 sm:$0xff]
        %s1418 = scalar_lea.vmem [#allocation2], 308
        %v1419 = vld [vmem:[%s1418] ss:$2 sm:$0xff]
        %s1420 = scalar_lea.vmem [#allocation2], 324
        %v1421 = vld [vmem:[%s1420] ss:$2 sm:$0xff]
        %s1422 = scalar_lea.vmem [#allocation2], 340
        %v1423 = vld [vmem:[%s1422] ss:$2 sm:$0xff]
        %s1424 = scalar_lea.vmem [#allocation2], 356
        %v1425 = vld [vmem:[%s1424] ss:$2 sm:$0xff]
        %s1426 = scalar_lea.vmem [#allocation2], 372
        %v1427 = vld [vmem:[%s1426] ss:$2 sm:$0xff]
        %s1428 = scalar_lea.vmem [#allocation2], 388
        %v1429 = vld [vmem:[%s1428] ss:$2 sm:$0xff]
        %s1430 = scalar_lea.vmem [#allocation2], 404
        %v1431 = vld [vmem:[%s1430] ss:$2 sm:$0xff]
        %s1432 = scalar_lea.vmem [#allocation2], 420
        %v1433 = vld [vmem:[%s1432] ss:$2 sm:$0xff]
        %s1434 = scalar_lea.vmem [#allocation2], 436
        %v1435 = vld [vmem:[%s1434] ss:$2 sm:$0xff]
        %s1436 = scalar_lea.vmem [#allocation2], 452
        %v1437 = vld [vmem:[%s1436] ss:$2 sm:$0xff]
        %s1438 = scalar_lea.vmem [#allocation2], 468
        %v1439 = vld [vmem:[%s1438] ss:$2 sm:$0xff]
        %s1440 = scalar_lea.vmem [#allocation2], 484
        %v1441 = vld [vmem:[%s1440] ss:$2 sm:$0xff]
        %s1442 = scalar_lea.vmem [#allocation2], 500
        %v1443 = vld [vmem:[%s1442] ss:$2 sm:$0xff]
        %v1444 = vld [vmem:[%s1] sm:$0x2]
        %v1445 = vunpack.c.l.bf16 %v1444
        %1447 = vset.pattern.permute.xlu0 0
        %1448 = vperm.xlu0 %1447, %v1381
        %v1449 = vpop.permute.xlu0 %1448
        %1452 = vset.pattern.permute.xlu0 0
        %1453 = vperm.xlu0 %1452, %v1383
        %v1454 = vpop.permute.xlu0 %1453
        %1457 = vset.pattern.permute.xlu0 0
        %1458 = vperm.xlu0 %1457, %v1385
        %v1459 = vpop.permute.xlu0 %1458
        %1462 = vset.pattern.permute.xlu0 0
        %1463 = vperm.xlu0 %1462, %v1387
        %v1464 = vpop.permute.xlu0 %1463
        %1467 = vset.pattern.permute.xlu0 0
        %1468 = vperm.xlu0 %1467, %v1389
        %v1469 = vpop.permute.xlu0 %1468
        %1472 = vset.pattern.permute.xlu0 0
        %1473 = vperm.xlu0 %1472, %v1391
        %v1474 = vpop.permute.xlu0 %1473
        %1477 = vset.pattern.permute.xlu0 0
        %1478 = vperm.xlu0 %1477, %v1393
        %v1479 = vpop.permute.xlu0 %1478
        %1482 = vset.pattern.permute.xlu0 0
        %1483 = vperm.xlu0 %1482, %v1395
        %v1484 = vpop.permute.xlu0 %1483
        %1487 = vset.pattern.permute.xlu0 0
        %1488 = vperm.xlu0 %1487, %v1397
        %v1489 = vpop.permute.xlu0 %1488
        %1492 = vset.pattern.permute.xlu0 0
        %1493 = vperm.xlu0 %1492, %v1399
        %v1494 = vpop.permute.xlu0 %1493
        %1497 = vset.pattern.permute.xlu0 0
        %1498 = vperm.xlu0 %1497, %v1401
        %v1499 = vpop.permute.xlu0 %1498
        %1502 = vset.pattern.permute.xlu0 0
        %1503 = vperm.xlu0 %1502, %v1403
        %v1504 = vpop.permute.xlu0 %1503
        %1507 = vset.pattern.permute.xlu0 0
        %1508 = vperm.xlu0 %1507, %v1405
        %v1509 = vpop.permute.xlu0 %1508
        %1512 = vset.pattern.permute.xlu0 0
        %1513 = vperm.xlu0 %1512, %v1407
        %v1514 = vpop.permute.xlu0 %1513
        %1517 = vset.pattern.permute.xlu0 0
        %1518 = vperm.xlu0 %1517, %v1409
        %v1519 = vpop.permute.xlu0 %1518
        %1522 = vset.pattern.permute.xlu0 0
        %1523 = vperm.xlu0 %1522, %v1411
        %v1524 = vpop.permute.xlu0 %1523
        %1527 = vset.pattern.permute.xlu0 0
        %1528 = vperm.xlu0 %1527, %v1413
        %v1529 = vpop.permute.xlu0 %1528
        %1532 = vset.pattern.permute.xlu0 0
        %1533 = vperm.xlu0 %1532, %v1415
        %v1534 = vpop.permute.xlu0 %1533
        %1537 = vset.pattern.permute.xlu0 0
        %1538 = vperm.xlu0 %1537, %v1417
        %v1539 = vpop.permute.xlu0 %1538
        %1542 = vset.pattern.permute.xlu0 0
        %1543 = vperm.xlu0 %1542, %v1419
        %v1544 = vpop.permute.xlu0 %1543
        %1547 = vset.pattern.permute.xlu0 0
        %1548 = vperm.xlu0 %1547, %v1421
        %v1549 = vpop.permute.xlu0 %1548
        %1552 = vset.pattern.permute.xlu0 0
        %1553 = vperm.xlu0 %1552, %v1423
        %v1554 = vpop.permute.xlu0 %1553
        %1557 = vset.pattern.permute.xlu0 0
        %1558 = vperm.xlu0 %1557, %v1425
        %v1559 = vpop.permute.xlu0 %1558
        %1562 = vset.pattern.permute.xlu0 0
        %1563 = vperm.xlu0 %1562, %v1427
        %v1564 = vpop.permute.xlu0 %1563
        %1567 = vset.pattern.permute.xlu0 0
        %1568 = vperm.xlu0 %1567, %v1429
        %v1569 = vpop.permute.xlu0 %1568
        %1572 = vset.pattern.permute.xlu0 0
        %1573 = vperm.xlu0 %1572, %v1431
        %v1574 = vpop.permute.xlu0 %1573
        %1577 = vset.pattern.permute.xlu0 0
        %1578 = vperm.xlu0 %1577, %v1433
        %v1579 = vpop.permute.xlu0 %1578
        %1582 = vset.pattern.permute.xlu0 0
        %1583 = vperm.xlu0 %1582, %v1435
        %v1584 = vpop.permute.xlu0 %1583
        %1587 = vset.pattern.permute.xlu0 0
        %1588 = vperm.xlu0 %1587, %v1437
        %v1589 = vpop.permute.xlu0 %1588
        %1592 = vset.pattern.permute.xlu0 0
        %1593 = vperm.xlu0 %1592, %v1439
        %v1594 = vpop.permute.xlu0 %1593
        %1597 = vset.pattern.permute.xlu0 0
        %1598 = vperm.xlu0 %1597, %v1441
        %v1599 = vpop.permute.xlu0 %1598
        %1602 = vset.pattern.permute.xlu0 0
        %1603 = vperm.xlu0 %1602, %v1443
        %v1604 = vpop.permute.xlu0 %1603
        %v1606 = vlaneseq
        %v1607 = vshrl.u32 %v1606, 7
        %v1608 = vsub.s32 2, %v1607
        %v1609 = vrot.slane %v1445, %v1608
        %v1610 = vmul.f32 %v1449, %v1609
        %v1611 = vmul.f32 %v1454, %v1609
        %v1612 = vmul.f32 %v1459, %v1609
        %v1613 = vmul.f32 %v1464, %v1609
        %v1614 = vmul.f32 %v1469, %v1609
        %v1615 = vmul.f32 %v1474, %v1609
        %v1616 = vmul.f32 %v1479, %v1609
        %v1617 = vmul.f32 %v1484, %v1609
        %v1618 = vmul.f32 %v1489, %v1609
        %v1619 = vmul.f32 %v1494, %v1609
        %v1620 = vmul.f32 %v1499, %v1609
        %v1621 = vmul.f32 %v1504, %v1609
        %v1622 = vmul.f32 %v1509, %v1609
        %v1623 = vmul.f32 %v1514, %v1609
        %v1624 = vmul.f32 %v1519, %v1609
        %v1625 = vmul.f32 %v1524, %v1609
        %v1626 = vmul.f32 %v1529, %v1609
        %v1627 = vmul.f32 %v1534, %v1609
        %v1628 = vmul.f32 %v1539, %v1609
        %v1629 = vmul.f32 %v1544, %v1609
        %v1630 = vmul.f32 %v1549, %v1609
        %v1631 = vmul.f32 %v1554, %v1609
        %v1632 = vmul.f32 %v1559, %v1609
        %v1633 = vmul.f32 %v1564, %v1609
        %v1634 = vmul.f32 %v1569, %v1609
        %v1635 = vmul.f32 %v1574, %v1609
        %v1636 = vmul.f32 %v1579, %v1609
        %v1637 = vmul.f32 %v1584, %v1609
        %v1638 = vmul.f32 %v1589, %v1609
        %v1639 = vmul.f32 %v1594, %v1609
        %v1640 = vmul.f32 %v1599, %v1609
        %v1641 = vmul.f32 %v1604, %v1609
        %v1642 = vadd.f32 %v1348, %v1610
        %v1643 = vadd.f32 %v1349, %v1611
        %v1644 = vadd.f32 %v1350, %v1612
        %v1645 = vadd.f32 %v1351, %v1613
        %v1646 = vadd.f32 %v1352, %v1614
        %v1647 = vadd.f32 %v1353, %v1615
        %v1648 = vadd.f32 %v1354, %v1616
        %v1649 = vadd.f32 %v1355, %v1617
        %v1650 = vadd.f32 %v1356, %v1618
        %v1651 = vadd.f32 %v1357, %v1619
        %v1652 = vadd.f32 %v1358, %v1620
        %v1653 = vadd.f32 %v1359, %v1621
        %v1654 = vadd.f32 %v1360, %v1622
        %v1655 = vadd.f32 %v1361, %v1623
        %v1656 = vadd.f32 %v1362, %v1624
        %v1657 = vadd.f32 %v1363, %v1625
        %v1658 = vadd.f32 %v1364, %v1626
        %v1659 = vadd.f32 %v1365, %v1627
        %v1660 = vadd.f32 %v1366, %v1628
        %v1661 = vadd.f32 %v1367, %v1629
        %v1662 = vadd.f32 %v1368, %v1630
        %v1663 = vadd.f32 %v1369, %v1631
        %v1664 = vadd.f32 %v1370, %v1632
        %v1665 = vadd.f32 %v1371, %v1633
        %v1666 = vadd.f32 %v1372, %v1634
        %v1667 = vadd.f32 %v1373, %v1635
        %v1668 = vadd.f32 %v1374, %v1636
        %v1669 = vadd.f32 %v1375, %v1637
        %v1670 = vadd.f32 %v1376, %v1638
        %v1671 = vadd.f32 %v1377, %v1639
        %v1672 = vadd.f32 %v1378, %v1640
        %v1673 = vadd.f32 %v1379, %v1641
        %v1674 = vld [vmem:[%s2] sm:$0x1]
        %v1676 = vlaneseq
        %v1677 = vshrl.u32 %v1676, 7
        %v1678 = vsub.s32 0, %v1677
        %v1679 = vrot.slane %v1674, %v1678
        %v1681 = vmul.f32 %v1642, %v1679
        %v1682 = vmul.f32 %v1643, %v1679
        %v1683 = vmul.f32 %v1644, %v1679
        %v1684 = vmul.f32 %v1645, %v1679
        %v1685 = vmul.f32 %v1646, %v1679
        %v1686 = vmul.f32 %v1647, %v1679
        %v1687 = vmul.f32 %v1648, %v1679
        %v1688 = vmul.f32 %v1649, %v1679
        %v1689 = vmul.f32 %v1650, %v1679
        %v1690 = vmul.f32 %v1651, %v1679
        %v1691 = vmul.f32 %v1652, %v1679
        %v1692 = vmul.f32 %v1653, %v1679
        %v1693 = vmul.f32 %v1654, %v1679
        %v1694 = vmul.f32 %v1655, %v1679
        %v1695 = vmul.f32 %v1656, %v1679
        %v1696 = vmul.f32 %v1657, %v1679
        %v1697 = vmul.f32 %v1658, %v1679
        %v1698 = vmul.f32 %v1659, %v1679
        %v1699 = vmul.f32 %v1660, %v1679
        %v1700 = vmul.f32 %v1661, %v1679
        %v1701 = vmul.f32 %v1662, %v1679
        %v1702 = vmul.f32 %v1663, %v1679
        %v1703 = vmul.f32 %v1664, %v1679
        %v1704 = vmul.f32 %v1665, %v1679
        %v1705 = vmul.f32 %v1666, %v1679
        %v1706 = vmul.f32 %v1667, %v1679
        %v1707 = vmul.f32 %v1668, %v1679
        %v1708 = vmul.f32 %v1669, %v1679
        %v1709 = vmul.f32 %v1670, %v1679
        %v1710 = vmul.f32 %v1671, %v1679
        %v1711 = vmul.f32 %v1672, %v1679
        %v1712 = vmul.f32 %v1673, %v1679
        %v1713 = vld [vmem:[%s3] sm:$0x1]
        %v1715 = vlaneseq
        %v1716 = vshrl.u32 %v1715, 7
        %v1717 = vsub.s32 0, %v1716
        %v1718 = vrot.slane %v1713, %v1717
        %v1720 = vadd.f32 %v1681, %v1718
        %v1721 = vadd.f32 %v1682, %v1718
        %v1722 = vadd.f32 %v1683, %v1718
        %v1723 = vadd.f32 %v1684, %v1718
        %v1724 = vadd.f32 %v1685, %v1718
        %v1725 = vadd.f32 %v1686, %v1718
        %v1726 = vadd.f32 %v1687, %v1718
        %v1727 = vadd.f32 %v1688, %v1718
        %v1728 = vadd.f32 %v1689, %v1718
        %v1729 = vadd.f32 %v1690, %v1718
        %v1730 = vadd.f32 %v1691, %v1718
        %v1731 = vadd.f32 %v1692, %v1718
        %v1732 = vadd.f32 %v1693, %v1718
        %v1733 = vadd.f32 %v1694, %v1718
        %v1734 = vadd.f32 %v1695, %v1718
        %v1735 = vadd.f32 %v1696, %v1718
        %v1736 = vadd.f32 %v1697, %v1718
        %v1737 = vadd.f32 %v1698, %v1718
        %v1738 = vadd.f32 %v1699, %v1718
        %v1739 = vadd.f32 %v1700, %v1718
        %v1740 = vadd.f32 %v1701, %v1718
        %v1741 = vadd.f32 %v1702, %v1718
        %v1742 = vadd.f32 %v1703, %v1718
        %v1743 = vadd.f32 %v1704, %v1718
        %v1744 = vadd.f32 %v1705, %v1718
        %v1745 = vadd.f32 %v1706, %v1718
        %v1746 = vadd.f32 %v1707, %v1718
        %v1747 = vadd.f32 %v1708, %v1718
        %v1748 = vadd.f32 %v1709, %v1718
        %v1749 = vadd.f32 %v1710, %v1718
        %v1750 = vadd.f32 %v1711, %v1718
        %v1751 = vadd.f32 %v1712, %v1718
        %v1752 = vmul.f32 %v1720, 0.5
        %v1753 = vmul.f32 %v1721, 0.5
        %v1754 = vmul.f32 %v1722, 0.5
        %v1755 = vmul.f32 %v1723, 0.5
        %v1756 = vmul.f32 %v1724, 0.5
        %v1757 = vmul.f32 %v1725, 0.5
        %v1758 = vmul.f32 %v1726, 0.5
        %v1759 = vmul.f32 %v1727, 0.5
        %v1760 = vmul.f32 %v1728, 0.5
        %v1761 = vmul.f32 %v1729, 0.5
        %v1762 = vmul.f32 %v1730, 0.5
        %v1763 = vmul.f32 %v1731, 0.5
        %v1764 = vmul.f32 %v1732, 0.5
        %v1765 = vmul.f32 %v1733, 0.5
        %v1766 = vmul.f32 %v1734, 0.5
        %v1767 = vmul.f32 %v1735, 0.5
        %v1768 = vmul.f32 %v1736, 0.5
        %v1769 = vmul.f32 %v1737, 0.5
        %v1770 = vmul.f32 %v1738, 0.5
        %v1771 = vmul.f32 %v1739, 0.5
        %v1772 = vmul.f32 %v1740, 0.5
        %v1773 = vmul.f32 %v1741, 0.5
        %v1774 = vmul.f32 %v1742, 0.5
        %v1775 = vmul.f32 %v1743, 0.5
        %v1776 = vmul.f32 %v1744, 0.5
        %v1777 = vmul.f32 %v1745, 0.5
        %v1778 = vmul.f32 %v1746, 0.5
        %v1779 = vmul.f32 %v1747, 0.5
        %v1780 = vmul.f32 %v1748, 0.5
        %v1781 = vmul.f32 %v1749, 0.5
        %v1782 = vmul.f32 %v1750, 0.5
        %v1783 = vmul.f32 %v1751, 0.5
        %v1784 = vmul.f32 %v1720, 0.044715
        %v1785 = vmul.f32 %v1721, 0.044715
        %v1786 = vmul.f32 %v1722, 0.044715
        %v1787 = vmul.f32 %v1723, 0.044715
        %v1788 = vmul.f32 %v1724, 0.044715
        %v1789 = vmul.f32 %v1725, 0.044715
        %v1790 = vmul.f32 %v1726, 0.044715
        %v1791 = vmul.f32 %v1727, 0.044715
        %v1792 = vmul.f32 %v1728, 0.044715
        %v1793 = vmul.f32 %v1729, 0.044715
        %v1794 = vmul.f32 %v1730, 0.044715
        %v1795 = vmul.f32 %v1731, 0.044715
        %v1796 = vmul.f32 %v1732, 0.044715
        %v1797 = vmul.f32 %v1733, 0.044715
        %v1798 = vmul.f32 %v1734, 0.044715
        %v1799 = vmul.f32 %v1735, 0.044715
        %v1800 = vmul.f32 %v1736, 0.044715
        %v1801 = vmul.f32 %v1737, 0.044715
        %v1802 = vmul.f32 %v1738, 0.044715
        %v1803 = vmul.f32 %v1739, 0.044715
        %v1804 = vmul.f32 %v1740, 0.044715
        %v1805 = vmul.f32 %v1741, 0.044715
        %v1806 = vmul.f32 %v1742, 0.044715
        %v1807 = vmul.f32 %v1743, 0.044715
        %v1808 = vmul.f32 %v1744, 0.044715
        %v1809 = vmul.f32 %v1745, 0.044715
        %v1810 = vmul.f32 %v1746, 0.044715
        %v1811 = vmul.f32 %v1747, 0.044715
        %v1812 = vmul.f32 %v1748, 0.044715
        %v1813 = vmul.f32 %v1749, 0.044715
        %v1814 = vmul.f32 %v1750, 0.044715
        %v1815 = vmul.f32 %v1751, 0.044715
        %v1816 = vmul.f32 %v1784, %v1720
        %v1817 = vmul.f32 %v1785, %v1721
        %v1818 = vmul.f32 %v1786, %v1722
        %v1819 = vmul.f32 %v1787, %v1723
        %v1820 = vmul.f32 %v1788, %v1724
        %v1821 = vmul.f32 %v1789, %v1725
        %v1822 = vmul.f32 %v1790, %v1726
        %v1823 = vmul.f32 %v1791, %v1727
        %v1824 = vmul.f32 %v1792, %v1728
        %v1825 = vmul.f32 %v1793, %v1729
        %v1826 = vmul.f32 %v1794, %v1730
        %v1827 = vmul.f32 %v1795, %v1731
        %v1828 = vmul.f32 %v1796, %v1732
        %v1829 = vmul.f32 %v1797, %v1733
        %v1830 = vmul.f32 %v1798, %v1734
        %v1831 = vmul.f32 %v1799, %v1735
        %v1832 = vmul.f32 %v1800, %v1736
        %v1833 = vmul.f32 %v1801, %v1737
        %v1834 = vmul.f32 %v1802, %v1738
        %v1835 = vmul.f32 %v1803, %v1739
        %v1836 = vmul.f32 %v1804, %v1740
        %v1837 = vmul.f32 %v1805, %v1741
        %v1838 = vmul.f32 %v1806, %v1742
        %v1839 = vmul.f32 %v1807, %v1743
        %v1840 = vmul.f32 %v1808, %v1744
        %v1841 = vmul.f32 %v1809, %v1745
        %v1842 = vmul.f32 %v1810, %v1746
        %v1843 = vmul.f32 %v1811, %v1747
        %v1844 = vmul.f32 %v1812, %v1748
        %v1845 = vmul.f32 %v1813, %v1749
        %v1846 = vmul.f32 %v1814, %v1750
        %v1847 = vmul.f32 %v1815, %v1751
        %v1848 = vmul.f32 %v1816, %v1720
        %v1849 = vmul.f32 %v1817, %v1721
        %v1850 = vmul.f32 %v1818, %v1722
        %v1851 = vmul.f32 %v1819, %v1723
        %v1852 = vmul.f32 %v1820, %v1724
        %v1853 = vmul.f32 %v1821, %v1725
        %v1854 = vmul.f32 %v1822, %v1726
        %v1855 = vmul.f32 %v1823, %v1727
        %v1856 = vmul.f32 %v1824, %v1728
        %v1857 = vmul.f32 %v1825, %v1729
        %v1858 = vmul.f32 %v1826, %v1730
        %v1859 = vmul.f32 %v1827, %v1731
        %v1860 = vmul.f32 %v1828, %v1732
        %v1861 = vmul.f32 %v1829, %v1733
        %v1862 = vmul.f32 %v1830, %v1734
        %v1863 = vmul.f32 %v1831, %v1735
        %v1864 = vmul.f32 %v1832, %v1736
        %v1865 = vmul.f32 %v1833, %v1737
        %v1866 = vmul.f32 %v1834, %v1738
        %v1867 = vmul.f32 %v1835, %v1739
        %v1868 = vmul.f32 %v1836, %v1740
        %v1869 = vmul.f32 %v1837, %v1741
        %v1870 = vmul.f32 %v1838, %v1742
        %v1871 = vmul.f32 %v1839, %v1743
        %v1872 = vmul.f32 %v1840, %v1744
        %v1873 = vmul.f32 %v1841, %v1745
        %v1874 = vmul.f32 %v1842, %v1746
        %v1875 = vmul.f32 %v1843, %v1747
        %v1876 = vmul.f32 %v1844, %v1748
        %v1877 = vmul.f32 %v1845, %v1749
        %v1878 = vmul.f32 %v1846, %v1750
        %v1879 = vmul.f32 %v1847, %v1751
        %v1880 = vadd.f32 %v1720, %v1848
        %v1881 = vadd.f32 %v1721, %v1849
        %v1882 = vadd.f32 %v1722, %v1850
        %v1883 = vadd.f32 %v1723, %v1851
        %v1884 = vadd.f32 %v1724, %v1852
        %v1885 = vadd.f32 %v1725, %v1853
        %v1886 = vadd.f32 %v1726, %v1854
        %v1887 = vadd.f32 %v1727, %v1855
        %v1888 = vadd.f32 %v1728, %v1856
        %v1889 = vadd.f32 %v1729, %v1857
        %v1890 = vadd.f32 %v1730, %v1858
        %v1891 = vadd.f32 %v1731, %v1859
        %v1892 = vadd.f32 %v1732, %v1860
        %v1893 = vadd.f32 %v1733, %v1861
        %v1894 = vadd.f32 %v1734, %v1862
        %v1895 = vadd.f32 %v1735, %v1863
        %v1896 = vadd.f32 %v1736, %v1864
        %v1897 = vadd.f32 %v1737, %v1865
        %v1898 = vadd.f32 %v1738, %v1866
        %v1899 = vadd.f32 %v1739, %v1867
        %v1900 = vadd.f32 %v1740, %v1868
        %v1901 = vadd.f32 %v1741, %v1869
        %v1902 = vadd.f32 %v1742, %v1870
        %v1903 = vadd.f32 %v1743, %v1871
        %v1904 = vadd.f32 %v1744, %v1872
        %v1905 = vadd.f32 %v1745, %v1873
        %v1906 = vadd.f32 %v1746, %v1874
        %v1907 = vadd.f32 %v1747, %v1875
        %v1908 = vadd.f32 %v1748, %v1876
        %v1909 = vadd.f32 %v1749, %v1877
        %v1910 = vadd.f32 %v1750, %v1878
        %v1911 = vadd.f32 %v1751, %v1879
        %v1912 = vmul.f32 %v1880, 0.7978846
        %v1913 = vmul.f32 %v1881, 0.7978846
        %v1914 = vmul.f32 %v1882, 0.7978846
        %v1915 = vmul.f32 %v1883, 0.7978846
        %v1916 = vmul.f32 %v1884, 0.7978846
        %v1917 = vmul.f32 %v1885, 0.7978846
        %v1918 = vmul.f32 %v1886, 0.7978846
        %v1919 = vmul.f32 %v1887, 0.7978846
        %v1920 = vmul.f32 %v1888, 0.7978846
        %v1921 = vmul.f32 %v1889, 0.7978846
        %v1922 = vmul.f32 %v1890, 0.7978846
        %v1923 = vmul.f32 %v1891, 0.7978846
        %v1924 = vmul.f32 %v1892, 0.7978846
        %v1925 = vmul.f32 %v1893, 0.7978846
        %v1926 = vmul.f32 %v1894, 0.7978846
        %v1927 = vmul.f32 %v1895, 0.7978846
        %v1928 = vmul.f32 %v1896, 0.7978846
        %v1929 = vmul.f32 %v1897, 0.7978846
        %v1930 = vmul.f32 %v1898, 0.7978846
        %v1931 = vmul.f32 %v1899, 0.7978846
        %v1932 = vmul.f32 %v1900, 0.7978846
        %v1933 = vmul.f32 %v1901, 0.7978846
        %v1934 = vmul.f32 %v1902, 0.7978846
        %v1935 = vmul.f32 %v1903, 0.7978846
        %v1936 = vmul.f32 %v1904, 0.7978846
        %v1937 = vmul.f32 %v1905, 0.7978846
        %v1938 = vmul.f32 %v1906, 0.7978846
        %v1939 = vmul.f32 %v1907, 0.7978846
        %v1940 = vmul.f32 %v1908, 0.7978846
        %v1941 = vmul.f32 %v1909, 0.7978846
        %v1942 = vmul.f32 %v1910, 0.7978846
        %v1943 = vmul.f32 %v1911, 0.7978846
        %v1944 = vtanh.pop %v1912
        %v1945 = vtanh.pop %v1913
        %v1946 = vtanh.pop %v1914
        %v1947 = vtanh.pop %v1915
        %v1948 = vtanh.pop %v1916
        %v1949 = vtanh.pop %v1917
        %v1950 = vtanh.pop %v1918
        %v1951 = vtanh.pop %v1919
        %v1952 = vtanh.pop %v1920
        %v1953 = vtanh.pop %v1921
        %v1954 = vtanh.pop %v1922
        %v1955 = vtanh.pop %v1923
        %v1956 = vtanh.pop %v1924
        %v1957 = vtanh.pop %v1925
        %v1958 = vtanh.pop %v1926
        %v1959 = vtanh.pop %v1927
        %v1960 = vtanh.pop %v1928
        %v1961 = vtanh.pop %v1929
        %v1962 = vtanh.pop %v1930
        %v1963 = vtanh.pop %v1931
        %v1964 = vtanh.pop %v1932
        %v1965 = vtanh.pop %v1933
        %v1966 = vtanh.pop %v1934
        %v1967 = vtanh.pop %v1935
        %v1968 = vtanh.pop %v1936
        %v1969 = vtanh.pop %v1937
        %v1970 = vtanh.pop %v1938
        %v1971 = vtanh.pop %v1939
        %v1972 = vtanh.pop %v1940
        %v1973 = vtanh.pop %v1941
        %v1974 = vtanh.pop %v1942
        %v1975 = vtanh.pop %v1943
        %v1976 = vadd.f32 %v1944, 1.0
        %v1977 = vadd.f32 %v1945, 1.0
        %v1978 = vadd.f32 %v1946, 1.0
        %v1979 = vadd.f32 %v1947, 1.0
        %v1980 = vadd.f32 %v1948, 1.0
        %v1981 = vadd.f32 %v1949, 1.0
        %v1982 = vadd.f32 %v1950, 1.0
        %v1983 = vadd.f32 %v1951, 1.0
        %v1984 = vadd.f32 %v1952, 1.0
        %v1985 = vadd.f32 %v1953, 1.0
        %v1986 = vadd.f32 %v1954, 1.0
        %v1987 = vadd.f32 %v1955, 1.0
        %v1988 = vadd.f32 %v1956, 1.0
        %v1989 = vadd.f32 %v1957, 1.0
        %v1990 = vadd.f32 %v1958, 1.0
        %v1991 = vadd.f32 %v1959, 1.0
        %v1992 = vadd.f32 %v1960, 1.0
        %v1993 = vadd.f32 %v1961, 1.0
        %v1994 = vadd.f32 %v1962, 1.0
        %v1995 = vadd.f32 %v1963, 1.0
        %v1996 = vadd.f32 %v1964, 1.0
        %v1997 = vadd.f32 %v1965, 1.0
        %v1998 = vadd.f32 %v1966, 1.0
        %v1999 = vadd.f32 %v1967, 1.0
        %v2000 = vadd.f32 %v1968, 1.0
        %v2001 = vadd.f32 %v1969, 1.0
        %v2002 = vadd.f32 %v1970, 1.0
        %v2003 = vadd.f32 %v1971, 1.0
        %v2004 = vadd.f32 %v1972, 1.0
        %v2005 = vadd.f32 %v1973, 1.0
        %v2006 = vadd.f32 %v1974, 1.0
        %v2007 = vadd.f32 %v1975, 1.0
        %v2008 = vmul.f32 %v1752, %v1976
        %v2009 = vmul.f32 %v1753, %v1977
        %v2010 = vmul.f32 %v1754, %v1978
        %v2011 = vmul.f32 %v1755, %v1979
        %v2012 = vmul.f32 %v1756, %v1980
        %v2013 = vmul.f32 %v1757, %v1981
        %v2014 = vmul.f32 %v1758, %v1982
        %v2015 = vmul.f32 %v1759, %v1983
        %v2016 = vmul.f32 %v1760, %v1984
        %v2017 = vmul.f32 %v1761, %v1985
        %v2018 = vmul.f32 %v1762, %v1986
        %v2019 = vmul.f32 %v1763, %v1987
        %v2020 = vmul.f32 %v1764, %v1988
        %v2021 = vmul.f32 %v1765, %v1989
        %v2022 = vmul.f32 %v1766, %v1990
        %v2023 = vmul.f32 %v1767, %v1991
        %v2024 = vmul.f32 %v1768, %v1992
        %v2025 = vmul.f32 %v1769, %v1993
        %v2026 = vmul.f32 %v1770, %v1994
        %v2027 = vmul.f32 %v1771, %v1995
        %v2028 = vmul.f32 %v1772, %v1996
        %v2029 = vmul.f32 %v1773, %v1997
        %v2030 = vmul.f32 %v1774, %v1998
        %v2031 = vmul.f32 %v1775, %v1999
        %v2032 = vmul.f32 %v1776, %v2000
        %v2033 = vmul.f32 %v1777, %v2001
        %v2034 = vmul.f32 %v1778, %v2002
        %v2035 = vmul.f32 %v1779, %v2003
        %v2036 = vmul.f32 %v1780, %v2004
        %v2037 = vmul.f32 %v1781, %v2005
        %v2038 = vmul.f32 %v1782, %v2006
        %v2039 = vmul.f32 %v1783, %v2007
        %vm2040 = vcmask 64512
        %2041 = vst.msk [vmem:[#allocation3] sm:$0xff] %vm2040, 0.0
        %2042 = vst.msk [vmem:[#allocation3 + $0x8] sm:$0xff] %vm2040, 0.0
        %2043 = vst.msk [vmem:[#allocation3 + $0x10] sm:$0xff] %vm2040, 0.0
        %2044 = vst.msk [vmem:[#allocation3 + $0x18] sm:$0xff] %vm2040, 0.0
        %2045 = vst.msk [vmem:[#allocation3 + $0x20] sm:$0xff] %vm2040, 0.0
        %2046 = vst.msk [vmem:[#allocation3 + $0x28] sm:$0xff] %vm2040, 0.0
        %2047 = vst.msk [vmem:[#allocation3 + $0x30] sm:$0xff] %vm2040, 0.0
        %2048 = vst.msk [vmem:[#allocation3 + $0x38] sm:$0xff] %vm2040, 0.0
        %2049 = vst.msk [vmem:[#allocation3 + $0x40] sm:$0xff] %vm2040, 0.0
        %2050 = vst.msk [vmem:[#allocation3 + $0x48] sm:$0xff] %vm2040, 0.0
        %2051 = vst.msk [vmem:[#allocation3 + $0x50] sm:$0xff] %vm2040, 0.0
        %2052 = vst.msk [vmem:[#allocation3 + $0x58] sm:$0xff] %vm2040, 0.0
        %2053 = vst.msk [vmem:[#allocation3 + $0x60] sm:$0xff] %vm2040, 0.0
        %2054 = vst.msk [vmem:[#allocation3 + $0x68] sm:$0xff] %vm2040, 0.0
        %2055 = vst.msk [vmem:[#allocation3 + $0x70] sm:$0xff] %vm2040, 0.0
        %2056 = vst.msk [vmem:[#allocation3 + $0x78] sm:$0xff] %vm2040, 0.0
        %2057 = vst.msk [vmem:[#allocation3 + $0x80] sm:$0xff] %vm2040, 0.0
        %2058 = vst.msk [vmem:[#allocation3 + $0x88] sm:$0xff] %vm2040, 0.0
        %2059 = vst.msk [vmem:[#allocation3 + $0x90] sm:$0xff] %vm2040, 0.0
        %2060 = vst.msk [vmem:[#allocation3 + $0x98] sm:$0xff] %vm2040, 0.0
        %2061 = vst.msk [vmem:[#allocation3 + $0xa0] sm:$0xff] %vm2040, 0.0
        %2062 = vst.msk [vmem:[#allocation3 + $0xa8] sm:$0xff] %vm2040, 0.0
        %2063 = vst.msk [vmem:[#allocation3 + $0xb0] sm:$0xff] %vm2040, 0.0
        %2064 = vst.msk [vmem:[#allocation3 + $0xb8] sm:$0xff] %vm2040, 0.0
        %2065 = vst.msk [vmem:[#allocation3 + $0xc0] sm:$0xff] %vm2040, 0.0
        %2066 = vst.msk [vmem:[#allocation3 + $0xc8] sm:$0xff] %vm2040, 0.0
        %2067 = vst.msk [vmem:[#allocation3 + $0xd0] sm:$0xff] %vm2040, 0.0
        %2068 = vst.msk [vmem:[#allocation3 + $0xd8] sm:$0xff] %vm2040, 0.0
        %2069 = vst.msk [vmem:[#allocation3 + $0xe0] sm:$0xff] %vm2040, 0.0
        %2070 = vst.msk [vmem:[#allocation3 + $0xe8] sm:$0xff] %vm2040, 0.0
        %2071 = vst.msk [vmem:[#allocation3 + $0xf0] sm:$0xff] %vm2040, 0.0
        %2072 = vst.msk [vmem:[#allocation3 + $0xf8] sm:$0xff] %vm2040, 0.0
        %vm2073 = vcmask 60416
        %2074 = vst.msk [vmem:[#allocation3 + $0x100] sm:$0xf] %vm2073, 0.0
        %2075 = vst.msk [vmem:[#allocation3 + $0x1] sm:$0xff] %vm2040, %v2008
        %2076 = vst.msk [vmem:[#allocation3 + $0x9] sm:$0xff] %vm2040, %v2009
        %2077 = vst.msk [vmem:[#allocation3 + $0x11] sm:$0xff] %vm2040, %v2010
        %2078 = vst.msk [vmem:[#allocation3 + $0x19] sm:$0xff] %vm2040, %v2011
        %2079 = vst.msk [vmem:[#allocation3 + $0x21] sm:$0xff] %vm2040, %v2012
        %2080 = vst.msk [vmem:[#allocation3 + $0x29] sm:$0xff] %vm2040, %v2013
        %2081 = vst.msk [vmem:[#allocation3 + $0x31] sm:$0xff] %vm2040, %v2014
        %2082 = vst.msk [vmem:[#allocation3 + $0x39] sm:$0xff] %vm2040, %v2015
        %2083 = vst.msk [vmem:[#allocation3 + $0x41] sm:$0xff] %vm2040, %v2016
        %2084 = vst.msk [vmem:[#allocation3 + $0x49] sm:$0xff] %vm2040, %v2017
        %2085 = vst.msk [vmem:[#allocation3 + $0x51] sm:$0xff] %vm2040, %v2018
        %2086 = vst.msk [vmem:[#allocation3 + $0x59] sm:$0xff] %vm2040, %v2019
        %2087 = vst.msk [vmem:[#allocation3 + $0x61] sm:$0xff] %vm2040, %v2020
        %2088 = vst.msk [vmem:[#allocation3 + $0x69] sm:$0xff] %vm2040, %v2021
        %2089 = vst.msk [vmem:[#allocation3 + $0x71] sm:$0xff] %vm2040, %v2022
        %2090 = vst.msk [vmem:[#allocation3 + $0x79] sm:$0xff] %vm2040, %v2023
        %2091 = vst.msk [vmem:[#allocation3 + $0x83] sm:$0xff] %vm2040, %v2024
        %2092 = vst.msk [vmem:[#allocation3 + $0x8b] sm:$0xff] %vm2040, %v2025
        %2093 = vst.msk [vmem:[#allocation3 + $0x93] sm:$0xff] %vm2040, %v2026
        %2094 = vst.msk [vmem:[#allocation3 + $0x9b] sm:$0xff] %vm2040, %v2027
        %2095 = vst.msk [vmem:[#allocation3 + $0xa3] sm:$0xff] %vm2040, %v2028
        %2096 = vst.msk [vmem:[#allocation3 + $0xab] sm:$0xff] %vm2040, %v2029
        %2097 = vst.msk [vmem:[#allocation3 + $0xb3] sm:$0xff] %vm2040, %v2030
        %2098 = vst.msk [vmem:[#allocation3 + $0xbb] sm:$0xff] %vm2040, %v2031
        %2099 = vst.msk [vmem:[#allocation3 + $0xc3] sm:$0xff] %vm2040, %v2032
        %2100 = vst.msk [vmem:[#allocation3 + $0xcb] sm:$0xff] %vm2040, %v2033
        %2101 = vst.msk [vmem:[#allocation3 + $0xd3] sm:$0xff] %vm2040, %v2034
        %2102 = vst.msk [vmem:[#allocation3 + $0xdb] sm:$0xff] %vm2040, %v2035
        %2103 = vst.msk [vmem:[#allocation3 + $0xe3] sm:$0xff] %vm2040, %v2036
        %2104 = vst.msk [vmem:[#allocation3 + $0xeb] sm:$0xff] %vm2040, %v2037
        %2105 = vst.msk [vmem:[#allocation3 + $0xf3] sm:$0xff] %vm2040, %v2038
        %2106 = vst.msk [vmem:[#allocation3 + $0xfb] sm:$0xff] %vm2040, %v2039
        %v2107 = vld [vmem:[#allocation3] ss:$2 sm:$0xff]
        %s2108 = scalar_lea.vmem [#allocation3], 16
        %v2109 = vld [vmem:[%s2108] ss:$2 sm:$0xff]
        %s2110 = scalar_lea.vmem [#allocation3], 32
        %v2111 = vld [vmem:[%s2110] ss:$2 sm:$0xff]
        %s2112 = scalar_lea.vmem [#allocation3], 48
        %v2113 = vld [vmem:[%s2112] ss:$2 sm:$0xff]
        %s2114 = scalar_lea.vmem [#allocation3], 64
        %v2115 = vld [vmem:[%s2114] ss:$2 sm:$0xff]
        %s2116 = scalar_lea.vmem [#allocation3], 80
        %v2117 = vld [vmem:[%s2116] ss:$2 sm:$0xff]
        %s2118 = scalar_lea.vmem [#allocation3], 96
        %v2119 = vld [vmem:[%s2118] ss:$2 sm:$0xff]
        %s2120 = scalar_lea.vmem [#allocation3], 112
        %v2121 = vld [vmem:[%s2120] ss:$2 sm:$0xff]
        %s2122 = scalar_lea.vmem [#allocation3], 1
        %v2123 = vld [vmem:[%s2122] ss:$2 sm:$0xff]
        %s2124 = scalar_lea.vmem [#allocation3], 17
        %v2125 = vld [vmem:[%s2124] ss:$2 sm:$0xff]
        %s2126 = scalar_lea.vmem [#allocation3], 33
        %v2127 = vld [vmem:[%s2126] ss:$2 sm:$0xff]
        %s2128 = scalar_lea.vmem [#allocation3], 49
        %v2129 = vld [vmem:[%s2128] ss:$2 sm:$0xff]
        %s2130 = scalar_lea.vmem [#allocation3], 65
        %v2131 = vld [vmem:[%s2130] ss:$2 sm:$0xff]
        %s2132 = scalar_lea.vmem [#allocation3], 81
        %v2133 = vld [vmem:[%s2132] ss:$2 sm:$0xff]
        %s2134 = scalar_lea.vmem [#allocation3], 97
        %v2135 = vld [vmem:[%s2134] ss:$2 sm:$0xff]
        %s2136 = scalar_lea.vmem [#allocation3], 113
        %v2137 = vld [vmem:[%s2136] ss:$2 sm:$0xff]
        %s2138 = scalar_lea.vmem [#allocation3], 2
        %v2139 = vld [vmem:[%s2138] ss:$2 sm:$0xff]
        %s2140 = scalar_lea.vmem [#allocation3], 18
        %v2141 = vld [vmem:[%s2140] ss:$2 sm:$0xff]
        %s2142 = scalar_lea.vmem [#allocation3], 34
        %v2143 = vld [vmem:[%s2142] ss:$2 sm:$0xff]
        %s2144 = scalar_lea.vmem [#allocation3], 50
        %v2145 = vld [vmem:[%s2144] ss:$2 sm:$0xff]
        %s2146 = scalar_lea.vmem [#allocation3], 66
        %v2147 = vld [vmem:[%s2146] ss:$2 sm:$0xff]
        %s2148 = scalar_lea.vmem [#allocation3], 82
        %v2149 = vld [vmem:[%s2148] ss:$2 sm:$0xff]
        %s2150 = scalar_lea.vmem [#allocation3], 98
        %v2151 = vld [vmem:[%s2150] ss:$2 sm:$0xff]
        %s2152 = scalar_lea.vmem [#allocation3], 114
        %v2153 = vld [vmem:[%s2152] ss:$2 sm:$0xff]
        %2162 = vrot.lane.b32.xlu0 %v2123, 8
        %v2163 = vpop.permute.xlu0 %2162
        %2164 = vrot.lane.b32.xlu0 %v2125, 8
        %v2165 = vpop.permute.xlu0 %2164
        %2166 = vrot.lane.b32.xlu0 %v2127, 8
        %v2167 = vpop.permute.xlu0 %2166
        %2168 = vrot.lane.b32.xlu0 %v2129, 8
        %v2169 = vpop.permute.xlu0 %2168
        %2170 = vrot.lane.b32.xlu0 %v2131, 8
        %v2171 = vpop.permute.xlu0 %2170
        %2172 = vrot.lane.b32.xlu0 %v2133, 8
        %v2173 = vpop.permute.xlu0 %2172
        %2174 = vrot.lane.b32.xlu0 %v2135, 8
        %v2175 = vpop.permute.xlu0 %2174
        %2176 = vrot.lane.b32.xlu0 %v2137, 8
        %v2177 = vpop.permute.xlu0 %2176
        %2194 = vrot.lane.b32.xlu0 %v2139, 16
        %v2195 = vpop.permute.xlu0 %2194
        %2196 = vrot.lane.b32.xlu0 %v2141, 16
        %v2197 = vpop.permute.xlu0 %2196
        %2198 = vrot.lane.b32.xlu0 %v2143, 16
        %v2199 = vpop.permute.xlu0 %2198
        %2200 = vrot.lane.b32.xlu0 %v2145, 16
        %v2201 = vpop.permute.xlu0 %2200
        %2202 = vrot.lane.b32.xlu0 %v2147, 16
        %v2203 = vpop.permute.xlu0 %2202
        %2204 = vrot.lane.b32.xlu0 %v2149, 16
        %v2205 = vpop.permute.xlu0 %2204
        %2206 = vrot.lane.b32.xlu0 %v2151, 16
        %v2207 = vpop.permute.xlu0 %2206
        %2208 = vrot.lane.b32.xlu0 %v2153, 16
        %v2209 = vpop.permute.xlu0 %2208
        %v2218 = vsel %vm2040, %v2107, %v2163
        %v2219 = vsel %vm2040, %v2109, %v2165
        %v2220 = vsel %vm2040, %v2111, %v2167
        %v2221 = vsel %vm2040, %v2113, %v2169
        %v2222 = vsel %vm2040, %v2115, %v2171
        %v2223 = vsel %vm2040, %v2117, %v2173
        %v2224 = vsel %vm2040, %v2119, %v2175
        %v2225 = vsel %vm2040, %v2121, %v2177
        %vm2226 = vcmask 130048
        %v2227 = vsel %vm2226, %v2218, %v2195
        %v2228 = vsel %vm2226, %v2219, %v2197
        %v2229 = vsel %vm2226, %v2220, %v2199
        %v2230 = vsel %vm2226, %v2221, %v2201
        %v2231 = vsel %vm2226, %v2222, %v2203
        %v2232 = vsel %vm2226, %v2223, %v2205
        %v2233 = vsel %vm2226, %v2224, %v2207
        %v2234 = vsel %vm2226, %v2225, %v2209
        %s2235 = scalar_lea.vmem [#allocation3], 130
        %v2236 = vld [vmem:[%s2235] ss:$2 sm:$0xff]
        %s2237 = scalar_lea.vmem [#allocation3], 146
        %v2238 = vld [vmem:[%s2237] ss:$2 sm:$0xff]
        %s2239 = scalar_lea.vmem [#allocation3], 162
        %v2240 = vld [vmem:[%s2239] ss:$2 sm:$0xff]
        %s2241 = scalar_lea.vmem [#allocation3], 178
        %v2242 = vld [vmem:[%s2241] ss:$2 sm:$0xff]
        %s2243 = scalar_lea.vmem [#allocation3], 194
        %v2244 = vld [vmem:[%s2243] ss:$2 sm:$0xff]
        %s2245 = scalar_lea.vmem [#allocation3], 210
        %v2246 = vld [vmem:[%s2245] ss:$2 sm:$0xff]
        %s2247 = scalar_lea.vmem [#allocation3], 226
        %v2248 = vld [vmem:[%s2247] ss:$2 sm:$0xff]
        %s2249 = scalar_lea.vmem [#allocation3], 242
        %v2250 = vld [vmem:[%s2249] ss:$2 sm:$0xff]
        %s2251 = scalar_lea.vmem [#allocation3], 131
        %v2252 = vld [vmem:[%s2251] ss:$2 sm:$0xff]
        %s2253 = scalar_lea.vmem [#allocation3], 147
        %v2254 = vld [vmem:[%s2253] ss:$2 sm:$0xff]
        %s2255 = scalar_lea.vmem [#allocation3], 163
        %v2256 = vld [vmem:[%s2255] ss:$2 sm:$0xff]
        %s2257 = scalar_lea.vmem [#allocation3], 179
        %v2258 = vld [vmem:[%s2257] ss:$2 sm:$0xff]
        %s2259 = scalar_lea.vmem [#allocation3], 195
        %v2260 = vld [vmem:[%s2259] ss:$2 sm:$0xff]
        %s2261 = scalar_lea.vmem [#allocation3], 211
        %v2262 = vld [vmem:[%s2261] ss:$2 sm:$0xff]
        %s2263 = scalar_lea.vmem [#allocation3], 227
        %v2264 = vld [vmem:[%s2263] ss:$2 sm:$0xff]
        %s2265 = scalar_lea.vmem [#allocation3], 243
        %v2266 = vld [vmem:[%s2265] ss:$2 sm:$0xff]
        %s2267 = scalar_lea.vmem [#allocation3], 132
        %v2268 = vld [vmem:[%s2267] ss:$2 sm:$0xff]
        %s2269 = scalar_lea.vmem [#allocation3], 148
        %v2270 = vld [vmem:[%s2269] ss:$2 sm:$0xff]
        %s2271 = scalar_lea.vmem [#allocation3], 164
        %v2272 = vld [vmem:[%s2271] ss:$2 sm:$0xff]
        %s2273 = scalar_lea.vmem [#allocation3], 180
        %v2274 = vld [vmem:[%s2273] ss:$2 sm:$0xff]
        %s2275 = scalar_lea.vmem [#allocation3], 196
        %v2276 = vld [vmem:[%s2275] ss:$2 sm:$0xff]
        %s2277 = scalar_lea.vmem [#allocation3], 212
        %v2278 = vld [vmem:[%s2277] ss:$2 sm:$0xff]
        %s2279 = scalar_lea.vmem [#allocation3], 228
        %v2280 = vld [vmem:[%s2279] ss:$2 sm:$0xff]
        %s2281 = scalar_lea.vmem [#allocation3], 244
        %v2282 = vld [vmem:[%s2281] ss:$2 sm:$0xff]
        %2291 = vrot.lane.b32.xlu0 %v2252, 8
        %v2292 = vpop.permute.xlu0 %2291
        %2293 = vrot.lane.b32.xlu0 %v2254, 8
        %v2294 = vpop.permute.xlu0 %2293
        %2295 = vrot.lane.b32.xlu0 %v2256, 8
        %v2296 = vpop.permute.xlu0 %2295
        %2297 = vrot.lane.b32.xlu0 %v2258, 8
        %v2298 = vpop.permute.xlu0 %2297
        %2299 = vrot.lane.b32.xlu0 %v2260, 8
        %v2300 = vpop.permute.xlu0 %2299
        %2301 = vrot.lane.b32.xlu0 %v2262, 8
        %v2302 = vpop.permute.xlu0 %2301
        %2303 = vrot.lane.b32.xlu0 %v2264, 8
        %v2304 = vpop.permute.xlu0 %2303
        %2305 = vrot.lane.b32.xlu0 %v2266, 8
        %v2306 = vpop.permute.xlu0 %2305
        %2323 = vrot.lane.b32.xlu0 %v2268, 16
        %v2324 = vpop.permute.xlu0 %2323
        %2325 = vrot.lane.b32.xlu0 %v2270, 16
        %v2326 = vpop.permute.xlu0 %2325
        %2327 = vrot.lane.b32.xlu0 %v2272, 16
        %v2328 = vpop.permute.xlu0 %2327
        %2329 = vrot.lane.b32.xlu0 %v2274, 16
        %v2330 = vpop.permute.xlu0 %2329
        %2331 = vrot.lane.b32.xlu0 %v2276, 16
        %v2332 = vpop.permute.xlu0 %2331
        %2333 = vrot.lane.b32.xlu0 %v2278, 16
        %v2334 = vpop.permute.xlu0 %2333
        %2335 = vrot.lane.b32.xlu0 %v2280, 16
        %v2336 = vpop.permute.xlu0 %2335
        %2337 = vrot.lane.b32.xlu0 %v2282, 16
        %v2338 = vpop.permute.xlu0 %2337
        %v2347 = vsel %vm2040, %v2236, %v2292
        %v2348 = vsel %vm2040, %v2238, %v2294
        %v2349 = vsel %vm2040, %v2240, %v2296
        %v2350 = vsel %vm2040, %v2242, %v2298
        %v2351 = vsel %vm2040, %v2244, %v2300
        %v2352 = vsel %vm2040, %v2246, %v2302
        %v2353 = vsel %vm2040, %v2248, %v2304
        %v2354 = vsel %vm2040, %v2250, %v2306
        %v2355 = vsel %vm2226, %v2347, %v2324
        %v2356 = vsel %vm2226, %v2348, %v2326
        %v2357 = vsel %vm2226, %v2349, %v2328
        %v2358 = vsel %vm2226, %v2350, %v2330
        %v2359 = vsel %vm2226, %v2351, %v2332
        %v2360 = vsel %vm2226, %v2352, %v2334
        %v2361 = vsel %vm2226, %v2353, %v2336
        %v2362 = vsel %vm2226, %v2354, %v2338
        %v2363 = vpack.c.bf16 %v2228, %v2227
        %v2364 = vpack.c.bf16 %v2230, %v2229
        %v2365 = vpack.c.bf16 %v2232, %v2231
        %v2366 = vpack.c.bf16 %v2234, %v2233
        %v2367 = vpack.c.bf16 %v2356, %v2355
        %v2368 = vpack.c.bf16 %v2358, %v2357
        %v2369 = vpack.c.bf16 %v2360, %v2359
        %v2370 = vpack.c.bf16 %v2362, %v2361
        %v2371 = vld [vmem:[%s4] sm:$0xf]
        %v2372 = vld [vmem:[%s4 + $0x4] sm:$0xf]
        %v2373 = vld [vmem:[%s4 + $0x8] sm:$0xf]
        %v2377 = vunpack.c.l.b16 %v2371
        %v2378 = vunpack.c.l.b16 %v2372
        %v2379 = vunpack.c.l.b16 %v2373
        %v2380 = vpack.c.b16 %v2378, %v2377
        %v2381 = vpack.c.b16 %v2379, %v2379
        %vm2383 = vcmask 195584
        %v2385 = vsel %vm2383, %v2363, 0
        %v2388 = vsel %vm2383, %v2364, 0
        %v2391 = vsel %vm2383, %v2365, 0
        %v2394 = vsel %vm2383, %v2366, 0
        %v2397 = vsel %vm2383, %v2367, 0
        %v2400 = vsel %vm2383, %v2368, 0
        %v2403 = vsel %vm2383, %v2369, 0
        %v2406 = vsel %vm2383, %v2370, 0
        %vm2408 = vcmask 1043456
        %v2410 = vsel %vm2408, %v2381, 0
        %2412 = vmatprep.subr.bf16.mxu0 0
        %2413 = vmatpush1.bf16.msra.mxu0 0
        %2414 = vmatprep.subr.bf16.mxu0 0
        %2415 = vmatpush1.bf16.msra.mxu0 0
        %2416 = vmatprep.subr.bf16.mxu0 0
        %2417 = vmatpush1.bf16.msra.mxu0 0
        %2418 = vmatprep.subr.bf16.mxu0 0
        %2419 = vmatpush1.bf16.msra.mxu0 0
        %2420 = vmatprep.subr.bf16.mxu0 0
        %2421 = vmatpush1.bf16.msra.mxu0 0
        %2422 = vmatprep.subr.bf16.mxu0 0
        %2423 = vmatpush1.bf16.msra.mxu0 0
        %2424 = vmatprep.subr.bf16.mxu0 0
        %2425 = vmatpush1.bf16.msra.mxu0 %v2410
        %2426 = vmatprep.subr.bf16.mxu0 0
        %2427 = vmatpush1.bf16.msra.mxu0 %v2380
        %2428 = vmatprep.subr.bf16.mxu0 0
        %2429 = vmatpush2.bf16.msra.mxu0 0
        %2430 = vmatprep.subr.bf16.mxu0 0
        %2431 = vmatpush2.bf16.msra.mxu0 0
        %2432 = vmatprep.subr.bf16.mxu0 0
        %2433 = vmatpush2.bf16.msra.mxu0 0
        %2434 = vmatprep.subr.bf16.mxu0 0
        %2435 = vmatpush2.bf16.msra.mxu0 0
        %2436 = vmatprep.subr.bf16.mxu0 0
        %2437 = vmatpush2.bf16.msra.mxu0 0
        %2438 = vmatprep.subr.bf16.mxu0 0
        %2439 = vmatpush2.bf16.msra.mxu0 0
        %2440 = vmatprep.subr.bf16.mxu0 0
        %2441 = vmatpush2.bf16.msra.mxu0 0
        %2442 = vmatprep.subr.bf16.mxu0 0
        %2443 = vmatpush2.bf16.msra.mxu0 0
        %2444 = vmatprep.mubr.bf16.mxu0 0
        %2445 = vmatmul.mubr.bf16.gmra.mxu0 %v2385
        %v2446 = vpop.f32.mrf.mxu0
        %v2447 = vadd.f32 0.0, %v2446
        %v2448 = vpop.f32.mrf.mxu0
        %v2449 = vpop.f32.mrf.mxu0
        %v2450 = vadd.f32 0.0, %v2449
        %v2451 = vpop.f32.mrf.mxu0
        %2452 = vmatprep.mubr.bf16.mxu0 0
        %2453 = vmatmul.mubr.bf16.gmra.mxu0 %v2388
        %v2454 = vpop.f32.mrf.mxu0
        %v2455 = vadd.f32 0.0, %v2454
        %v2456 = vpop.f32.mrf.mxu0
        %v2457 = vpop.f32.mrf.mxu0
        %v2458 = vadd.f32 0.0, %v2457
        %v2459 = vpop.f32.mrf.mxu0
        %2460 = vmatprep.mubr.bf16.mxu0 0
        %2461 = vmatmul.mubr.bf16.gmra.mxu0 %v2391
        %v2462 = vpop.f32.mrf.mxu0
        %v2463 = vadd.f32 0.0, %v2462
        %v2464 = vpop.f32.mrf.mxu0
        %v2465 = vpop.f32.mrf.mxu0
        %v2466 = vadd.f32 0.0, %v2465
        %v2467 = vpop.f32.mrf.mxu0
        %2468 = vmatprep.mubr.bf16.mxu0 0
        %2469 = vmatmul.mubr.bf16.gmra.mxu0 %v2394
        %v2470 = vpop.f32.mrf.mxu0
        %v2471 = vadd.f32 0.0, %v2470
        %v2472 = vpop.f32.mrf.mxu0
        %v2473 = vpop.f32.mrf.mxu0
        %v2474 = vadd.f32 0.0, %v2473
        %v2475 = vpop.f32.mrf.mxu0
        %2476 = vmatprep.mubr.bf16.mxu0 0
        %2477 = vmatmul.mubr.bf16.gmra.mxu0 %v2397
        %v2478 = vpop.f32.mrf.mxu0
        %v2479 = vadd.f32 0.0, %v2478
        %v2480 = vpop.f32.mrf.mxu0
        %v2481 = vpop.f32.mrf.mxu0
        %v2482 = vadd.f32 0.0, %v2481
        %v2483 = vpop.f32.mrf.mxu0
        %2484 = vmatprep.mubr.bf16.mxu0 0
        %2485 = vmatmul.mubr.bf16.gmra.mxu0 %v2400
        %v2486 = vpop.f32.mrf.mxu0
        %v2487 = vadd.f32 0.0, %v2486
        %v2488 = vpop.f32.mrf.mxu0
        %v2489 = vpop.f32.mrf.mxu0
        %v2490 = vadd.f32 0.0, %v2489
        %v2491 = vpop.f32.mrf.mxu0
        %2492 = vmatprep.mubr.bf16.mxu0 0
        %2493 = vmatmul.mubr.bf16.gmra.mxu0 %v2403
        %v2494 = vpop.f32.mrf.mxu0
        %v2495 = vadd.f32 0.0, %v2494
        %v2496 = vpop.f32.mrf.mxu0
        %v2497 = vpop.f32.mrf.mxu0
        %v2498 = vadd.f32 0.0, %v2497
        %v2499 = vpop.f32.mrf.mxu0
        %2500 = vmatprep.mubr.bf16.mxu0 0
        %2501 = vmatmul.mubr.bf16.gmra.mxu0 %v2406
        %v2502 = vpop.f32.mrf.mxu0
        %v2503 = vadd.f32 0.0, %v2502
        %v2504 = vpop.f32.mrf.mxu0
        %v2505 = vpop.f32.mrf.mxu0
        %v2506 = vadd.f32 0.0, %v2505
        %v2507 = vpop.f32.mrf.mxu0
        %2508 = vdwg.mxu0
        %v2509 = vld [vmem:[%s5] sm:$0x1]
        %v2511 = vlaneseq
        %v2512 = vshrl.u32 %v2511, 7
        %v2513 = vsub.s32 0, %v2512
        %v2514 = vrot.slane %v2509, %v2513
        %v2516 = vmul.f32 %v2447, %v2514
        %v2517 = vmul.f32 %v2450, %v2514
        %v2518 = vmul.f32 %v2455, %v2514
        %v2519 = vmul.f32 %v2458, %v2514
        %v2520 = vmul.f32 %v2463, %v2514
        %v2521 = vmul.f32 %v2466, %v2514
        %v2522 = vmul.f32 %v2471, %v2514
        %v2523 = vmul.f32 %v2474, %v2514
        %v2524 = vmul.f32 %v2479, %v2514
        %v2525 = vmul.f32 %v2482, %v2514
        %v2526 = vmul.f32 %v2487, %v2514
        %v2527 = vmul.f32 %v2490, %v2514
        %v2528 = vmul.f32 %v2495, %v2514
        %v2529 = vmul.f32 %v2498, %v2514
        %v2530 = vmul.f32 %v2503, %v2514
        %v2531 = vmul.f32 %v2506, %v2514
        %v2532 = vld [vmem:[%s6] sm:$0x1]
        %v2534 = vlaneseq
        %v2535 = vshrl.u32 %v2534, 7
        %v2536 = vsub.s32 0, %v2535
        %v2537 = vrot.slane %v2532, %v2536
        %v2539 = vadd.f32 %v2516, %v2537
        %v2540 = vadd.f32 %v2517, %v2537
        %v2541 = vadd.f32 %v2518, %v2537
        %v2542 = vadd.f32 %v2519, %v2537
        %v2543 = vadd.f32 %v2520, %v2537
        %v2544 = vadd.f32 %v2521, %v2537
        %v2545 = vadd.f32 %v2522, %v2537
        %v2546 = vadd.f32 %v2523, %v2537
        %v2547 = vadd.f32 %v2524, %v2537
        %v2548 = vadd.f32 %v2525, %v2537
        %v2549 = vadd.f32 %v2526, %v2537
        %v2550 = vadd.f32 %v2527, %v2537
        %v2551 = vadd.f32 %v2528, %v2537
        %v2552 = vadd.f32 %v2529, %v2537
        %v2553 = vadd.f32 %v2530, %v2537
        %v2554 = vadd.f32 %v2531, %v2537
        %v2555 = vmul.f32 %v2539, 0.5
        %v2556 = vmul.f32 %v2540, 0.5
        %v2557 = vmul.f32 %v2541, 0.5
        %v2558 = vmul.f32 %v2542, 0.5
        %v2559 = vmul.f32 %v2543, 0.5
        %v2560 = vmul.f32 %v2544, 0.5
        %v2561 = vmul.f32 %v2545, 0.5
        %v2562 = vmul.f32 %v2546, 0.5
        %v2563 = vmul.f32 %v2547, 0.5
        %v2564 = vmul.f32 %v2548, 0.5
        %v2565 = vmul.f32 %v2549, 0.5
        %v2566 = vmul.f32 %v2550, 0.5
        %v2567 = vmul.f32 %v2551, 0.5
        %v2568 = vmul.f32 %v2552, 0.5
        %v2569 = vmul.f32 %v2553, 0.5
        %v2570 = vmul.f32 %v2554, 0.5
        %v2571 = vmul.f32 %v2539, 0.044715
        %v2572 = vmul.f32 %v2540, 0.044715
        %v2573 = vmul.f32 %v2541, 0.044715
        %v2574 = vmul.f32 %v2542, 0.044715
        %v2575 = vmul.f32 %v2543, 0.044715
        %v2576 = vmul.f32 %v2544, 0.044715
        %v2577 = vmul.f32 %v2545, 0.044715
        %v2578 = vmul.f32 %v2546, 0.044715
        %v2579 = vmul.f32 %v2547, 0.044715
        %v2580 = vmul.f32 %v2548, 0.044715
        %v2581 = vmul.f32 %v2549, 0.044715
        %v2582 = vmul.f32 %v2550, 0.044715
        %v2583 = vmul.f32 %v2551, 0.044715
        %v2584 = vmul.f32 %v2552, 0.044715
        %v2585 = vmul.f32 %v2553, 0.044715
        %v2586 = vmul.f32 %v2554, 0.044715
        %v2587 = vmul.f32 %v2571, %v2539
        %v2588 = vmul.f32 %v2572, %v2540
        %v2589 = vmul.f32 %v2573, %v2541
        %v2590 = vmul.f32 %v2574, %v2542
        %v2591 = vmul.f32 %v2575, %v2543
        %v2592 = vmul.f32 %v2576, %v2544
        %v2593 = vmul.f32 %v2577, %v2545
        %v2594 = vmul.f32 %v2578, %v2546
        %v2595 = vmul.f32 %v2579, %v2547
        %v2596 = vmul.f32 %v2580, %v2548
        %v2597 = vmul.f32 %v2581, %v2549
        %v2598 = vmul.f32 %v2582, %v2550
        %v2599 = vmul.f32 %v2583, %v2551
        %v2600 = vmul.f32 %v2584, %v2552
        %v2601 = vmul.f32 %v2585, %v2553
        %v2602 = vmul.f32 %v2586, %v2554
        %v2603 = vmul.f32 %v2587, %v2539
        %v2604 = vmul.f32 %v2588, %v2540
        %v2605 = vmul.f32 %v2589, %v2541
        %v2606 = vmul.f32 %v2590, %v2542
        %v2607 = vmul.f32 %v2591, %v2543
        %v2608 = vmul.f32 %v2592, %v2544
        %v2609 = vmul.f32 %v2593, %v2545
        %v2610 = vmul.f32 %v2594, %v2546
        %v2611 = vmul.f32 %v2595, %v2547
        %v2612 = vmul.f32 %v2596, %v2548
        %v2613 = vmul.f32 %v2597, %v2549
        %v2614 = vmul.f32 %v2598, %v2550
        %v2615 = vmul.f32 %v2599, %v2551
        %v2616 = vmul.f32 %v2600, %v2552
        %v2617 = vmul.f32 %v2601, %v2553
        %v2618 = vmul.f32 %v2602, %v2554
        %v2619 = vadd.f32 %v2539, %v2603
        %v2620 = vadd.f32 %v2540, %v2604
        %v2621 = vadd.f32 %v2541, %v2605
        %v2622 = vadd.f32 %v2542, %v2606
        %v2623 = vadd.f32 %v2543, %v2607
        %v2624 = vadd.f32 %v2544, %v2608
        %v2625 = vadd.f32 %v2545, %v2609
        %v2626 = vadd.f32 %v2546, %v2610
        %v2627 = vadd.f32 %v2547, %v2611
        %v2628 = vadd.f32 %v2548, %v2612
        %v2629 = vadd.f32 %v2549, %v2613
        %v2630 = vadd.f32 %v2550, %v2614
        %v2631 = vadd.f32 %v2551, %v2615
        %v2632 = vadd.f32 %v2552, %v2616
        %v2633 = vadd.f32 %v2553, %v2617
        %v2634 = vadd.f32 %v2554, %v2618
        %v2635 = vmul.f32 %v2619, 0.7978846
        %v2636 = vmul.f32 %v2620, 0.7978846
        %v2637 = vmul.f32 %v2621, 0.7978846
        %v2638 = vmul.f32 %v2622, 0.7978846
        %v2639 = vmul.f32 %v2623, 0.7978846
        %v2640 = vmul.f32 %v2624, 0.7978846
        %v2641 = vmul.f32 %v2625, 0.7978846
        %v2642 = vmul.f32 %v2626, 0.7978846
        %v2643 = vmul.f32 %v2627, 0.7978846
        %v2644 = vmul.f32 %v2628, 0.7978846
        %v2645 = vmul.f32 %v2629, 0.7978846
        %v2646 = vmul.f32 %v2630, 0.7978846
        %v2647 = vmul.f32 %v2631, 0.7978846
        %v2648 = vmul.f32 %v2632, 0.7978846
        %v2649 = vmul.f32 %v2633, 0.7978846
        %v2650 = vmul.f32 %v2634, 0.7978846
        %v2651 = vtanh.pop %v2635
        %v2652 = vtanh.pop %v2636
        %v2653 = vtanh.pop %v2637
        %v2654 = vtanh.pop %v2638
        %v2655 = vtanh.pop %v2639
        %v2656 = vtanh.pop %v2640
        %v2657 = vtanh.pop %v2641
        %v2658 = vtanh.pop %v2642
        %v2659 = vtanh.pop %v2643
        %v2660 = vtanh.pop %v2644
        %v2661 = vtanh.pop %v2645
        %v2662 = vtanh.pop %v2646
        %v2663 = vtanh.pop %v2647
        %v2664 = vtanh.pop %v2648
        %v2665 = vtanh.pop %v2649
        %v2666 = vtanh.pop %v2650
        %v2667 = vadd.f32 %v2651, 1.0
        %v2668 = vadd.f32 %v2652, 1.0
        %v2669 = vadd.f32 %v2653, 1.0
        %v2670 = vadd.f32 %v2654, 1.0
        %v2671 = vadd.f32 %v2655, 1.0
        %v2672 = vadd.f32 %v2656, 1.0
        %v2673 = vadd.f32 %v2657, 1.0
        %v2674 = vadd.f32 %v2658, 1.0
        %v2675 = vadd.f32 %v2659, 1.0
        %v2676 = vadd.f32 %v2660, 1.0
        %v2677 = vadd.f32 %v2661, 1.0
        %v2678 = vadd.f32 %v2662, 1.0
        %v2679 = vadd.f32 %v2663, 1.0
        %v2680 = vadd.f32 %v2664, 1.0
        %v2681 = vadd.f32 %v2665, 1.0
        %v2682 = vadd.f32 %v2666, 1.0
        %v2683 = vmul.f32 %v2555, %v2667
        %v2684 = vmul.f32 %v2556, %v2668
        %v2685 = vmul.f32 %v2557, %v2669
        %v2686 = vmul.f32 %v2558, %v2670
        %v2687 = vmul.f32 %v2559, %v2671
        %v2688 = vmul.f32 %v2560, %v2672
        %v2689 = vmul.f32 %v2561, %v2673
        %v2690 = vmul.f32 %v2562, %v2674
        %v2691 = vmul.f32 %v2563, %v2675
        %v2692 = vmul.f32 %v2564, %v2676
        %v2693 = vmul.f32 %v2565, %v2677
        %v2694 = vmul.f32 %v2566, %v2678
        %v2695 = vmul.f32 %v2567, %v2679
        %v2696 = vmul.f32 %v2568, %v2680
        %v2697 = vmul.f32 %v2569, %v2681
        %v2698 = vmul.f32 %v2570, %v2682
        %2699 = vst.msk [vmem:[#allocation4] sm:$0xff] %vm2226, 0.0
        %2700 = vst.msk [vmem:[#allocation4 + $0x8] sm:$0xff] %vm2226, 0.0
        %2701 = vst.msk [vmem:[#allocation4 + $0x10] sm:$0xff] %vm2226, 0.0
        %2702 = vst.msk [vmem:[#allocation4 + $0x18] sm:$0xff] %vm2226, 0.0
        %2703 = vst.msk [vmem:[#allocation4 + $0x20] sm:$0xff] %vm2226, 0.0
        %2704 = vst.msk [vmem:[#allocation4 + $0x28] sm:$0xff] %vm2226, 0.0
        %2705 = vst.msk [vmem:[#allocation4 + $0x30] sm:$0xff] %vm2226, 0.0
        %2706 = vst.msk [vmem:[#allocation4 + $0x38] sm:$0xff] %vm2226, 0.0
        %2707 = vst.msk [vmem:[#allocation4 + $0x40] sm:$0xff] %vm2226, 0.0
        %2708 = vst.msk [vmem:[#allocation4 + $0x48] sm:$0xff] %vm2226, 0.0
        %2709 = vst.msk [vmem:[#allocation4 + $0x50] sm:$0xff] %vm2226, 0.0
        %2710 = vst.msk [vmem:[#allocation4 + $0x58] sm:$0xff] %vm2226, 0.0
        %2711 = vst.msk [vmem:[#allocation4 + $0x60] sm:$0xff] %vm2226, 0.0
        %2712 = vst.msk [vmem:[#allocation4 + $0x68] sm:$0xff] %vm2226, 0.0
        %2713 = vst.msk [vmem:[#allocation4 + $0x70] sm:$0xff] %vm2226, 0.0
        %2714 = vst.msk [vmem:[#allocation4 + $0x78] sm:$0xff] %vm2226, 0.0
        %vm2715 = vcmask 125952
        %2716 = vst.msk [vmem:[#allocation4 + $0x80] sm:$0xf] %vm2715, 0.0
        %2717 = vst.msk [vmem:[#allocation4 + $0x1] sm:$0xff] %vm2226, %v2683
        %2718 = vst.msk [vmem:[#allocation4 + $0x9] sm:$0xff] %vm2226, %v2684
        %2719 = vst.msk [vmem:[#allocation4 + $0x11] sm:$0xff] %vm2226, %v2685
        %2720 = vst.msk [vmem:[#allocation4 + $0x19] sm:$0xff] %vm2226, %v2686
        %2721 = vst.msk [vmem:[#allocation4 + $0x21] sm:$0xff] %vm2226, %v2687
        %2722 = vst.msk [vmem:[#allocation4 + $0x29] sm:$0xff] %vm2226, %v2688
        %2723 = vst.msk [vmem:[#allocation4 + $0x31] sm:$0xff] %vm2226, %v2689
        %2724 = vst.msk [vmem:[#allocation4 + $0x39] sm:$0xff] %vm2226, %v2690
        %2725 = vst.msk [vmem:[#allocation4 + $0x43] sm:$0xff] %vm2226, %v2691
        %2726 = vst.msk [vmem:[#allocation4 + $0x4b] sm:$0xff] %vm2226, %v2692
        %2727 = vst.msk [vmem:[#allocation4 + $0x53] sm:$0xff] %vm2226, %v2693
        %2728 = vst.msk [vmem:[#allocation4 + $0x5b] sm:$0xff] %vm2226, %v2694
        %2729 = vst.msk [vmem:[#allocation4 + $0x63] sm:$0xff] %vm2226, %v2695
        %2730 = vst.msk [vmem:[#allocation4 + $0x6b] sm:$0xff] %vm2226, %v2696
        %2731 = vst.msk [vmem:[#allocation4 + $0x73] sm:$0xff] %vm2226, %v2697
        %2732 = vst.msk [vmem:[#allocation4 + $0x7b] sm:$0xff] %vm2226, %v2698
        %v2733 = vld [vmem:[#allocation4] ss:$2 sm:$0xff]
        %s2734 = scalar_lea.vmem [#allocation4], 16
        %v2735 = vld [vmem:[%s2734] ss:$2 sm:$0xff]
        %s2736 = scalar_lea.vmem [#allocation4], 32
        %v2737 = vld [vmem:[%s2736] ss:$2 sm:$0xff]
        %s2738 = scalar_lea.vmem [#allocation4], 48
        %v2739 = vld [vmem:[%s2738] ss:$2 sm:$0xff]
        %s2740 = scalar_lea.vmem [#allocation4], 1
        %v2741 = vld [vmem:[%s2740] ss:$2 sm:$0xff]
        %s2742 = scalar_lea.vmem [#allocation4], 17
        %v2743 = vld [vmem:[%s2742] ss:$2 sm:$0xff]
        %s2744 = scalar_lea.vmem [#allocation4], 33
        %v2745 = vld [vmem:[%s2744] ss:$2 sm:$0xff]
        %s2746 = scalar_lea.vmem [#allocation4], 49
        %v2747 = vld [vmem:[%s2746] ss:$2 sm:$0xff]
        %s2748 = scalar_lea.vmem [#allocation4], 2
        %v2749 = vld [vmem:[%s2748] ss:$2 sm:$0xff]
        %s2750 = scalar_lea.vmem [#allocation4], 18
        %v2751 = vld [vmem:[%s2750] ss:$2 sm:$0xff]
        %s2752 = scalar_lea.vmem [#allocation4], 34
        %v2753 = vld [vmem:[%s2752] ss:$2 sm:$0xff]
        %s2754 = scalar_lea.vmem [#allocation4], 50
        %v2755 = vld [vmem:[%s2754] ss:$2 sm:$0xff]
        %2760 = vrot.lane.b32.xlu0 %v2741, 16
        %v2761 = vpop.permute.xlu0 %2760
        %2762 = vrot.lane.b32.xlu0 %v2743, 16
        %v2763 = vpop.permute.xlu0 %2762
        %2764 = vrot.lane.b32.xlu0 %v2745, 16
        %v2765 = vpop.permute.xlu0 %2764
        %2766 = vrot.lane.b32.xlu0 %v2747, 16
        %v2767 = vpop.permute.xlu0 %2766
        %2776 = vrot.lane.b32.xlu0 %v2749, 32
        %v2777 = vpop.permute.xlu0 %2776
        %2778 = vrot.lane.b32.xlu0 %v2751, 32
        %v2779 = vpop.permute.xlu0 %2778
        %2780 = vrot.lane.b32.xlu0 %v2753, 32
        %v2781 = vpop.permute.xlu0 %2780
        %2782 = vrot.lane.b32.xlu0 %v2755, 32
        %v2783 = vpop.permute.xlu0 %2782
        %v2788 = vsel %vm2226, %v2733, %v2761
        %v2789 = vsel %vm2226, %v2735, %v2763
        %v2790 = vsel %vm2226, %v2737, %v2765
        %v2791 = vsel %vm2226, %v2739, %v2767
        %vm2792 = vcmask 261120
        %v2793 = vsel %vm2792, %v2788, %v2777
        %v2794 = vsel %vm2792, %v2789, %v2779
        %v2795 = vsel %vm2792, %v2790, %v2781
        %v2796 = vsel %vm2792, %v2791, %v2783
        %s2797 = scalar_lea.vmem [#allocation4], 66
        %v2798 = vld [vmem:[%s2797] ss:$2 sm:$0xff]
        %s2799 = scalar_lea.vmem [#allocation4], 82
        %v2800 = vld [vmem:[%s2799] ss:$2 sm:$0xff]
        %s2801 = scalar_lea.vmem [#allocation4], 98
        %v2802 = vld [vmem:[%s2801] ss:$2 sm:$0xff]
        %s2803 = scalar_lea.vmem [#allocation4], 114
        %v2804 = vld [vmem:[%s2803] ss:$2 sm:$0xff]
        %s2805 = scalar_lea.vmem [#allocation4], 67
        %v2806 = vld [vmem:[%s2805] ss:$2 sm:$0xff]
        %s2807 = scalar_lea.vmem [#allocation4], 83
        %v2808 = vld [vmem:[%s2807] ss:$2 sm:$0xff]
        %s2809 = scalar_lea.vmem [#allocation4], 99
        %v2810 = vld [vmem:[%s2809] ss:$2 sm:$0xff]
        %s2811 = scalar_lea.vmem [#allocation4], 115
        %v2812 = vld [vmem:[%s2811] ss:$2 sm:$0xff]
        %s2813 = scalar_lea.vmem [#allocation4], 68
        %v2814 = vld [vmem:[%s2813] ss:$2 sm:$0xff]
        %s2815 = scalar_lea.vmem [#allocation4], 84
        %v2816 = vld [vmem:[%s2815] ss:$2 sm:$0xff]
        %s2817 = scalar_lea.vmem [#allocation4], 100
        %v2818 = vld [vmem:[%s2817] ss:$2 sm:$0xff]
        %s2819 = scalar_lea.vmem [#allocation4], 116
        %v2820 = vld [vmem:[%s2819] ss:$2 sm:$0xff]
        %2825 = vrot.lane.b32.xlu0 %v2806, 16
        %v2826 = vpop.permute.xlu0 %2825
        %2827 = vrot.lane.b32.xlu0 %v2808, 16
        %v2828 = vpop.permute.xlu0 %2827
        %2829 = vrot.lane.b32.xlu0 %v2810, 16
        %v2830 = vpop.permute.xlu0 %2829
        %2831 = vrot.lane.b32.xlu0 %v2812, 16
        %v2832 = vpop.permute.xlu0 %2831
        %2841 = vrot.lane.b32.xlu0 %v2814, 32
        %v2842 = vpop.permute.xlu0 %2841
        %2843 = vrot.lane.b32.xlu0 %v2816, 32
        %v2844 = vpop.permute.xlu0 %2843
        %2845 = vrot.lane.b32.xlu0 %v2818, 32
        %v2846 = vpop.permute.xlu0 %2845
        %2847 = vrot.lane.b32.xlu0 %v2820, 32
        %v2848 = vpop.permute.xlu0 %2847
        %v2853 = vsel %vm2226, %v2798, %v2826
        %v2854 = vsel %vm2226, %v2800, %v2828
        %v2855 = vsel %vm2226, %v2802, %v2830
        %v2856 = vsel %vm2226, %v2804, %v2832
        %v2857 = vsel %vm2792, %v2853, %v2842
        %v2858 = vsel %vm2792, %v2854, %v2844
        %v2859 = vsel %vm2792, %v2855, %v2846
        %v2860 = vsel %vm2792, %v2856, %v2848
        %v2861 = vpack.c.bf16 %v2794, %v2793
        %v2862 = vpack.c.bf16 %v2796, %v2795
        %v2863 = vpack.c.bf16 %v2858, %v2857
        %v2864 = vpack.c.bf16 %v2860, %v2859
        %v2865 = vld [vmem:[%s7] sm:$0xf]
        %v2866 = vld [vmem:[%s7 + $0x4] sm:$0xf]
        %v2867 = vld [vmem:[%s7 + $0x8] sm:$0xf]
        %v2868 = vld [vmem:[%s7 + $0xc] sm:$0xf]
        %v2869 = vld [vmem:[%s7 + $0x10] sm:$0xf]
        %v2870 = vld [vmem:[%s7 + $0x14] sm:$0xf]
        %v2877 = vunpack.c.l.b16 %v2865
        %v2878 = vunpack.c.l.b16 %v2866
        %v2879 = vunpack.c.l.b16 %v2867
        %v2880 = vunpack.c.l.b16 %v2868
        %v2881 = vunpack.c.l.b16 %v2869
        %v2882 = vunpack.c.l.b16 %v2870
        %v2883 = vpack.c.b16 %v2878, %v2877
        %v2884 = vpack.c.b16 %v2880, %v2879
        %v2885 = vpack.c.b16 %v2882, %v2881
        %vm2889 = vcmask 392192
        %v2891 = vsel %vm2889, %v2861, 0
        %v2894 = vsel %vm2889, %v2862, 0
        %v2897 = vsel %vm2889, %v2863, 0
        %v2900 = vsel %vm2889, %v2864, 0
        %2902 = vmatprep.subr.bf16.mxu0 0
        %2903 = vmatpush1.bf16.msra.mxu0 0
        %2904 = vmatprep.subr.bf16.mxu0 0
        %2905 = vmatpush1.bf16.msra.mxu0 0
        %2906 = vmatprep.subr.bf16.mxu0 0
        %2907 = vmatpush1.bf16.msra.mxu0 0
        %2908 = vmatprep.subr.bf16.mxu0 0
        %2909 = vmatpush1.bf16.msra.mxu0 0
        %2910 = vmatprep.subr.bf16.mxu0 0
        %2911 = vmatpush1.bf16.msra.mxu0 0
        %2912 = vmatprep.subr.bf16.mxu0 0
        %2913 = vmatpush1.bf16.msra.mxu0 %v2885
        %2914 = vmatprep.subr.bf16.mxu0 0
        %2915 = vmatpush1.bf16.msra.mxu0 %v2884
        %2916 = vmatprep.subr.bf16.mxu0 0
        %2917 = vmatpush1.bf16.msra.mxu0 %v2883
        %2918 = vmatprep.subr.bf16.mxu0 0
        %2919 = vmatpush2.bf16.msra.mxu0 0
        %2920 = vmatprep.subr.bf16.mxu0 0
        %2921 = vmatpush2.bf16.msra.mxu0 0
        %2922 = vmatprep.subr.bf16.mxu0 0
        %2923 = vmatpush2.bf16.msra.mxu0 0
        %2924 = vmatprep.subr.bf16.mxu0 0
        %2925 = vmatpush2.bf16.msra.mxu0 0
        %2926 = vmatprep.subr.bf16.mxu0 0
        %2927 = vmatpush2.bf16.msra.mxu0 0
        %2928 = vmatprep.subr.bf16.mxu0 0
        %2929 = vmatpush2.bf16.msra.mxu0 0
        %2930 = vmatprep.subr.bf16.mxu0 0
        %2931 = vmatpush2.bf16.msra.mxu0 0
        %2932 = vmatprep.subr.bf16.mxu0 0
        %2933 = vmatpush2.bf16.msra.mxu0 0
        %2934 = vmatprep.mubr.bf16.mxu0 0
        %2935 = vmatmul.mubr.bf16.gmra.mxu0 %v2891
        %v2936 = vpop.f32.mrf.mxu0
        %v2937 = vadd.f32 0.0, %v2936
        %v2938 = vpop.f32.mrf.mxu0
        %v2939 = vpop.f32.mrf.mxu0
        %v2940 = vadd.f32 0.0, %v2939
        %v2941 = vpop.f32.mrf.mxu0
        %2942 = vmatprep.mubr.bf16.mxu0 0
        %2943 = vmatmul.mubr.bf16.gmra.mxu0 %v2894
        %v2944 = vpop.f32.mrf.mxu0
        %v2945 = vadd.f32 0.0, %v2944
        %v2946 = vpop.f32.mrf.mxu0
        %v2947 = vpop.f32.mrf.mxu0
        %v2948 = vadd.f32 0.0, %v2947
        %v2949 = vpop.f32.mrf.mxu0
        %2950 = vmatprep.mubr.bf16.mxu0 0
        %2951 = vmatmul.mubr.bf16.gmra.mxu0 %v2897
        %v2952 = vpop.f32.mrf.mxu0
        %v2953 = vadd.f32 0.0, %v2952
        %v2954 = vpop.f32.mrf.mxu0
        %v2955 = vpop.f32.mrf.mxu0
        %v2956 = vadd.f32 0.0, %v2955
        %v2957 = vpop.f32.mrf.mxu0
        %2958 = vmatprep.mubr.bf16.mxu0 0
        %2959 = vmatmul.mubr.bf16.gmra.mxu0 %v2900
        %v2960 = vpop.f32.mrf.mxu0
        %v2961 = vadd.f32 0.0, %v2960
        %v2962 = vpop.f32.mrf.mxu0
        %v2963 = vpop.f32.mrf.mxu0
        %v2964 = vadd.f32 0.0, %v2963
        %v2965 = vpop.f32.mrf.mxu0
        %2966 = vdwg.mxu0
        %v2967 = vld [vmem:[%s8] sm:$0x1]
        %v2969 = vlaneseq
        %v2970 = vshrl.u32 %v2969, 7
        %v2971 = vsub.s32 0, %v2970
        %v2972 = vrot.slane %v2967, %v2971
        %v2974 = vmul.f32 %v2937, %v2972
        %v2975 = vmul.f32 %v2940, %v2972
        %v2976 = vmul.f32 %v2945, %v2972
        %v2977 = vmul.f32 %v2948, %v2972
        %v2978 = vmul.f32 %v2953, %v2972
        %v2979 = vmul.f32 %v2956, %v2972
        %v2980 = vmul.f32 %v2961, %v2972
        %v2981 = vmul.f32 %v2964, %v2972
        %v2982 = vld [vmem:[%s9] sm:$0x1]
        %v2984 = vlaneseq
        %v2985 = vshrl.u32 %v2984, 7
        %v2986 = vsub.s32 0, %v2985
        %v2987 = vrot.slane %v2982, %v2986
        %v2989 = vadd.f32 %v2974, %v2987
        %v2990 = vadd.f32 %v2975, %v2987
        %v2991 = vadd.f32 %v2976, %v2987
        %v2992 = vadd.f32 %v2977, %v2987
        %v2993 = vadd.f32 %v2978, %v2987
        %v2994 = vadd.f32 %v2979, %v2987
        %v2995 = vadd.f32 %v2980, %v2987
        %v2996 = vadd.f32 %v2981, %v2987
        %v2997 = vmul.f32 %v2989, 0.5
        %v2998 = vmul.f32 %v2990, 0.5
        %v2999 = vmul.f32 %v2991, 0.5
        %v3000 = vmul.f32 %v2992, 0.5
        %v3001 = vmul.f32 %v2993, 0.5
        %v3002 = vmul.f32 %v2994, 0.5
        %v3003 = vmul.f32 %v2995, 0.5
        %v3004 = vmul.f32 %v2996, 0.5
        %v3005 = vmul.f32 %v2989, 0.044715
        %v3006 = vmul.f32 %v2990, 0.044715
        %v3007 = vmul.f32 %v2991, 0.044715
        %v3008 = vmul.f32 %v2992, 0.044715
        %v3009 = vmul.f32 %v2993, 0.044715
        %v3010 = vmul.f32 %v2994, 0.044715
        %v3011 = vmul.f32 %v2995, 0.044715
        %v3012 = vmul.f32 %v2996, 0.044715
        %v3013 = vmul.f32 %v3005, %v2989
        %v3014 = vmul.f32 %v3006, %v2990
        %v3015 = vmul.f32 %v3007, %v2991
        %v3016 = vmul.f32 %v3008, %v2992
        %v3017 = vmul.f32 %v3009, %v2993
        %v3018 = vmul.f32 %v3010, %v2994
        %v3019 = vmul.f32 %v3011, %v2995
        %v3020 = vmul.f32 %v3012, %v2996
        %v3021 = vmul.f32 %v3013, %v2989
        %v3022 = vmul.f32 %v3014, %v2990
        %v3023 = vmul.f32 %v3015, %v2991
        %v3024 = vmul.f32 %v3016, %v2992
        %v3025 = vmul.f32 %v3017, %v2993
        %v3026 = vmul.f32 %v3018, %v2994
        %v3027 = vmul.f32 %v3019, %v2995
        %v3028 = vmul.f32 %v3020, %v2996
        %v3029 = vadd.f32 %v2989, %v3021
        %v3030 = vadd.f32 %v2990, %v3022
        %v3031 = vadd.f32 %v2991, %v3023
        %v3032 = vadd.f32 %v2992, %v3024
        %v3033 = vadd.f32 %v2993, %v3025
        %v3034 = vadd.f32 %v2994, %v3026
        %v3035 = vadd.f32 %v2995, %v3027
        %v3036 = vadd.f32 %v2996, %v3028
        %v3037 = vmul.f32 %v3029, 0.7978846
        %v3038 = vmul.f32 %v3030, 0.7978846
        %v3039 = vmul.f32 %v3031, 0.7978846
        %v3040 = vmul.f32 %v3032, 0.7978846
        %v3041 = vmul.f32 %v3033, 0.7978846
        %v3042 = vmul.f32 %v3034, 0.7978846
        %v3043 = vmul.f32 %v3035, 0.7978846
        %v3044 = vmul.f32 %v3036, 0.7978846
        %v3045 = vtanh.pop %v3037
        %v3046 = vtanh.pop %v3038
        %v3047 = vtanh.pop %v3039
        %v3048 = vtanh.pop %v3040
        %v3049 = vtanh.pop %v3041
        %v3050 = vtanh.pop %v3042
        %v3051 = vtanh.pop %v3043
        %v3052 = vtanh.pop %v3044
        %v3053 = vadd.f32 %v3045, 1.0
        %v3054 = vadd.f32 %v3046, 1.0
        %v3055 = vadd.f32 %v3047, 1.0
        %v3056 = vadd.f32 %v3048, 1.0
        %v3057 = vadd.f32 %v3049, 1.0
        %v3058 = vadd.f32 %v3050, 1.0
        %v3059 = vadd.f32 %v3051, 1.0
        %v3060 = vadd.f32 %v3052, 1.0
        %v3061 = vmul.f32 %v2997, %v3053
        %v3062 = vmul.f32 %v2998, %v3054
        %v3063 = vmul.f32 %v2999, %v3055
        %v3064 = vmul.f32 %v3000, %v3056
        %v3065 = vmul.f32 %v3001, %v3057
        %v3066 = vmul.f32 %v3002, %v3058
        %v3067 = vmul.f32 %v3003, %v3059
        %v3068 = vmul.f32 %v3004, %v3060
        %3069 = vst.msk [vmem:[#allocation5] sm:$0xff] %vm2792, 0.0
        %3070 = vst.msk [vmem:[#allocation5 + $0x8] sm:$0xff] %vm2792, 0.0
        %3071 = vst.msk [vmem:[#allocation5 + $0x10] sm:$0xff] %vm2792, 0.0
        %3072 = vst.msk [vmem:[#allocation5 + $0x18] sm:$0xff] %vm2792, 0.0
        %3073 = vst.msk [vmem:[#allocation5 + $0x20] sm:$0xff] %vm2792, 0.0
        %3074 = vst.msk [vmem:[#allocation5 + $0x28] sm:$0xff] %vm2792, 0.0
        %3075 = vst.msk [vmem:[#allocation5 + $0x30] sm:$0xff] %vm2792, 0.0
        %3076 = vst.msk [vmem:[#allocation5 + $0x38] sm:$0xff] %vm2792, 0.0
        %vm3077 = vcmask 257024
        %3078 = vst.msk [vmem:[#allocation5 + $0x40] sm:$0xf] %vm3077, 0.0
        %3079 = vst.msk [vmem:[#allocation5 + $0x1] sm:$0xff] %vm2792, %v3061
        %3080 = vst.msk [vmem:[#allocation5 + $0x9] sm:$0xff] %vm2792, %v3062
        %3081 = vst.msk [vmem:[#allocation5 + $0x11] sm:$0xff] %vm2792, %v3063
        %3082 = vst.msk [vmem:[#allocation5 + $0x19] sm:$0xff] %vm2792, %v3064
        %3083 = vst.msk [vmem:[#allocation5 + $0x23] sm:$0xff] %vm2792, %v3065
        %3084 = vst.msk [vmem:[#allocation5 + $0x2b] sm:$0xff] %vm2792, %v3066
        %3085 = vst.msk [vmem:[#allocation5 + $0x33] sm:$0xff] %vm2792, %v3067
        %3086 = vst.msk [vmem:[#allocation5 + $0x3b] sm:$0xff] %vm2792, %v3068
        %v3087 = vld [vmem:[#allocation5] ss:$2 sm:$0xff]
        %s3088 = scalar_lea.vmem [#allocation5], 16
        %v3089 = vld [vmem:[%s3088] ss:$2 sm:$0xff]
        %s3090 = scalar_lea.vmem [#allocation5], 1
        %v3091 = vld [vmem:[%s3090] ss:$2 sm:$0xff]
        %s3092 = scalar_lea.vmem [#allocation5], 17
        %v3093 = vld [vmem:[%s3092] ss:$2 sm:$0xff]
        %s3094 = scalar_lea.vmem [#allocation5], 2
        %v3095 = vld [vmem:[%s3094] ss:$2 sm:$0xff]
        %s3096 = scalar_lea.vmem [#allocation5], 18
        %v3097 = vld [vmem:[%s3096] ss:$2 sm:$0xff]
        %3100 = vrot.lane.b32.xlu0 %v3091, 32
        %v3101 = vpop.permute.xlu0 %3100
        %3102 = vrot.lane.b32.xlu0 %v3093, 32
        %v3103 = vpop.permute.xlu0 %3102
        %3108 = vrot.lane.b32.xlu0 %v3095, 64
        %v3109 = vpop.permute.xlu0 %3108
        %3110 = vrot.lane.b32.xlu0 %v3097, 64
        %v3111 = vpop.permute.xlu0 %3110
        %v3114 = vsel %vm2792, %v3087, %v3101
        %v3115 = vsel %vm2792, %v3089, %v3103
        %vm3116 = vcmask 523264
        %v3117 = vsel %vm3116, %v3114, %v3109
        %v3118 = vsel %vm3116, %v3115, %v3111
        %s3119 = scalar_lea.vmem [#allocation5], 34
        %v3120 = vld [vmem:[%s3119] ss:$2 sm:$0xff]
        %s3121 = scalar_lea.vmem [#allocation5], 50
        %v3122 = vld [vmem:[%s3121] ss:$2 sm:$0xff]
        %s3123 = scalar_lea.vmem [#allocation5], 35
        %v3124 = vld [vmem:[%s3123] ss:$2 sm:$0xff]
        %s3125 = scalar_lea.vmem [#allocation5], 51
        %v3126 = vld [vmem:[%s3125] ss:$2 sm:$0xff]
        %s3127 = scalar_lea.vmem [#allocation5], 36
        %v3128 = vld [vmem:[%s3127] ss:$2 sm:$0xff]
        %s3129 = scalar_lea.vmem [#allocation5], 52
        %v3130 = vld [vmem:[%s3129] ss:$2 sm:$0xff]
        %3133 = vrot.lane.b32.xlu0 %v3124, 32
        %v3134 = vpop.permute.xlu0 %3133
        %3135 = vrot.lane.b32.xlu0 %v3126, 32
        %v3136 = vpop.permute.xlu0 %3135
        %3141 = vrot.lane.b32.xlu0 %v3128, 64
        %v3142 = vpop.permute.xlu0 %3141
        %3143 = vrot.lane.b32.xlu0 %v3130, 64
        %v3144 = vpop.permute.xlu0 %3143
        %v3147 = vsel %vm2792, %v3120, %v3134
        %v3148 = vsel %vm2792, %v3122, %v3136
        %v3149 = vsel %vm3116, %v3147, %v3142
        %v3150 = vsel %vm3116, %v3148, %v3144
        %v3151 = vpack.c.bf16 %v3118, %v3117
        %v3152 = vpack.c.bf16 %v3150, %v3149
        %v3153 = vld [vmem:[%s10] sm:$0xf]
        %v3154 = vld [vmem:[%s10 + $0x4] sm:$0xf]
        %v3155 = vld [vmem:[%s10 + $0x8] sm:$0xf]
        %v3156 = vld [vmem:[%s10 + $0xc] sm:$0xf]
        %v3157 = vld [vmem:[%s10 + $0x10] sm:$0xf]
        %v3158 = vld [vmem:[%s10 + $0x14] sm:$0xf]
        %v3159 = vld [vmem:[%s10 + $0x18] sm:$0xf]
        %v3160 = vld [vmem:[%s10 + $0x1c] sm:$0xf]
        %v3161 = vld [vmem:[%s10 + $0x20] sm:$0xf]
        %v3162 = vld [vmem:[%s10 + $0x24] sm:$0xf]
        %v3163 = vld [vmem:[%s10 + $0x28] sm:$0xf]
        %v3164 = vld [vmem:[%s10 + $0x2c] sm:$0xf]
        %v3177 = vunpack.c.l.b16 %v3153
        %v3178 = vunpack.c.l.b16 %v3154
        %v3179 = vunpack.c.l.b16 %v3155
        %v3180 = vunpack.c.l.b16 %v3156
        %v3181 = vunpack.c.l.b16 %v3157
        %v3182 = vunpack.c.l.b16 %v3158
        %v3183 = vunpack.c.l.b16 %v3159
        %v3184 = vunpack.c.l.b16 %v3160
        %v3185 = vunpack.c.l.b16 %v3161
        %v3186 = vunpack.c.l.b16 %v3162
        %v3187 = vunpack.c.l.b16 %v3163
        %v3188 = vunpack.c.l.b16 %v3164
        %v3189 = vpack.c.b16 %v3178, %v3177
        %v3190 = vpack.c.b16 %v3180, %v3179
        %v3191 = vpack.c.b16 %v3182, %v3181
        %v3192 = vpack.c.b16 %v3184, %v3183
        %v3193 = vpack.c.b16 %v3186, %v3185
        %v3194 = vpack.c.b16 %v3188, %v3187
        %vm3201 = vcmask 785408
        %v3203 = vsel %vm3201, %v3151, 0
        %v3206 = vsel %vm3201, %v3152, 0
        %3208 = vmatprep.subr.bf16.mxu0 0
        %3209 = vmatpush1.bf16.msra.mxu0 0
        %3210 = vmatprep.subr.bf16.mxu0 0
        %3211 = vmatpush1.bf16.msra.mxu0 0
        %3212 = vmatprep.subr.bf16.mxu0 0
        %3213 = vmatpush1.bf16.msra.mxu0 %v3194
        %3214 = vmatprep.subr.bf16.mxu0 0
        %3215 = vmatpush1.bf16.msra.mxu0 %v3193
        %3216 = vmatprep.subr.bf16.mxu0 0
        %3217 = vmatpush1.bf16.msra.mxu0 %v3192
        %3218 = vmatprep.subr.bf16.mxu0 0
        %3219 = vmatpush1.bf16.msra.mxu0 %v3191
        %3220 = vmatprep.subr.bf16.mxu0 0
        %3221 = vmatpush1.bf16.msra.mxu0 %v3190
        %3222 = vmatprep.subr.bf16.mxu0 0
        %3223 = vmatpush1.bf16.msra.mxu0 %v3189
        %3224 = vmatprep.subr.bf16.mxu0 0
        %3225 = vmatpush2.bf16.msra.mxu0 0
        %3226 = vmatprep.subr.bf16.mxu0 0
        %3227 = vmatpush2.bf16.msra.mxu0 0
        %3228 = vmatprep.subr.bf16.mxu0 0
        %3229 = vmatpush2.bf16.msra.mxu0 0
        %3230 = vmatprep.subr.bf16.mxu0 0
        %3231 = vmatpush2.bf16.msra.mxu0 0
        %3232 = vmatprep.subr.bf16.mxu0 0
        %3233 = vmatpush2.bf16.msra.mxu0 0
        %3234 = vmatprep.subr.bf16.mxu0 0
        %3235 = vmatpush2.bf16.msra.mxu0 0
        %3236 = vmatprep.subr.bf16.mxu0 0
        %3237 = vmatpush2.bf16.msra.mxu0 0
        %3238 = vmatprep.subr.bf16.mxu0 0
        %3239 = vmatpush2.bf16.msra.mxu0 0
        %3240 = vmatprep.mubr.bf16.mxu0 0
        %3241 = vmatmul.mubr.bf16.gmra.mxu0 %v3203
        %v3242 = vpop.f32.mrf.mxu0
        %v3243 = vadd.f32 0.0, %v3242
        %v3244 = vpop.f32.mrf.mxu0
        %v3245 = vpop.f32.mrf.mxu0
        %v3246 = vadd.f32 0.0, %v3245
        %v3247 = vpop.f32.mrf.mxu0
        %3248 = vmatprep.mubr.bf16.mxu0 0
        %3249 = vmatmul.mubr.bf16.gmra.mxu0 %v3206
        %v3250 = vpop.f32.mrf.mxu0
        %v3251 = vadd.f32 0.0, %v3250
        %v3252 = vpop.f32.mrf.mxu0
        %v3253 = vpop.f32.mrf.mxu0
        %v3254 = vadd.f32 0.0, %v3253
        %v3255 = vpop.f32.mrf.mxu0
        %3256 = vdwg.mxu0
        %v3257 = vld [vmem:[%s11] sm:$0x1]
        %v3259 = vlaneseq
        %v3260 = vshrl.u32 %v3259, 7
        %v3261 = vsub.s32 0, %v3260
        %v3262 = vrot.slane %v3257, %v3261
        %v3264 = vmul.f32 %v3243, %v3262
        %v3265 = vmul.f32 %v3246, %v3262
        %v3266 = vmul.f32 %v3251, %v3262
        %v3267 = vmul.f32 %v3254, %v3262
        %v3268 = vld [vmem:[%s12] sm:$0x1]
        %v3270 = vlaneseq
        %v3271 = vshrl.u32 %v3270, 7
        %v3272 = vsub.s32 0, %v3271
        %v3273 = vrot.slane %v3268, %v3272
        %v3275 = vadd.f32 %v3264, %v3273
        %v3276 = vadd.f32 %v3265, %v3273
        %v3277 = vadd.f32 %v3266, %v3273
        %v3278 = vadd.f32 %v3267, %v3273
        %v3279 = vmul.f32 %v3275, 0.5
        %v3280 = vmul.f32 %v3276, 0.5
        %v3281 = vmul.f32 %v3277, 0.5
        %v3282 = vmul.f32 %v3278, 0.5
        %v3283 = vmul.f32 %v3275, 0.044715
        %v3284 = vmul.f32 %v3276, 0.044715
        %v3285 = vmul.f32 %v3277, 0.044715
        %v3286 = vmul.f32 %v3278, 0.044715
        %v3287 = vmul.f32 %v3283, %v3275
        %v3288 = vmul.f32 %v3284, %v3276
        %v3289 = vmul.f32 %v3285, %v3277
        %v3290 = vmul.f32 %v3286, %v3278
        %v3291 = vmul.f32 %v3287, %v3275
        %v3292 = vmul.f32 %v3288, %v3276
        %v3293 = vmul.f32 %v3289, %v3277
        %v3294 = vmul.f32 %v3290, %v3278
        %v3295 = vadd.f32 %v3275, %v3291
        %v3296 = vadd.f32 %v3276, %v3292
        %v3297 = vadd.f32 %v3277, %v3293
        %v3298 = vadd.f32 %v3278, %v3294
        %v3299 = vmul.f32 %v3295, 0.7978846
        %v3300 = vmul.f32 %v3296, 0.7978846
        %v3301 = vmul.f32 %v3297, 0.7978846
        %v3302 = vmul.f32 %v3298, 0.7978846
        %v3303 = vtanh.pop %v3299
        %v3304 = vtanh.pop %v3300
        %v3305 = vtanh.pop %v3301
        %v3306 = vtanh.pop %v3302
        %v3307 = vadd.f32 %v3303, 1.0
        %v3308 = vadd.f32 %v3304, 1.0
        %v3309 = vadd.f32 %v3305, 1.0
        %v3310 = vadd.f32 %v3306, 1.0
        %v3311 = vmul.f32 %v3279, %v3307
        %v3312 = vmul.f32 %v3280, %v3308
        %v3313 = vmul.f32 %v3281, %v3309
        %v3314 = vmul.f32 %v3282, %v3310
        %3315 = vst.msk [vmem:[#allocation6] sm:$0xff] %vm3116, 0.0
        %3316 = vst.msk [vmem:[#allocation6 + $0x8] sm:$0xff] %vm3116, 0.0
        %3317 = vst.msk [vmem:[#allocation6 + $0x10] sm:$0xff] %vm3116, 0.0
        %3318 = vst.msk [vmem:[#allocation6 + $0x18] sm:$0xff] %vm3116, 0.0
        %vm3319 = vcmask 519168
        %3320 = vst.msk [vmem:[#allocation6 + $0x20] sm:$0xf] %vm3319, 0.0
        %3321 = vst.msk [vmem:[#allocation6 + $0x1] sm:$0xff] %vm3116, %v3311
        %3322 = vst.msk [vmem:[#allocation6 + $0x9] sm:$0xff] %vm3116, %v3312
        %3323 = vst.msk [vmem:[#allocation6 + $0x13] sm:$0xff] %vm3116, %v3313
        %3324 = vst.msk [vmem:[#allocation6 + $0x1b] sm:$0xff] %vm3116, %v3314
        %v3325 = vld [vmem:[#allocation6] ss:$2 sm:$0xff]
        %s3326 = scalar_lea.vmem [#allocation6], 1
        %v3327 = vld [vmem:[%s3326] ss:$2 sm:$0xff]
        %s3328 = scalar_lea.vmem [#allocation6], 2
        %v3329 = vld [vmem:[%s3328] ss:$2 sm:$0xff]
        %3331 = vrot.lane.b32.xlu0 %v3327, 64
        %v3332 = vpop.permute.xlu0 %3331
        %v3334 = vsel %vm3116, %v3325, %v3332
        %s3335 = scalar_lea.vmem [#allocation6], 18
        %v3336 = vld [vmem:[%s3335] ss:$2 sm:$0xff]
        %s3337 = scalar_lea.vmem [#allocation6], 19
        %v3338 = vld [vmem:[%s3337] ss:$2 sm:$0xff]
        %s3339 = scalar_lea.vmem [#allocation6], 20
        %v3340 = vld [vmem:[%s3339] ss:$2 sm:$0xff]
        %3342 = vrot.lane.b32.xlu0 %v3338, 64
        %v3343 = vpop.permute.xlu0 %3342
        %v3345 = vsel %vm3116, %v3336, %v3343
        %v3346 = vpack.c.bf16 %v3345, %v3334
        %v3347 = vpack.c.bf16 %v3340, %v3329
        %v3348 = vld [vmem:[%s13] sm:$0xf]
        %v3349 = vld [vmem:[%s13 + $0x4] sm:$0xf]
        %v3350 = vld [vmem:[%s13 + $0x8] sm:$0xf]
        %v3351 = vld [vmem:[%s13 + $0xc] sm:$0xf]
        %v3352 = vld [vmem:[%s13 + $0x10] sm:$0xf]
        %v3353 = vld [vmem:[%s13 + $0x14] sm:$0xf]
        %v3354 = vld [vmem:[%s13 + $0x18] sm:$0xf]
        %v3355 = vld [vmem:[%s13 + $0x1c] sm:$0xf]
        %v3356 = vld [vmem:[%s13 + $0x20] sm:$0xf]
        %v3357 = vld [vmem:[%s13 + $0x24] sm:$0xf]
        %v3358 = vld [vmem:[%s13 + $0x28] sm:$0xf]
        %v3359 = vld [vmem:[%s13 + $0x2c] sm:$0xf]
        %v3360 = vld [vmem:[%s13 + $0x30] sm:$0xf]
        %v3361 = vld [vmem:[%s13 + $0x34] sm:$0xf]
        %v3362 = vld [vmem:[%s13 + $0x38] sm:$0xf]
        %v3363 = vld [vmem:[%s13 + $0x3c] sm:$0xf]
        %v3364 = vld [vmem:[%s13 + $0x40] sm:$0xf]
        %v3365 = vld [vmem:[%s13 + $0x44] sm:$0xf]
        %v3366 = vld [vmem:[%s13 + $0x48] sm:$0xf]
        %v3367 = vld [vmem:[%s13 + $0x4c] sm:$0xf]
        %v3368 = vld [vmem:[%s13 + $0x50] sm:$0xf]
        %v3369 = vld [vmem:[%s13 + $0x54] sm:$0xf]
        %v3370 = vld [vmem:[%s13 + $0x58] sm:$0xf]
        %v3371 = vld [vmem:[%s13 + $0x5c] sm:$0xf]
        %v3396 = vunpack.c.l.b16 %v3348
        %v3397 = vunpack.c.l.b16 %v3349
        %v3398 = vunpack.c.l.b16 %v3350
        %v3399 = vunpack.c.l.b16 %v3351
        %v3400 = vunpack.c.l.b16 %v3352
        %v3401 = vunpack.c.l.b16 %v3353
        %v3402 = vunpack.c.l.b16 %v3354
        %v3403 = vunpack.c.l.b16 %v3355
        %v3404 = vunpack.c.l.b16 %v3356
        %v3405 = vunpack.c.l.b16 %v3357
        %v3406 = vunpack.c.l.b16 %v3358
        %v3407 = vunpack.c.l.b16 %v3359
        %v3408 = vunpack.c.l.b16 %v3360
        %v3409 = vunpack.c.l.b16 %v3361
        %v3410 = vunpack.c.l.b16 %v3362
        %v3411 = vunpack.c.l.b16 %v3363
        %v3412 = vunpack.c.l.b16 %v3364
        %v3413 = vunpack.c.l.b16 %v3365
        %v3414 = vunpack.c.l.b16 %v3366
        %v3415 = vunpack.c.l.b16 %v3367
        %v3416 = vunpack.c.l.b16 %v3368
        %v3417 = vunpack.c.l.b16 %v3369
        %v3418 = vunpack.c.l.b16 %v3370
        %v3419 = vunpack.c.l.b16 %v3371
        %v3420 = vpack.c.b16 %v3397, %v3396
        %v3421 = vpack.c.b16 %v3399, %v3398
        %v3422 = vpack.c.b16 %v3401, %v3400
        %v3423 = vpack.c.b16 %v3403, %v3402
        %v3424 = vpack.c.b16 %v3405, %v3404
        %v3425 = vpack.c.b16 %v3407, %v3406
        %v3426 = vpack.c.b16 %v3409, %v3408
        %v3427 = vpack.c.b16 %v3411, %v3410
        %v3428 = vpack.c.b16 %v3413, %v3412
        %v3429 = vpack.c.b16 %v3415, %v3414
        %v3430 = vpack.c.b16 %v3417, %v3416
        %v3431 = vpack.c.b16 %v3419, %v3418
        %v3445 = vsel %vm3116, %v3347, 0
        %3447 = vmatprep.subr.bf16.mxu0 0
        %3448 = vmatpush1.bf16.msra.mxu0 %v3427
        %3449 = vmatprep.subr.bf16.mxu0 0
        %3450 = vmatpush1.bf16.msra.mxu0 %v3426
        %3451 = vmatprep.subr.bf16.mxu0 0
        %3452 = vmatpush1.bf16.msra.mxu0 %v3425
        %3453 = vmatprep.subr.bf16.mxu0 0
        %3454 = vmatpush1.bf16.msra.mxu0 %v3424
        %3455 = vmatprep.subr.bf16.mxu0 0
        %3456 = vmatpush1.bf16.msra.mxu0 %v3423
        %3457 = vmatprep.subr.bf16.mxu0 0
        %3458 = vmatpush1.bf16.msra.mxu0 %v3422
        %3459 = vmatprep.subr.bf16.mxu0 0
        %3460 = vmatpush1.bf16.msra.mxu0 %v3421
        %3461 = vmatprep.subr.bf16.mxu0 0
        %3462 = vmatpush1.bf16.msra.mxu0 %v3420
        %3463 = vmatprep.subr.bf16.mxu0 0
        %3464 = vmatpush2.bf16.msra.mxu0 0
        %3465 = vmatprep.subr.bf16.mxu0 0
        %3466 = vmatpush2.bf16.msra.mxu0 0
        %3467 = vmatprep.subr.bf16.mxu0 0
        %3468 = vmatpush2.bf16.msra.mxu0 0
        %3469 = vmatprep.subr.bf16.mxu0 0
        %3470 = vmatpush2.bf16.msra.mxu0 0
        %3471 = vmatprep.subr.bf16.mxu0 0
        %3472 = vmatpush2.bf16.msra.mxu0 %v3431
        %3473 = vmatprep.subr.bf16.mxu0 0
        %3474 = vmatpush2.bf16.msra.mxu0 %v3430
        %3475 = vmatprep.subr.bf16.mxu0 0
        %3476 = vmatpush2.bf16.msra.mxu0 %v3429
        %3477 = vmatprep.subr.bf16.mxu0 0
        %3478 = vmatpush2.bf16.msra.mxu0 %v3428
        %3479 = vmatprep.mubr.bf16.mxu0 %v3445
        %3480 = vmatmul.mubr.bf16.gmra.mxu0 %v3346
        %v3481 = vpop.f32.mrf.mxu0
        %v3482 = vadd.f32 0.0, %v3481
        %v3483 = vpop.f32.mrf.mxu0
        %v3484 = vpop.f32.mrf.mxu0
        %v3485 = vadd.f32 0.0, %v3484
        %v3486 = vpop.f32.mrf.mxu0
        %3487 = vdwg.mxu0
        %v3488 = vld [vmem:[%s14] sm:$0x1]
        %v3490 = vlaneseq
        %v3491 = vshrl.u32 %v3490, 7
        %v3492 = vsub.s32 0, %v3491
        %v3493 = vrot.slane %v3488, %v3492
        %v3495 = vmul.f32 %v3482, %v3493
        %v3496 = vmul.f32 %v3485, %v3493
        %v3497 = vld [vmem:[%s15] sm:$0x1]
        %v3499 = vlaneseq
        %v3500 = vshrl.u32 %v3499, 7
        %v3501 = vsub.s32 0, %v3500
        %v3502 = vrot.slane %v3497, %v3501
        %v3504 = vadd.f32 %v3495, %v3502
        %v3505 = vadd.f32 %v3496, %v3502
        %v3506 = vmul.f32 %v3504, 0.5
        %v3507 = vmul.f32 %v3505, 0.5
        %v3508 = vmul.f32 %v3504, 0.044715
        %v3509 = vmul.f32 %v3505, 0.044715
        %v3510 = vmul.f32 %v3508, %v3504
        %v3511 = vmul.f32 %v3509, %v3505
        %v3512 = vmul.f32 %v3510, %v3504
        %v3513 = vmul.f32 %v3511, %v3505
        %v3514 = vadd.f32 %v3504, %v3512
        %v3515 = vadd.f32 %v3505, %v3513
        %v3516 = vmul.f32 %v3514, 0.7978846
        %v3517 = vmul.f32 %v3515, 0.7978846
        %v3518 = vtanh.pop %v3516
        %v3519 = vtanh.pop %v3517
        %v3520 = vadd.f32 %v3518, 1.0
        %v3521 = vadd.f32 %v3519, 1.0
        %v3522 = vmul.f32 %v3506, %v3520
        %v3523 = vmul.f32 %v3507, %v3521
        %v3524 = vpack.c.bf16 %v3523, %v3522
        %v3525 = vld [vmem:[%s16] sm:$0xf]
        %v3526 = vld [vmem:[%s16 + $0x4] sm:$0xf]
        %v3527 = vld [vmem:[%s16 + $0x8] sm:$0xf]
        %v3528 = vld [vmem:[%s16 + $0xc] sm:$0xf]
        %v3529 = vld [vmem:[%s16 + $0x10] sm:$0xf]
        %v3530 = vld [vmem:[%s16 + $0x14] sm:$0xf]
        %v3531 = vld [vmem:[%s16 + $0x18] sm:$0xf]
        %v3532 = vld [vmem:[%s16 + $0x1c] sm:$0xf]
        %v3533 = vld [vmem:[%s16 + $0x20] sm:$0xf]
        %v3534 = vld [vmem:[%s16 + $0x24] sm:$0xf]
        %v3535 = vld [vmem:[%s16 + $0x28] sm:$0xf]
        %v3536 = vld [vmem:[%s16 + $0x2c] sm:$0xf]
        %v3537 = vld [vmem:[%s16 + $0x30] sm:$0xf]
        %v3538 = vld [vmem:[%s16 + $0x34] sm:$0xf]
        %v3539 = vld [vmem:[%s16 + $0x38] sm:$0xf]
        %v3540 = vld [vmem:[%s16 + $0x3c] sm:$0xf]
        %v3541 = vld [vmem:[%s17] sm:$0x1]
        %v3543 = vlaneseq
        %v3544 = vshrl.u32 %v3543, 7
        %v3545 = vsub.s32 0, %v3544
        %v3546 = vrot.slane %v3541, %v3545
        %v3564 = vunpack.c.l.b16 %v3525
        %v3565 = vunpack.c.l.b16 %v3526
        %v3566 = vunpack.c.l.b16 %v3527
        %v3567 = vunpack.c.l.b16 %v3528
        %v3568 = vunpack.c.l.b16 %v3529
        %v3569 = vunpack.c.l.b16 %v3530
        %v3570 = vunpack.c.l.b16 %v3531
        %v3571 = vunpack.c.l.b16 %v3532
        %v3572 = vunpack.c.l.b16 %v3533
        %v3573 = vunpack.c.l.b16 %v3534
        %v3574 = vunpack.c.l.b16 %v3535
        %v3575 = vunpack.c.l.b16 %v3536
        %v3576 = vunpack.c.l.b16 %v3537
        %v3577 = vunpack.c.l.b16 %v3538
        %v3578 = vunpack.c.l.b16 %v3539
        %v3579 = vunpack.c.l.b16 %v3540
        %v3580 = vpack.c.b16 %v3565, %v3564
        %v3581 = vpack.c.b16 %v3567, %v3566
        %v3582 = vpack.c.b16 %v3569, %v3568
        %v3583 = vpack.c.b16 %v3571, %v3570
        %v3584 = vpack.c.b16 %v3573, %v3572
        %v3585 = vpack.c.b16 %v3575, %v3574
        %v3586 = vpack.c.b16 %v3577, %v3576
        %v3587 = vpack.c.b16 %v3579, %v3578
        %3596 = vmatprep.subr.bf16.mxu0 0
        %3597 = vmatpush1.bf16.msra.mxu0 %v3587
        %3598 = vmatprep.subr.bf16.mxu0 0
        %3599 = vmatpush1.bf16.msra.mxu0 %v3586
        %3600 = vmatprep.subr.bf16.mxu0 0
        %3601 = vmatpush1.bf16.msra.mxu0 %v3585
        %3602 = vmatprep.subr.bf16.mxu0 0
        %3603 = vmatpush1.bf16.msra.mxu0 %v3584
        %3604 = vmatprep.subr.bf16.mxu0 0
        %3605 = vmatpush1.bf16.msra.mxu0 %v3583
        %3606 = vmatprep.subr.bf16.mxu0 0
        %3607 = vmatpush1.bf16.msra.mxu0 %v3582
        %3608 = vmatprep.subr.bf16.mxu0 0
        %3609 = vmatpush1.bf16.msra.mxu0 %v3581
        %3610 = vmatprep.subr.bf16.mxu0 0
        %3611 = vmatpush1.bf16.msra.mxu0 %v3580
        %3612 = vmatprep.subr.bf16.mxu0 0
        %3613 = vmatpush2.bf16.msra.mxu0 0
        %3614 = vmatprep.subr.bf16.mxu0 0
        %3615 = vmatpush2.bf16.msra.mxu0 0
        %3616 = vmatprep.subr.bf16.mxu0 0
        %3617 = vmatpush2.bf16.msra.mxu0 0
        %3618 = vmatprep.subr.bf16.mxu0 0
        %3619 = vmatpush2.bf16.msra.mxu0 0
        %3620 = vmatprep.subr.bf16.mxu0 0
        %3621 = vmatpush2.bf16.msra.mxu0 0
        %3622 = vmatprep.subr.bf16.mxu0 0
        %3623 = vmatpush2.bf16.msra.mxu0 0
        %3624 = vmatprep.subr.bf16.mxu0 0
        %3625 = vmatpush2.bf16.msra.mxu0 0
        %3626 = vmatprep.subr.bf16.mxu0 0
        %3627 = vmatpush2.bf16.msra.mxu0 0
        %3628 = vmatprep.mubr.bf16.mxu0 0
        %3629 = vmatmul.mubr.bf16.gmra.mxu0 %v3524
        %v3630 = vpop.f32.mrf.mxu0
        %v3631 = vadd.f32 %v3546, %v3630
        %v3632 = vpop.f32.mrf.mxu0
        %v3633 = vpop.f32.mrf.mxu0
        %v3634 = vadd.f32 %v3546, %v3633
        %v3635 = vpop.f32.mrf.mxu0
        %3636 = vdwg.mxu0
        %v3637 = vmul.f32 %v3631, 0.5
        %v3638 = vmul.f32 %v3634, 0.5
        %v3639 = vmul.f32 %v3631, 0.044715
        %v3640 = vmul.f32 %v3634, 0.044715
        %v3641 = vmul.f32 %v3639, %v3631
        %v3642 = vmul.f32 %v3640, %v3634
        %v3643 = vmul.f32 %v3641, %v3631
        %v3644 = vmul.f32 %v3642, %v3634
        %v3645 = vadd.f32 %v3631, %v3643
        %v3646 = vadd.f32 %v3634, %v3644
        %v3647 = vmul.f32 %v3645, 0.7978846
        %v3648 = vmul.f32 %v3646, 0.7978846
        %v3649 = vtanh.pop %v3647
        %v3650 = vtanh.pop %v3648
        %v3651 = vadd.f32 %v3649, 1.0
        %v3652 = vadd.f32 %v3650, 1.0
        %v3653 = vmul.f32 %v3637, %v3651
        %v3654 = vmul.f32 %v3638, %v3652
        %vm3655 = vcmask 1041408
        %v3656 = vsel %vm3655, %v3653, 0.0
        %v3657 = vrot.slane %v3656, 4
        %v3658 = vadd.f32 %v3656, %v3657
        %v3659 = vrot.slane %v3658, 2
        %v3660 = vadd.f32 %v3658, %v3659
        %v3661 = vrot.slane %v3660, 1
        %v3662 = vadd.f32 %v3660, %v3661
        %v3663 = vrcp.pop 2.0
        %v3664 = vmul.f32 %v3662, %v3663
        %v3666 = vrot.slane %v3653, 2
        %v3668 = vsel %vm3655, %v3666, 0.0
        %v3669 = vrot.slane %v3668, 4
        %v3670 = vadd.f32 %v3668, %v3669
        %v3671 = vrot.slane %v3670, 2
        %v3672 = vadd.f32 %v3670, %v3671
        %v3673 = vrot.slane %v3672, 1
        %v3674 = vadd.f32 %v3672, %v3673
        %v3675 = vmul.f32 %v3674, %v3663
        %v3676 = vrot.slane %v3653, 4
        %v3678 = vsel %vm3655, %v3676, 0.0
        %v3679 = vrot.slane %v3678, 4
        %v3680 = vadd.f32 %v3678, %v3679
        %v3681 = vrot.slane %v3680, 2
        %v3682 = vadd.f32 %v3680, %v3681
        %v3683 = vrot.slane %v3682, 1
        %v3684 = vadd.f32 %v3682, %v3683
        %v3685 = vmul.f32 %v3684, %v3663
        %v3686 = vrot.slane %v3653, 6
        %v3688 = vsel %vm3655, %v3686, 0.0
        %v3689 = vrot.slane %v3688, 4
        %v3690 = vadd.f32 %v3688, %v3689
        %v3691 = vrot.slane %v3690, 2
        %v3692 = vadd.f32 %v3690, %v3691
        %v3693 = vrot.slane %v3692, 1
        %v3694 = vadd.f32 %v3692, %v3693
        %v3695 = vmul.f32 %v3694, %v3663
        %v3696 = vsel %vm3655, %v3654, 0.0
        %v3697 = vrot.slane %v3696, 4
        %v3698 = vadd.f32 %v3696, %v3697
        %v3699 = vrot.slane %v3698, 2
        %v3700 = vadd.f32 %v3698, %v3699
        %v3701 = vrot.slane %v3700, 1
        %v3702 = vadd.f32 %v3700, %v3701
        %v3703 = vmul.f32 %v3702, %v3663
        %v3705 = vrot.slane %v3654, 2
        %v3707 = vsel %vm3655, %v3705, 0.0
        %v3708 = vrot.slane %v3707, 4
        %v3709 = vadd.f32 %v3707, %v3708
        %v3710 = vrot.slane %v3709, 2
        %v3711 = vadd.f32 %v3709, %v3710
        %v3712 = vrot.slane %v3711, 1
        %v3713 = vadd.f32 %v3711, %v3712
        %v3714 = vmul.f32 %v3713, %v3663
        %v3715 = vrot.slane %v3654, 4
        %v3717 = vsel %vm3655, %v3715, 0.0
        %v3718 = vrot.slane %v3717, 4
        %v3719 = vadd.f32 %v3717, %v3718
        %v3720 = vrot.slane %v3719, 2
        %v3721 = vadd.f32 %v3719, %v3720
        %v3722 = vrot.slane %v3721, 1
        %v3723 = vadd.f32 %v3721, %v3722
        %v3724 = vmul.f32 %v3723, %v3663
        %v3725 = vrot.slane %v3654, 6
        %v3727 = vsel %vm3655, %v3725, 0.0
        %v3728 = vrot.slane %v3727, 4
        %v3729 = vadd.f32 %v3727, %v3728
        %v3730 = vrot.slane %v3729, 2
        %v3731 = vadd.f32 %v3729, %v3730
        %v3732 = vrot.slane %v3731, 1
        %v3733 = vadd.f32 %v3731, %v3732
        %v3734 = vmul.f32 %v3733, %v3663
        %vm3735 = vcmask 1040384
        %v3736 = vsel %vm3735, %v3664, %v3675
        %v3737 = vsel %vm3655, %v3736, %v3685
        %vm3738 = vcmask 1042432
        %v3739 = vsel %vm3738, %v3737, %v3695
        %v3740 = vsel %vm2408, %v3739, %v3703
        %vm3741 = vcmask 1044480
        %v3742 = vsel %vm3741, %v3740, %v3714
        %vm3743 = vcmask 1045504
        %v3744 = vsel %vm3743, %v3742, %v3724
        %vm3745 = vcmask 1046528
        %v3746 = vsel %vm3745, %v3744, %v3734
        %3747 = vadd.xlane.f32.xlu0 %v3746
        %v3748 = vpop.xlane.xlu0 %3747
        %v3749 = vrcp.pop 128.0
        %v3750 = vmul.f32 %v3748, %v3749
        %v3751 = vsub.f32 %v3746, %v3750
        %v3752 = vmul.f32 %v3751, %v3751
        %3753 = vadd.xlane.f32.xlu0 %v3752
        %v3754 = vpop.xlane.xlu0 %3753
        %v3755 = vmul.f32 %v3754, %v3749
        %v3756 = vadd.f32 %v3755, 1e-05
        %v3757 = vrsqrt.pop %v3756
        %v3758 = vmul.f32 %v3751, %v3757
        %v3759 = vld [vmem:[%s18] sm:$0x1]
        %v3761 = vlaneseq
        %v3762 = vshrl.u32 %v3761, 7
        %v3763 = vsub.s32 0, %v3762
        %v3764 = vrot.slane %v3759, %v3763
        %v3766 = vmul.f32 %v3758, %v3764
        %v3767 = vld [vmem:[%s19] sm:$0x1]
        %v3769 = vlaneseq
        %v3770 = vshrl.u32 %v3769, 7
        %v3771 = vsub.s32 0, %v3770
        %v3772 = vrot.slane %v3767, %v3771
        %v3774 = vadd.f32 %v3766, %v3772
        %v3776 = vcombine.high %v3774, %v3774
        %3778 = vst [vmem:[%s623] sm:$0xf] %v3774
        %3779 = vst [vmem:[%s623 + $0x4] sm:$0xf] %v3776
        %s3780 = sand.u32 %s467, 1
        %s3781 = scalar_lea.sflag [#allocation8], %s3780
        %s3782 = sand.u32 %s467, 1
        %s3783 = smul.addr %s3782, 8
        %s3784 = scalar_lea.vmem [#allocation7], %s3783
        // Predicated region
        $region101: #{forward.1} parent=99 // pred_check
          %p3785 = pneg %p477
        $region102: #{forward.1} parent=99 // pred_check_branch
          %3787 = sbr.rel (%p3785) target = $region104
        $region103: #{forward.1} parent=99 // pred_region
          %s3788 = smul.u32 2, %s34
          %s3790 = ssub.s32 128, 128
          %3791 = vsyncadd %s3781, %s3790
          %s3792 = smul.addr %s3788, 64
          %s3793 = scalar_lea.hbm %s20, %s3792
          %s3794 = sshll.u32 %s3784, 4
          %s3795 = int_to_ptr.vmem [resolvable:$true] %s3794
          %3800 = dma.vmem_to_hbm [thread:$0]  %s3795, 128, %s3793, %s3781, 64, 64, 4
        $region104: #{forward.1} parent=99 // pred_fallthru
          _
      $region100: #{forward.1} parent=5 // pred_fallthru
        _
      %p3801 = scmp.le.s32.totalorder 2, %s29
      // Predicated region
      $region105: #{forward.1} parent=5 // pred_check
        %p3802 = pneg %p3801
      $region106: #{forward.1} parent=5 // pred_check_branch
        %3804 = sbr.rel (%p3802) target = $region108
      $region107: #{forward.1} parent=5 // pred_region
        %s3805 = ssub.s32 %s29, 2
        // Predicated region
        $region109: #{forward.1} parent=107 // pred_check
          %p3806 = pneg %p483
        $region110: #{forward.1} parent=107 // pred_check_branch
          %3808 = sbr.rel (%p3806) target = $region112
        $region111: #{forward.1} parent=107 // pred_region
          %s3809 = sand.u32 %s468, 1
          %s3810 = scalar_lea.sflag [#allocation8], %s3809
          %s3811 = sand.u32 %s468, 1
          %s3812 = smul.addr %s3811, 8
          %s3813 = scalar_lea.vmem [#allocation7], %s3812
          %3814 = dma.done %s3810, 128
        $region112: #{forward.1} parent=107 // pred_fallthru
          _
      $region108: #{forward.1} parent=5 // pred_fallthru
        _
    $region6: #{forward.1} parent=1 // loop_footer
      %s33 = sadd.s32 1, %s29
    $region7: #{forward.1} parent=1 // loop_footer_branch
      %28 = sbr.rel target = $region3
    $region8: #{forward.1} parent=1 // loop_exit
      _
    %3815 = vsyncpa [#allocation8], 1
    %s3816 = scalar_lea.sflag [#allocation8], 1
    %3817 = vsyncpa %s3816, 1

</llo_original>
